<compile_context>
chip_gen: v6e
topology: v6e:2x2x1
jax: 0.10.0
libtpu: 0.0.40
codegen_flags: <defaults>
</compile_context>

<pallas_src>
import functools
import numpy as np
import jax
import jax.numpy as jnp
from jax import lax
from jax.experimental import pallas as pl
from jax.experimental.pallas import tpu as pltpu

MEL_MIN = -11.512925148010254
TORCH_MEL_MAX = 4.82
LOG_CLAMP_MIN = 1e-5


def _round_up(x, m):
    return ((x + m - 1) // m) * m


# -------------------- deterministic "parameter" construction (trace-time numpy) ----------

def _hz_to_mel_htk(f):
    return 2595.0 * np.log10(1.0 + f / 700.0)


def _mel_to_hz_htk(m):
    return 700.0 * (10.0 ** (m / 2595.0) - 1.0)


def make_mel_filterbank(n_freqs, f_min, f_max, n_mels, sample_rate):
    """torchaudio.functional.melscale_fbanks(mel_scale='htk', norm='slaney')."""
    all_freqs = np.linspace(0.0, sample_rate / 2.0, n_freqs)
    m_min = _hz_to_mel_htk(f_min)
    m_max = _hz_to_mel_htk(f_max)
    m_pts = np.linspace(m_min, m_max, n_mels + 2)
    f_pts = _mel_to_hz_htk(m_pts)                       # [n_mels + 2]
    f_diff = f_pts[1:] - f_pts[:-1]                     # [n_mels + 1]
    slopes = f_pts[None, :] - all_freqs[:, None]        # [n_freqs, n_mels + 2]
    down = -slopes[:, :-2] / f_diff[None, :-1]
    up = slopes[:, 2:] / f_diff[None, 1:]
    fb = np.maximum(0.0, np.minimum(down, up))          # [n_freqs, n_mels]
    enorm = 2.0 / (f_pts[2:n_mels + 2] - f_pts[:n_mels])  # slaney norm
    fb = fb * enorm[None, :]
    return fb.astype(np.float32)


def make_dft_matrices(n_fft):
    """Real/imag DFT matrices for a one-sided spectrum: [n_fft, n_fft//2 + 1]."""
    n_freq = n_fft // 2 + 1
    k = np.arange(n_fft)[:, None]
    f = np.arange(n_freq)[None, :]
    ang = 2.0 * np.pi * k * f / n_fft
    return np.cos(ang).astype(np.float32), (-np.sin(ang)).astype(np.float32)


def hann_window(win_length):
    n = np.arange(win_length)
    return (0.5 * (1.0 - np.cos(2.0 * np.pi * n / win_length))).astype(np.float32)


def _build_logmel_weights(n_fft, win_length, n_mels, f_min, f_max, sample_rate):
    """Window-folded, lane-aligned DFT ([n_fft, 2*nfp]) and fb^T ([n_mels, nfp])."""
    n_freq = n_fft // 2 + 1
    window = hann_window(win_length)
    cos_m, sin_m = make_dft_matrices(n_fft)
    fb = make_mel_filterbank(n_freq, f_min, f_max, n_mels, sample_rate)
    # Fold the Hann window into the constant DFT weights (mathematically exact).
    cos_m = cos_m * window[:, None]
    sin_m = sin_m * window[:, None]
    # Lane-align n_freq to a multiple of 128: trim trailing bins whose mel rows are all
    # zero (bins above f_max contribute nothing), otherwise zero-pad.
    nz = np.flatnonzero(np.any(fb != 0.0, axis=1))
    last = int(nz[-1]) + 1 if nz.size else 1
    n_freq_pad = max(128, _round_up(last, 128))
    if n_freq_pad <= n_freq:
        assert np.all(fb[n_freq_pad:, :] == 0.0), "trimmed fb rows must be exactly zero"
        cos_m, sin_m, fb = cos_m[:, :n_freq_pad], sin_m[:, :n_freq_pad], fb[:n_freq_pad]
    else:
        extra = n_freq_pad - n_freq
        cos_m = np.pad(cos_m, ((0, 0), (0, extra)))
        sin_m = np.pad(sin_m, ((0, 0), (0, extra)))
        fb = np.pad(fb, ((0, extra), (0, 0)))
    dft = np.concatenate([cos_m, sin_m], axis=1).astype(np.float32)   # [n_fft, 2*nfp]
    fb_t = np.ascontiguousarray(fb.T).astype(np.float32)              # [n_mels, nfp]
    return dft, fb_t, n_freq_pad


# ------------------------------- Pallas kernels -----------------------------------

def _power_to_logmel(reim, fbt_ref, out_ref, true_normalization):
    """reim [TF, 2*nfp] f32  ->  out_ref [n_mels, TF] (lane-dense)."""
    nfp = fbt_ref.shape[-1]
    sq = reim * reim
    power = sq[:, :nfp] + sq[:, nfp:]                       # [TF, nfp] f32, lane-aligned slices
    # Contract the last dims of BOTH operands (A @ B^T): the transpose stays on the MXU
    # path (standard attention-style matmul), output is already [n_mels, TF].
    mel_t = lax.dot_general(fbt_ref[...], power,
                            dimension_numbers=(((1,), (1,)), ((), ())),
                            preferred_element_type=jnp.float32)
    logmel = jnp.log(jnp.maximum(mel_t, LOG_CLAMP_MIN))
    if true_normalization:
        logmel = 2.0 * ((logmel - MEL_MIN) / (TORCH_MEL_MAX - MEL_MIN)) - 1.0
    out_ref[...] = logmel


def _melspec_fused_kernel(main_ref, tail_ref, dft_ref, fbt_ref, out_ref, *,
                          num_views, true_normalization):
    # main_ref: [TF, hop]  hop-sized waveform rows of this chunk (compute dtype).
    # tail_ref: [8,  hop]  first rows of the next chunk (overlap; only R-1 used).
    # dft_ref:  [n_fft, 2*nfp] window-folded cos|sin weights (compute dtype).
    # fbt_ref:  [n_mels, nfp]  mel filterbank, transposed (f32).
    # out_ref:  [n_mels, TF]   log-mel, transposed (lane-dense stores).
    TF, hop = main_ref.shape
    main = main_ref[...]
    # View k=0 is 8-sublane aligned: matmul straight from the main block.
    reim = jnp.dot(main, dft_ref[0:hop, :], preferred_element_type=jnp.float32)
    if num_views > 1:
        # Overlapping window (1x waveform bytes) -- the [TF, n_fft] frames tile is never built;
        # the remaining views accumulate per-view matmuls against aligned dft row slices.
        window = jnp.concatenate([main, tail_ref[...]], axis=0)     # [TF + 8, hop]
        for k in range(1, num_views):
            reim = reim + jnp.dot(window[k:k + TF, :],
                                  dft_ref[k * hop:(k + 1) * hop, :],
                                  preferred_element_type=jnp.float32)
    _power_to_logmel(reim, fbt_ref, out_ref, true_normalization)


def _melspec_framed_kernel(frames_ref, dft_ref, fbt_ref, out_ref, *, true_normalization):
    # Generic-hop fallback: frames were materialized in XLA; single DFT matmul.
    reim = jnp.dot(frames_ref[...], dft_ref[...], preferred_element_type=jnp.float32)
    _power_to_logmel(reim, fbt_ref, out_ref, true_normalization)


# --------------------------------- wrapper ---------------------------------------

@functools.partial(
    jax.jit,
    static_argnames=("n_fft", "hop_length", "win_length", "n_mels", "f_min", "f_max",
                     "sample_rate", "compute_dtype", "frame_tile", "true_normalization"))
def for_each_mel_injector(x, *, n_fft, hop_length, win_length, n_mels, f_min, f_max,
                          sample_rate, compute_dtype=jnp.bfloat16, frame_tile=512,
                          true_normalization=False):
    """ForEachInjector(subtype='torch_mel_spectrogram'): x [B, N, T] -> [B, N, n_mels, F]."""
    # TODO(synk): win_length < filter_length (centered zero-padded window) not implemented.
    assert win_length == n_fft, "win_length must equal filter_length in this impl"
    B, N, T = x.shape
    M = B * N
    pad = n_fft // 2
    assert T > pad, "reflect padding requires T > n_fft // 2"
    F = 1 + T // hop_length

    dft_np, fbt_np, nfp = _build_logmel_weights(
        n_fft, win_length, n_mels, f_min, f_max, sample_rate)
    dft = jnp.asarray(dft_np).astype(compute_dtype)   # MXU-dtype DFT weights (bf16 default)
    fbt = jnp.asarray(fbt_np)                         # fb / power / log path stays f32

    # Frame tile = kernel M dim and the output lane dim: multiple of 128, large enough to
    # amortize per-grid-step overhead, small enough for every generation's scoped VMEM.
    TF = min(_round_up(frame_tile, 128), _round_up(F, 128))
    n_chunks = -(-F // TF)
    itemsize = jnp.dtype(compute_dtype).itemsize

    # Cast before padding: bf16 samples are what the MXU consumes anyway, so accuracy is
    # unchanged while pad traffic, input DMA and input double-buffers are halved.
    # (compute_dtype=float32 keeps the full-precision STFT path.)
    xf = x.reshape(M, T).astype(compute_dtype)
    xp = jnp.pad(xf, ((0, 0), (pad, pad)), mode="reflect")    # center=True reflect pad

    R = n_fft // hop_length if (n_fft % hop_length == 0) else 0
    fused = (R >= 1) and (R <= 8) and (hop_length % 128 == 0)

    if fused:
        # Fused framing: each grid step (m, c) reads a TF-row block of hop-sized waveform
        # rows plus an 8-row tail (the overlap with chunk c+1) -- no wrapper-side chunk
        # stack, no frames materialization anywhere.
        hop = hop_length
        tail_rows = 8                                   # >= R - 1, sublane aligned
        nb_total = n_chunks * TF + tail_rows            # keeps every block fully in-bounds
        total = nb_total * hop
        assert total >= T + n_fft
        xp = jnp.pad(xp, ((0, 0), (0, total - (T + n_fft))))
        blocks = xp.reshape(M, nb_total, hop)

        tb = TF // tail_rows                            # tail block-index stride (block=8 rows)
        in_specs = [
            pl.BlockSpec((None, TF, hop), lambda m, c: (m, c, 0)),
            pl.BlockSpec((None, tail_rows, hop), lambda m, c: (m, (c + 1) * tb, 0)),
            pl.BlockSpec((n_fft, 2 * nfp), lambda m, c: (0, 0),
                         pipeline_mode=pl.Buffered(1)),        # resident weights, 1 buffer
            pl.BlockSpec((n_mels, nfp), lambda m, c: (0, 0),
                         pipeline_mode=pl.Buffered(1)),
        ]
        kernel = functools.partial(_melspec_fused_kernel, num_views=R,
                                   true_normalization=true_normalization)
        args = (blocks, blocks, dft, fbt)
        in_bytes = M * n_chunks * (TF + tail_rows) * hop * itemsize
    else:
        # TODO(synk): generic hop (doesn't divide n_fft / not a multiple of 128) still
        # materializes frames via an XLA gather (~R x waveform bytes); a manual-DMA
        # windowed path (memory_space=pl.ANY + make_async_copy) would remove that.
        nb_total = n_chunks * TF
        need = (nb_total - 1) * hop_length + n_fft
        xp = jnp.pad(xp, ((0, 0), (0, max(0, need - (T + n_fft)))))
        idx = np.arange(nb_total)[:, None] * hop_length + np.arange(n_fft)[None, :]
        frames = xp[:, idx]                              # [M, nb_total, n_fft]
        in_specs = [
            pl.BlockSpec((None, TF, n_fft), lambda m, c: (m, c, 0)),
            pl.BlockSpec((n_fft, 2 * nfp), lambda m, c: (0, 0),
                         pipeline_mode=pl.Buffered(1)),
            pl.BlockSpec((n_mels, nfp), lambda m, c: (0, 0),
                         pipeline_mode=pl.Buffered(1)),
        ]
        kernel = functools.partial(_melspec_framed_kernel,
                                   true_normalization=true_normalization)
        args = (frames, dft, fbt)
        in_bytes = M * n_chunks * TF * n_fft * itemsize

    nsteps = M * n_chunks
    cost = pl.CostEstimate(
        flops=int(nsteps * (2 * TF * n_fft * (2 * nfp) + 2 * n_mels * nfp * TF)),
        transcendentals=int(nsteps * n_mels * TF),
        bytes_accessed=int(in_bytes + dft_np.nbytes + fbt_np.nbytes + M * n_mels * F * 4),
    )

    # Output is written directly in its final layout; the last chunk's partial block
    # (F not a multiple of TF) is masked by the writeback DMA, so no post-kernel
    # transpose or slice pass is needed.  Both grid axes are independent ("parallel"),
    # so v7x megacore splits (M * n_chunks) steps across its two TensorCores.
    out = pl.pallas_call(
        kernel,
        out_shape=jax.ShapeDtypeStruct((M, n_mels, F), jnp.float32),
        grid=(M, n_chunks),
        in_specs=in_specs,
        out_specs=pl.BlockSpec((None, n_mels, TF), lambda m, c: (m, 0, c)),
        compiler_params=pltpu.CompilerParams(
            dimension_semantics=("parallel", "parallel")),
        cost_estimate=cost,
    )(*args)

    return out.reshape(B, N, n_mels, F)


# --------------------------------- reference -------------------------------------

def _reference_jax(x, *, n_fft, hop_length, win_length, n_mels, f_min, f_max,
                   sample_rate, compute_dtype=jnp.float32):
    """Straightforward (unfused, untrimmed, untransposed) JAX implementation."""
    B, N, T = x.shape
    M = B * N
    n_freq = n_fft // 2 + 1
    F = 1 + T // hop_length
    window = hann_window(win_length)
    cos_m, sin_m = make_dft_matrices(n_fft)
    dft = np.concatenate([cos_m * window[:, None], sin_m * window[:, None]], axis=1)
    fb = make_mel_filterbank(n_freq, f_min, f_max, n_mels, sample_rate)

    xf = x.reshape(M, T).astype(jnp.float32)
    pad = n_fft // 2
    xp = jnp.pad(xf, ((0, 0), (pad, pad)), mode="reflect")
    idx = np.arange(F)[:, None] * hop_length + np.arange(n_fft)[None, :]
    frames = xp[:, idx].reshape(M * F, n_fft)
    reim = jnp.dot(frames.astype(compute_dtype), jnp.asarray(dft).astype(compute_dtype),
                   preferred_element_type=jnp.float32)
    re = reim[:, :n_freq]
    im = reim[:, n_freq:]
    mel = jnp.dot(re * re + im * im, jnp.asarray(fb), preferred_element_type=jnp.float32)
    out = jnp.log(jnp.maximum(mel, LOG_CLAMP_MIN))
    return jnp.transpose(out.reshape(B, N, F, n_mels), (0, 1, 3, 2))


if __name__ == "__main__":
    # Module-default mel config.
    cfg = dict(n_fft=1024, hop_length=256, win_length=1024, n_mels=80,
               f_min=0.0, f_max=8000.0, sample_rate=22050)
    B, N, T = 2, 3, 38400                     # F = 151 frames per item
    key = jax.random.PRNGKey(0)
    x = jax.random.normal(key, (B, N, T), dtype=jnp.float32)
    F = 1 + T // cfg["hop_length"]

    ref32 = jax.block_until_ready(_reference_jax(x, **cfg))

    # (1) f32 kernel path vs straight f32 reference: validates fused in-kernel framing
    #     (main+tail windows, per-view matmul accumulation), window folding, n_freq
    #     trimming, MXU-side mel transpose and the direct (M, n_mels, F) output.
    out32 = jax.block_until_ready(
        for_each_mel_injector(x, **cfg, compute_dtype=jnp.float32))
    assert out32.shape == (B, N, cfg["n_mels"], F), out32.shape
    np.testing.assert_allclose(np.asarray(out32), np.asarray(ref32), rtol=2e-3, atol=2e-3)

    # (2) Default bf16-MXU path vs a reference with the same bf16 operand rounding
    #     (remaining diff is only f32 accumulation order).
    ref16 = jax.block_until_ready(_reference_jax(x, **cfg, compute_dtype=jnp.bfloat16))
    out16 = jax.block_until_ready(for_each_mel_injector(x, **cfg))
    np.testing.assert_allclose(np.asarray(out16), np.asarray(ref16), rtol=1e-2, atol=1e-2)

    # (3) Multi-chunk frame tiling (cross-chunk overlap rows + partial last output block)
    #     + true_normalization path.
    outc = jax.block_until_ready(
        for_each_mel_injector(x, **cfg, compute_dtype=jnp.float32, frame_tile=128,
                              true_normalization=True))
    refc = 2.0 * ((np.asarray(ref32) - MEL_MIN) / (TORCH_MEL_MAX - MEL_MIN)) - 1.0
    np.testing.assert_allclose(np.asarray(outc), refc, rtol=2e-3, atol=2e-3)

    # (4) Generic-hop fallback path (hop not a multiple of 128 -> XLA framing kernel).
    cfg2 = dict(n_fft=256, hop_length=100, win_length=256, n_mels=32,
                f_min=0.0, f_max=8000.0, sample_rate=22050)
    x2 = jax.random.normal(jax.random.PRNGKey(1), (2, 2, 1000), dtype=jnp.float32)
    out2 = jax.block_until_ready(
        for_each_mel_injector(x2, **cfg2, compute_dtype=jnp.float32))
    ref2 = jax.block_until_ready(_reference_jax(x2, **cfg2))
    np.testing.assert_allclose(np.asarray(out2), np.asarray(ref2), rtol=2e-3, atol=2e-3)

    print("KERNEL_OK")
</pallas_src>

<mosaic_0001>
module attributes {stable_mosaic.version = 11 : i64} {
  func.func @_melspec_fused_kernel(%arg0: i32, %arg1: i32, %arg2: memref<1x256x256xf32, #tpu.memory_space<vmem>>, %arg3: memref<1x8x256xf32, #tpu.memory_space<vmem>>, %arg4: memref<1024x768xf32, #tpu.memory_space<vmem>>, %arg5: memref<80x384xf32, #tpu.memory_space<vmem>>, %arg6: memref<1x80x256xf32, #tpu.memory_space<vmem>>) attributes {dimension_semantics = [#tpu.dimension_semantics<parallel>, #tpu.dimension_semantics<parallel>], iteration_bounds = array<i64: 6, 1>, scalar_prefetch = 0 : i64, scratch_operands = 0 : i64, tpu.core_type = #tpu.core_type<tc>, window_params = [{transform_indices = @transform_0, window_bounds = array<i64: 1, 256, 256>}, {transform_indices = @transform_1, window_bounds = array<i64: 1, 8, 256>}, {pipeline_mode = #tpu.pipeline_mode<synchronous>, transform_indices = @transform_2, window_bounds = array<i64: 1024, 768>}, {pipeline_mode = #tpu.pipeline_mode<synchronous>, transform_indices = @transform_3, window_bounds = array<i64: 80, 384>}, {transform_indices = @transform_4, window_bounds = array<i64: 1, 80, 256>}]} {
    %c0 = arith.constant 0 : index
    %c0_0 = arith.constant 0 : index
    %c0_1 = arith.constant 0 : index
    %0 = vector.load %arg2[%c0, %c0_0, %c0_1] : memref<1x256x256xf32, #tpu.memory_space<vmem>>, vector<1x256x256xf32>
    %1 = vector.shape_cast %0 : vector<1x256x256xf32> to vector<256x256xf32>
    %c0_2 = arith.constant 0 : index
    %c0_3 = arith.constant 0 : index
    %2 = vector.load %arg4[%c0_2, %c0_3] : memref<1024x768xf32, #tpu.memory_space<vmem>>, vector<256x768xf32>
    %cst = arith.constant dense<0.000000e+00> : vector<256x768xf32>
    %3 = tpu.matmul %1, %2, %cst {dimension_numbers = #tpu.dot_dimension_numbers<[1], [0], [0], [1], [0, 0, 1, 1], [], []>} : vector<256x256xf32>, vector<256x768xf32>, vector<256x768xf32> -> vector<256x768xf32>
    %c0_4 = arith.constant 0 : index
    %c0_5 = arith.constant 0 : index
    %c0_6 = arith.constant 0 : index
    %4 = vector.load %arg3[%c0_4, %c0_5, %c0_6] : memref<1x8x256xf32, #tpu.memory_space<vmem>>, vector<1x8x256xf32>
    %5 = vector.shape_cast %4 : vector<1x8x256xf32> to vector<8x256xf32>
    %6 = tpu.concatenate %1, %5 in 0 : vector<256x256xf32>, vector<8x256xf32> -> vector<264x256xf32>
    %7 = vector.extract_strided_slice %6 {offsets = [1, 0], sizes = [256, 256], strides = [1, 1]} : vector<264x256xf32> to vector<256x256xf32>
    %c256 = arith.constant 256 : index
    %c0_7 = arith.constant 0 : index
    %8 = vector.load %arg4[%c256, %c0_7] : memref<1024x768xf32, #tpu.memory_space<vmem>>, vector<256x768xf32>
    %cst_8 = arith.constant dense<0.000000e+00> : vector<256x768xf32>
    %9 = tpu.matmul %7, %8, %cst_8 {dimension_numbers = #tpu.dot_dimension_numbers<[1], [0], [0], [1], [0, 0, 1, 1], [], []>} : vector<256x256xf32>, vector<256x768xf32>, vector<256x768xf32> -> vector<256x768xf32>
    %10 = arith.addf %3, %9 : vector<256x768xf32>
    %11 = vector.extract_strided_slice %6 {offsets = [2, 0], sizes = [256, 256], strides = [1, 1]} : vector<264x256xf32> to vector<256x256xf32>
    %c512 = arith.constant 512 : index
    %c0_9 = arith.constant 0 : index
    %12 = vector.load %arg4[%c512, %c0_9] : memref<1024x768xf32, #tpu.memory_space<vmem>>, vector<256x768xf32>
    %cst_10 = arith.constant dense<0.000000e+00> : vector<256x768xf32>
    %13 = tpu.matmul %11, %12, %cst_10 {dimension_numbers = #tpu.dot_dimension_numbers<[1], [0], [0], [1], [0, 0, 1, 1], [], []>} : vector<256x256xf32>, vector<256x768xf32>, vector<256x768xf32> -> vector<256x768xf32>
    %14 = arith.addf %10, %13 : vector<256x768xf32>
    %15 = vector.extract_strided_slice %6 {offsets = [3, 0], sizes = [256, 256], strides = [1, 1]} : vector<264x256xf32> to vector<256x256xf32>
    %c768 = arith.constant 768 : index
    %c0_11 = arith.constant 0 : index
    %16 = vector.load %arg4[%c768, %c0_11] : memref<1024x768xf32, #tpu.memory_space<vmem>>, vector<256x768xf32>
    %cst_12 = arith.constant dense<0.000000e+00> : vector<256x768xf32>
    %17 = tpu.matmul %15, %16, %cst_12 {dimension_numbers = #tpu.dot_dimension_numbers<[1], [0], [0], [1], [0, 0, 1, 1], [], []>} : vector<256x256xf32>, vector<256x768xf32>, vector<256x768xf32> -> vector<256x768xf32>
    %18 = arith.addf %14, %17 : vector<256x768xf32>
    %19 = arith.mulf %18, %18 : vector<256x768xf32>
    %20 = vector.extract_strided_slice %19 {offsets = [0, 0], sizes = [256, 384], strides = [1, 1]} : vector<256x768xf32> to vector<256x384xf32>
    %21 = vector.extract_strided_slice %19 {offsets = [0, 384], sizes = [256, 384], strides = [1, 1]} : vector<256x768xf32> to vector<256x384xf32>
    %22 = arith.addf %20, %21 : vector<256x384xf32>
    %c0_13 = arith.constant 0 : index
    %c0_14 = arith.constant 0 : index
    %23 = vector.load %arg5[%c0_13, %c0_14] : memref<80x384xf32, #tpu.memory_space<vmem>>, vector<80x384xf32>
    %cst_15 = arith.constant dense<0.000000e+00> : vector<80x256xf32>
    %24 = tpu.matmul %23, %22, %cst_15 {dimension_numbers = #tpu.dot_dimension_numbers<[1], [1], [0], [0], [0, 0, 1, 0], [], []>} : vector<80x384xf32>, vector<256x384xf32>, vector<80x256xf32> -> vector<80x256xf32>
    %cst_16 = arith.constant 9.99999974E-6 : f32
    %25 = vector.broadcast %cst_16 : f32 to vector<80x256xf32>
    %26 = arith.maximumf %24, %25 : vector<80x256xf32>
    %27 = math.log %26 : vector<80x256xf32>
    %c0_17 = arith.constant 0 : index
    %c0_18 = arith.constant 0 : index
    %c0_19 = arith.constant 0 : index
    %28 = vector.load %arg6[%c0_17, %c0_18, %c0_19] : memref<1x80x256xf32, #tpu.memory_space<vmem>>, vector<1x80x256xf32>
    %29 = vector.shape_cast %28 : vector<1x80x256xf32> to vector<80x256xf32>
    %30 = vector.shape_cast %27 : vector<80x256xf32> to vector<1x80x256xf32>
    tpu.vector_store %arg6[%c0_17, %c0_18, %c0_19], %30 {strides = array<i32>} : memref<1x80x256xf32, #tpu.memory_space<vmem>>, vector<1x80x256xf32>,
    return
  }
  func.func @transform_0(%arg0: i32, %arg1: i32) -> (i32, i32, i32) {
    %c0_i32 = arith.constant 0 : i32
    %c0_i32_0 = arith.constant 0 : i32
    return %arg0, %arg1, %c0_i32 : i32, i32, i32
  }
  func.func @transform_1(%arg0: i32, %arg1: i32) -> (i32, i32, i32) {
    %c1_i32 = arith.constant 1 : i32
    %0 = arith.addi %arg1, %c1_i32 : i32
    %c32_i32 = arith.constant 32 : i32
    %1 = arith.muli %0, %c32_i32 : i32
    %c0_i32 = arith.constant 0 : i32
    %c0_i32_0 = arith.constant 0 : i32
    return %arg0, %1, %c0_i32 : i32, i32, i32
  }
  func.func @transform_2(%arg0: i32, %arg1: i32) -> (i32, i32) {
    %c0_i32 = arith.constant 0 : i32
    %c0_i32_0 = arith.constant 0 : i32
    %c0_i32_1 = arith.constant 0 : i32
    return %c0_i32, %c0_i32_0 : i32, i32
  }
  func.func @transform_3(%arg0: i32, %arg1: i32) -> (i32, i32) {
    %c0_i32 = arith.constant 0 : i32
    %c0_i32_0 = arith.constant 0 : i32
    %c0_i32_1 = arith.constant 0 : i32
    return %c0_i32, %c0_i32_0 : i32, i32
  }
  func.func @transform_4(%arg0: i32, %arg1: i32) -> (i32, i32, i32) {
    %c0_i32 = arith.constant 0 : i32
    %c0_i32_0 = arith.constant 0 : i32
    return %arg0, %c0_i32, %arg1 : i32, i32, i32
  }
}

</mosaic_0001>

<llo_original>
// kernel: for_each_mel_injector.1
$region0: #{for_each_mel_injector.1}
  #allocation0 [shape = 'u32[]', space=smem, size = 0x4, offset = 0x4, fixed_abs, tag = 'smem constant byte address 0x4 - core index']
  #allocation1 [shape = 'u32[144,128]{1,0:T(1,128)}', space=vmem, size = 0x12000, scoped, tag = 'internal scratch']
  %s0 = inlined_call_operand.vmem [shape: f32[6,264,256], index: 0, kind: input, shape index: {}, may-alias: {0,1}]
  %s1 = inlined_call_operand.vmem [shape: f32[6,264,256], index: 1, kind: input, shape index: {}, may-alias: {0,1}]
  %s2 = inlined_call_operand.vmem [shape: f32[1024,768], index: 2, kind: input, shape index: {}]
  %s3 = inlined_call_operand.vmem [shape: f32[80,384], index: 3, kind: input, shape index: {}]
  %s4 = inlined_call_operand.vmem [shape: f32[6,80,151], index: 4, kind: output, shape index: {}]
  %s5 = sld [smem:[#allocation0]]
  $region49: #{for_each_mel_injector.1} parent=0
    _
  %s7 = ssub.s32 1, %s5
  %s8 = scalar_select 0, %s7, %s5
  loop: start=0, step=1, limit=8
  $region2: #{for_each_mel_injector.1} parent=0 // loop_pre_header
    _
  $region3: #{for_each_mel_injector.1} parent=0 // loop_header
    %s10 = sphi 0, %s14
    %p11 = scmp.ge.s32.totalorder %s10, 8
    %s17 = sphi 0, %s29
    %s18 = sphi 0, %s25
    %s19 = sphi 0, %s17
    %s20 = sphi 0, %s18
    %s21 = sphi 0, %s19
    %s22 = sphi 0, %s20
    %s34 = sphi 0, %s36
    %s37 = sphi 0, %s34
    %s38 = sphi 0, %s37
    %s54 = sphi 0, %s38
    %s66 = sphi 0, %s68
    %s69 = sphi 0, %s66
    %s70 = sphi 0, %s69
    %s86 = sphi 0, %s70
    %s90 = sphi 0, %s90
    %s92 = sphi 0, %s90
    %s93 = sphi 0, %s92
    %s107 = sphi 0, %s93
    %s111 = sphi 0, %s111
    %s113 = sphi 0, %s111
    %s114 = sphi 0, %s113
    %s128 = sphi 0, %s114
    %s136 = sphi 0, %s138
    %s139 = sphi 0, %s136
    %s140 = sphi 0, %s139
    %s156 = sphi 0, %s140
  $region4: #{for_each_mel_injector.1} parent=0 // loop_header_branch
    %13 = sbr.rel (%p11) target = $region8
  $region5: #{for_each_mel_injector.1} parent=0 // loop_body
    %s15 = ssub.s32 %s10, 1
    %s16 = ssub.s32 %s10, 2
    %s23 = sadd.s32 1, %s18
    %p24 = scmp.ge.s32.totalorder %s23, 1
    %s25 = scalar_select %p24, 0, %s23
    %s26 = sadd.s32 1, %s17
    %s27 = scalar_select %p24, %s26, %s17
    %p28 = scmp.ge.s32.totalorder %s27, 6
    %s29 = scalar_select %p28, 0, %s27
    %s30 = ssub.s32 %s17, %s29
    %s31 = ssub.s32 %s18, %s25
    %s32 = sor.u32 %s30, %s31
    %p33 = scmp.eq.s32.totalorder %s32, 0
    %s35 = sadd.s32 %s34, 1
    %s36 = scalar_select %p33, %s34, %s35
    %p39 = pneg %p33
    %p40 = scmp.eq.s32.totalorder %s10, 5
    %p41 = por %p39, %p40
    %p42 = scmp.ne.s32.totalorder %s34, %s37
    %p43 = scmp.eq.s32.totalorder %s10, 0
    %p44 = por %p42, %p43
    %p45 = scmp.ne.s32.totalorder %s34, %s37
    %p46 = scmp.eq.s32.totalorder %s15, 5
    %p47 = por %p45, %p46
    %p48 = scmp.ne.s32.totalorder %s37, %s38
    %p49 = scmp.eq.s32.totalorder %s15, 0
    %p50 = por %p48, %p49
    %p51 = scmp.ne.s32.totalorder %s37, %s38
    %p52 = scmp.eq.s32.totalorder %s16, 5
    %p53 = por %p51, %p52
    %p55 = scmp.ne.s32.totalorder %s38, %s54
    %p56 = scmp.eq.s32.totalorder %s16, 0
    %p57 = por %p55, %p56
    %s58 = sadd.s32 %s18, 1
    %s59 = smul.u32 %s58, 32
    %s60 = sadd.s32 %s25, 1
    %s61 = smul.u32 %s60, 32
    %s62 = ssub.s32 %s17, %s29
    %s63 = ssub.s32 %s59, %s61
    %s64 = sor.u32 %s62, %s63
    %p65 = scmp.eq.s32.totalorder %s64, 0
    %s67 = sadd.s32 %s66, 1
    %s68 = scalar_select %p65, %s66, %s67
    %p71 = pneg %p65
    %p72 = scmp.eq.s32.totalorder %s10, 5
    %p73 = por %p71, %p72
    %p74 = scmp.ne.s32.totalorder %s66, %s69
    %p75 = scmp.eq.s32.totalorder %s10, 0
    %p76 = por %p74, %p75
    %p77 = scmp.ne.s32.totalorder %s66, %s69
    %p78 = scmp.eq.s32.totalorder %s15, 5
    %p79 = por %p77, %p78
    %p80 = scmp.ne.s32.totalorder %s69, %s70
    %p81 = scmp.eq.s32.totalorder %s15, 0
    %p82 = por %p80, %p81
    %p83 = scmp.ne.s32.totalorder %s69, %s70
    %p84 = scmp.eq.s32.totalorder %s16, 5
    %p85 = por %p83, %p84
    %p87 = scmp.ne.s32.totalorder %s70, %s86
    %p88 = scmp.eq.s32.totalorder %s16, 0
    %p89 = por %p87, %p88
    %s91 = sadd.s32 %s90, 1
    %p94 = scmp.eq.s32.totalorder %s10, 5
    %p95 = scmp.ne.s32.totalorder %s90, %s92
    %p96 = scmp.eq.s32.totalorder %s10, 0
    %p97 = por %p95, %p96
    %p98 = scmp.ne.s32.totalorder %s90, %s92
    %p99 = scmp.eq.s32.totalorder %s15, 5
    %p100 = por %p98, %p99
    %p101 = scmp.ne.s32.totalorder %s92, %s93
    %p102 = scmp.eq.s32.totalorder %s15, 0
    %p103 = por %p101, %p102
    %p104 = scmp.ne.s32.totalorder %s92, %s93
    %p105 = scmp.eq.s32.totalorder %s16, 5
    %p106 = por %p104, %p105
    %p108 = scmp.ne.s32.totalorder %s93, %s107
    %p109 = scmp.eq.s32.totalorder %s16, 0
    %p110 = por %p108, %p109
    %s112 = sadd.s32 %s111, 1
    %p115 = scmp.eq.s32.totalorder %s10, 5
    %p116 = scmp.ne.s32.totalorder %s111, %s113
    %p117 = scmp.eq.s32.totalorder %s10, 0
    %p118 = por %p116, %p117
    %p119 = scmp.ne.s32.totalorder %s111, %s113
    %p120 = scmp.eq.s32.totalorder %s15, 5
    %p121 = por %p119, %p120
    %p122 = scmp.ne.s32.totalorder %s113, %s114
    %p123 = scmp.eq.s32.totalorder %s15, 0
    %p124 = por %p122, %p123
    %p125 = scmp.ne.s32.totalorder %s113, %s114
    %p126 = scmp.eq.s32.totalorder %s16, 5
    %p127 = por %p125, %p126
    %p129 = scmp.ne.s32.totalorder %s114, %s128
    %p130 = scmp.eq.s32.totalorder %s16, 0
    %p131 = por %p129, %p130
    %s132 = ssub.s32 %s17, %s29
    %s133 = ssub.s32 %s18, %s25
    %s134 = sor.u32 %s132, %s133
    %p135 = scmp.eq.s32.totalorder %s134, 0
    %s137 = sadd.s32 %s136, 1
    %s138 = scalar_select %p135, %s136, %s137
    %p141 = pneg %p135
    %p142 = scmp.eq.s32.totalorder %s10, 5
    %p143 = por %p141, %p142
    %p144 = scmp.ne.s32.totalorder %s136, %s139
    %p145 = scmp.eq.s32.totalorder %s10, 0
    %p146 = por %p144, %p145
    %p147 = scmp.ne.s32.totalorder %s136, %s139
    %p148 = scmp.eq.s32.totalorder %s15, 5
    %p149 = por %p147, %p148
    %p150 = scmp.ne.s32.totalorder %s139, %s140
    %p151 = scmp.eq.s32.totalorder %s15, 0
    %p152 = por %p150, %p151
    %p153 = scmp.ne.s32.totalorder %s139, %s140
    %p154 = scmp.eq.s32.totalorder %s16, 5
    %p155 = por %p153, %p154
    %p157 = scmp.ne.s32.totalorder %s140, %s156
    %p158 = scmp.eq.s32.totalorder %s16, 0
    %p159 = por %p157, %p158
    %p160 = scmp.le.s32.totalorder 1, %s10
    %p161 = scmp.lt.s32.totalorder %s10, 7
    %p162 = pnand %p160, %p161
    %p163 = pneg %p162
    // Predicated region
    $region9: #{for_each_mel_injector.1} parent=5 // pred_check
      _
    $region10: #{for_each_mel_injector.1} parent=5 // pred_check_branch
      %165 = sbr.rel (%p162) target = $region12
    $region11: #{for_each_mel_injector.1} parent=5 // pred_region
      %s166 = ssub.s32 %s10, 1
      // Predicated region
      $region13: #{for_each_mel_injector.1} parent=11 // pred_check
        %p167 = pneg %p103
      $region14: #{for_each_mel_injector.1} parent=11 // pred_check_branch
        %169 = sbr.rel (%p167) target = $region16
      $region15: #{for_each_mel_injector.1} parent=11 // pred_region
        _
      $region16: #{for_each_mel_injector.1} parent=11 // pred_fallthru
        _
      // Predicated region
      $region17: #{for_each_mel_injector.1} parent=11 // pred_check
        %p170 = pneg %p124
      $region18: #{for_each_mel_injector.1} parent=11 // pred_check_branch
        %172 = sbr.rel (%p170) target = $region20
      $region19: #{for_each_mel_injector.1} parent=11 // pred_region
        _
      $region20: #{for_each_mel_injector.1} parent=11 // pred_fallthru
        _
    $region12: #{for_each_mel_injector.1} parent=5 // pred_fallthru
      _
    %p173 = scmp.lt.s32.totalorder %s10, 6
    // Predicated region
    $region21: #{for_each_mel_injector.1} parent=5 // pred_check
      %p174 = pneg %p173
    $region22: #{for_each_mel_injector.1} parent=5 // pred_check_branch
      %176 = sbr.rel (%p174) target = $region24
    $region23: #{for_each_mel_injector.1} parent=5 // pred_region
      // Predicated region
      $region25: #{for_each_mel_injector.1} parent=23 // pred_check
        %p177 = pneg %p44
      $region26: #{for_each_mel_injector.1} parent=23 // pred_check_branch
        %179 = sbr.rel (%p177) target = $region28
      $region27: #{for_each_mel_injector.1} parent=23 // pred_region
        %s180 = smul.u32 32, %s18
        %s181 = ssub.s32 33, %s180
        %p182 = scmp.lt.s32.totalorder %s181, 32
        %s183 = scalar_select %p182, %s181, 32
        %s184 = smul.u32 128, %s183
        %s185 = smul.u32 %s184, 2
        %p186 = scmp.lt.s32.totalorder %s17, 5
        %s187 = scalar_select %p186, %s17, 5
        %p188 = scmp.lt.s32.totalorder %s180, 32
        %s189 = scalar_select %p188, %s180, 32
        %s190 = smul.addr %s189, 2
        %s191 = smul.addr %s187, 66
        %s192 = sadd.s32 %s190, %s191
        %s193 = smul.addr %s192, 8
        %s194 = scalar_lea.vmem %s0, %s193
        %s195 = smul.u32 32, %s18
        %s196 = ssub.s32 33, %s195
        %p197 = scmp.lt.s32.totalorder %s196, 32
        %s198 = scalar_select %p197, %s196, 32
        %s199 = smul.u32 128, %s198
        %s200 = smul.u32 %s199, 2
      $region28: #{for_each_mel_injector.1} parent=23 // pred_fallthru
        _
      // Predicated region
      $region29: #{for_each_mel_injector.1} parent=23 // pred_check
        %p201 = pneg %p76
      $region30: #{for_each_mel_injector.1} parent=23 // pred_check_branch
        %203 = sbr.rel (%p201) target = $region32
      $region31: #{for_each_mel_injector.1} parent=23 // pred_region
        %s204 = sadd.s32 %s18, 1
        %s205 = smul.u32 %s204, 32
        %p206 = scmp.lt.s32.totalorder %s17, 5
        %s207 = scalar_select %p206, %s17, 5
        %p208 = scmp.lt.s32.totalorder %s205, 32
        %s209 = scalar_select %p208, %s205, 32
        %s210 = smul.addr %s209, 2
        %s211 = smul.addr %s207, 66
        %s212 = sadd.s32 %s210, %s211
        %s213 = smul.addr %s212, 8
        %s214 = scalar_lea.vmem %s1, %s213
        %s215 = sadd.s32 %s18, 1
        %s216 = smul.u32 %s215, 32
      $region32: #{for_each_mel_injector.1} parent=23 // pred_fallthru
        _
    $region24: #{for_each_mel_injector.1} parent=5 // pred_fallthru
      _
    %p217 = scmp.le.s32.totalorder 1, %s10
    %p218 = scmp.lt.s32.totalorder %s10, 7
    %p219 = pnand %p217, %p218
    %p220 = pneg %p219
    // Predicated region
    $region33: #{for_each_mel_injector.1} parent=5 // pred_check
      _
    $region34: #{for_each_mel_injector.1} parent=5 // pred_check_branch
      %222 = sbr.rel (%p219) target = $region36
    $region35: #{for_each_mel_injector.1} parent=5 // pred_region
      %s223 = ssub.s32 %s10, 1
      %s224 = smul.u32 32, %s20
      %s225 = ssub.s32 33, %s224
      %p226 = scmp.lt.s32.totalorder %s225, 32
      %s227 = scalar_select %p226, %s225, 32
      %s228 = smul.u32 128, %s227
      %s229 = smul.u32 %s228, 2
      %p230 = scmp.lt.s32.totalorder %s19, 5
      %s231 = scalar_select %p230, %s19, 5
      %p232 = scmp.lt.s32.totalorder %s224, 32
      %s233 = scalar_select %p232, %s224, 32
      %s234 = smul.addr %s233, 2
      %s235 = smul.addr %s231, 66
      %s236 = sadd.s32 %s234, %s235
      %s237 = smul.addr %s236, 8
      %s238 = scalar_lea.vmem %s0, %s237
      %p239 = pneg %p50
      %p240 = pneg %p47
      %s241 = sadd.s32 %s20, 1
      %s242 = smul.u32 %s241, 32
      %p243 = scmp.lt.s32.totalorder %s19, 5
      %s244 = scalar_select %p243, %s19, 5
      %p245 = scmp.lt.s32.totalorder %s242, 32
      %s246 = scalar_select %p245, %s242, 32
      %s247 = smul.addr %s246, 2
      %s248 = smul.addr %s244, 66
      %s249 = sadd.s32 %s247, %s248
      %s250 = smul.addr %s249, 8
      %s251 = scalar_lea.vmem %s1, %s250
      %p252 = pneg %p82
      %p253 = pneg %p79
      %p254 = pneg %p103
      %p255 = pneg %p100
      %p256 = pneg %p124
      %p257 = pneg %p121
      %p258 = pneg %p152
      %p259 = pneg %p149
      %s260 = smul.u32 2, %s20
      %p261 = scmp.lt.s32.totalorder %s19, 5
      %s262 = scalar_select %p261, %s19, 5
      %p263 = scmp.lt.s32.totalorder %s260, 1
      %s264 = scalar_select %p263, %s260, 1
      %s265 = smul.addr %s262, 20
      %s266 = sadd.s32 %s264, %s265
      %s267 = smul.addr %s266, 8
      %s268 = scalar_lea.vmem %s4, %s267
      %s269 = smul.u32 32, %s20
      %s270 = ssub.s32 33, %s269
      %p271 = scmp.lt.s32.totalorder %s270, 32
      %s272 = scalar_select %p271, %s270, 32
      %s273 = smul.u32 128, %s272
      %s274 = smul.u32 %s273, 2
      %p275 = scmp.lt.s32.totalorder %s19, 5
      %s276 = scalar_select %p275, %s19, 5
      %p277 = scmp.lt.s32.totalorder %s269, 32
      %s278 = scalar_select %p277, %s269, 32
      %s279 = smul.addr %s278, 2
      %s280 = smul.addr %s276, 66
      %s281 = sadd.s32 %s279, %s280
      %s282 = smul.addr %s281, 8
      %s283 = scalar_lea.vmem %s0, %s282
      %s284 = smul.u32 32, %s20
      %s285 = ssub.s32 33, %s284
      %p286 = scmp.lt.s32.totalorder %s285, 32
      %s287 = scalar_select %p286, %s285, 32
      %s288 = smul.u32 128, %s287
      %s289 = smul.u32 %s288, 2
      %s290 = sadd.s32 %s20, 1
      %s291 = smul.u32 %s290, 32
      %p292 = scmp.lt.s32.totalorder %s19, 5
      %s293 = scalar_select %p292, %s19, 5
      %p294 = scmp.lt.s32.totalorder %s291, 32
      %s295 = scalar_select %p294, %s291, 32
      %s296 = smul.addr %s295, 2
      %s297 = smul.addr %s293, 66
      %s298 = sadd.s32 %s296, %s297
      %s299 = smul.addr %s298, 8
      %s300 = scalar_lea.vmem %s1, %s299
      %s301 = sadd.s32 %s20, 1
      %s302 = smul.u32 %s301, 32
      %s303 = smul.u32 2, %s20
      %p304 = scmp.lt.s32.totalorder %s19, 5
      %s305 = scalar_select %p304, %s19, 5
      %p306 = scmp.lt.s32.totalorder %s303, 1
      %s307 = scalar_select %p306, %s303, 1
      %s308 = smul.addr %s305, 20
      %s309 = sadd.s32 %s307, %s308
      %s310 = smul.addr %s309, 8
      %s311 = scalar_lea.vmem %s4, %s310
      %s312 = smul.u32 2, %s20
      %v313 = vld [vmem:[%s283] sm:$0xff]
      %v314 = vld [vmem:[%s283 + $0x8] sm:$0xff]
      %v315 = vld [vmem:[%s283 + $0x10] sm:$0xff]
      %v316 = vld [vmem:[%s283 + $0x18] sm:$0xff]
      %v317 = vld [vmem:[%s283 + $0x20] sm:$0xff]
      %v318 = vld [vmem:[%s283 + $0x28] sm:$0xff]
      %v319 = vld [vmem:[%s283 + $0x30] sm:$0xff]
      %v320 = vld [vmem:[%s283 + $0x38] sm:$0xff]
      %v321 = vld [vmem:[%s283 + $0x40] sm:$0xff]
      %v322 = vld [vmem:[%s283 + $0x48] sm:$0xff]
      %v323 = vld [vmem:[%s283 + $0x50] sm:$0xff]
      %v324 = vld [vmem:[%s283 + $0x58] sm:$0xff]
      %v325 = vld [vmem:[%s283 + $0x60] sm:$0xff]
      %v326 = vld [vmem:[%s283 + $0x68] sm:$0xff]
      %v327 = vld [vmem:[%s283 + $0x70] sm:$0xff]
      %v328 = vld [vmem:[%s283 + $0x78] sm:$0xff]
      %v329 = vld [vmem:[%s283 + $0x80] sm:$0xff]
      %v330 = vld [vmem:[%s283 + $0x88] sm:$0xff]
      %v331 = vld [vmem:[%s283 + $0x90] sm:$0xff]
      %v332 = vld [vmem:[%s283 + $0x98] sm:$0xff]
      %v333 = vld [vmem:[%s283 + $0xa0] sm:$0xff]
      %v334 = vld [vmem:[%s283 + $0xa8] sm:$0xff]
      %v335 = vld [vmem:[%s283 + $0xb0] sm:$0xff]
      %v336 = vld [vmem:[%s283 + $0xb8] sm:$0xff]
      %v337 = vld [vmem:[%s283 + $0xc0] sm:$0xff]
      %v338 = vld [vmem:[%s283 + $0xc8] sm:$0xff]
      %v339 = vld [vmem:[%s283 + $0xd0] sm:$0xff]
      %v340 = vld [vmem:[%s283 + $0xd8] sm:$0xff]
      %v341 = vld [vmem:[%s283 + $0xe0] sm:$0xff]
      %v342 = vld [vmem:[%s283 + $0xe8] sm:$0xff]
      %v343 = vld [vmem:[%s283 + $0xf0] sm:$0xff]
      %v344 = vld [vmem:[%s283 + $0xf8] sm:$0xff]
      %v345 = vld [vmem:[%s283 + $0x100] sm:$0xff]
      %v346 = vld [vmem:[%s283 + $0x108] sm:$0xff]
      %v347 = vld [vmem:[%s283 + $0x110] sm:$0xff]
      %v348 = vld [vmem:[%s283 + $0x118] sm:$0xff]
      %v349 = vld [vmem:[%s283 + $0x120] sm:$0xff]
      %v350 = vld [vmem:[%s283 + $0x128] sm:$0xff]
      %v351 = vld [vmem:[%s283 + $0x130] sm:$0xff]
      %v352 = vld [vmem:[%s283 + $0x138] sm:$0xff]
      %v353 = vld [vmem:[%s283 + $0x140] sm:$0xff]
      %v354 = vld [vmem:[%s283 + $0x148] sm:$0xff]
      %v355 = vld [vmem:[%s283 + $0x150] sm:$0xff]
      %v356 = vld [vmem:[%s283 + $0x158] sm:$0xff]
      %v357 = vld [vmem:[%s283 + $0x160] sm:$0xff]
      %v358 = vld [vmem:[%s283 + $0x168] sm:$0xff]
      %v359 = vld [vmem:[%s283 + $0x170] sm:$0xff]
      %v360 = vld [vmem:[%s283 + $0x178] sm:$0xff]
      %v361 = vld [vmem:[%s283 + $0x180] sm:$0xff]
      %v362 = vld [vmem:[%s283 + $0x188] sm:$0xff]
      %v363 = vld [vmem:[%s283 + $0x190] sm:$0xff]
      %v364 = vld [vmem:[%s283 + $0x198] sm:$0xff]
      %v365 = vld [vmem:[%s283 + $0x1a0] sm:$0xff]
      %v366 = vld [vmem:[%s283 + $0x1a8] sm:$0xff]
      %v367 = vld [vmem:[%s283 + $0x1b0] sm:$0xff]
      %v368 = vld [vmem:[%s283 + $0x1b8] sm:$0xff]
      %v369 = vld [vmem:[%s283 + $0x1c0] sm:$0xff]
      %v370 = vld [vmem:[%s283 + $0x1c8] sm:$0xff]
      %v371 = vld [vmem:[%s283 + $0x1d0] sm:$0xff]
      %v372 = vld [vmem:[%s283 + $0x1d8] sm:$0xff]
      %v373 = vld [vmem:[%s283 + $0x1e0] sm:$0xff]
      %v374 = vld [vmem:[%s283 + $0x1e8] sm:$0xff]
      %v375 = vld [vmem:[%s283 + $0x1f0] sm:$0xff]
      %v376 = vld [vmem:[%s283 + $0x1f8] sm:$0xff]
      %v377 = vld [vmem:[%s2] sm:$0xff]
      %v378 = vld [vmem:[%s2 + $0x8] sm:$0xff]
      %v379 = vld [vmem:[%s2 + $0x10] sm:$0xff]
      %v380 = vld [vmem:[%s2 + $0x18] sm:$0xff]
      %v381 = vld [vmem:[%s2 + $0x20] sm:$0xff]
      %v382 = vld [vmem:[%s2 + $0x28] sm:$0xff]
      %v383 = vld [vmem:[%s2 + $0x30] sm:$0xff]
      %v384 = vld [vmem:[%s2 + $0x38] sm:$0xff]
      %v385 = vld [vmem:[%s2 + $0x40] sm:$0xff]
      %v386 = vld [vmem:[%s2 + $0x48] sm:$0xff]
      %v387 = vld [vmem:[%s2 + $0x50] sm:$0xff]
      %v388 = vld [vmem:[%s2 + $0x58] sm:$0xff]
      %v389 = vld [vmem:[%s2 + $0x60] sm:$0xff]
      %v390 = vld [vmem:[%s2 + $0x68] sm:$0xff]
      %v391 = vld [vmem:[%s2 + $0x70] sm:$0xff]
      %v392 = vld [vmem:[%s2 + $0x78] sm:$0xff]
      %v393 = vld [vmem:[%s2 + $0x80] sm:$0xff]
      %v394 = vld [vmem:[%s2 + $0x88] sm:$0xff]
      %v395 = vld [vmem:[%s2 + $0x90] sm:$0xff]
      %v396 = vld [vmem:[%s2 + $0x98] sm:$0xff]
      %v397 = vld [vmem:[%s2 + $0xa0] sm:$0xff]
      %v398 = vld [vmem:[%s2 + $0xa8] sm:$0xff]
      %v399 = vld [vmem:[%s2 + $0xb0] sm:$0xff]
      %v400 = vld [vmem:[%s2 + $0xb8] sm:$0xff]
      %v401 = vld [vmem:[%s2 + $0xc0] sm:$0xff]
      %v402 = vld [vmem:[%s2 + $0xc8] sm:$0xff]
      %v403 = vld [vmem:[%s2 + $0xd0] sm:$0xff]
      %v404 = vld [vmem:[%s2 + $0xd8] sm:$0xff]
      %v405 = vld [vmem:[%s2 + $0xe0] sm:$0xff]
      %v406 = vld [vmem:[%s2 + $0xe8] sm:$0xff]
      %v407 = vld [vmem:[%s2 + $0xf0] sm:$0xff]
      %v408 = vld [vmem:[%s2 + $0xf8] sm:$0xff]
      %v409 = vld [vmem:[%s2 + $0x100] sm:$0xff]
      %v410 = vld [vmem:[%s2 + $0x108] sm:$0xff]
      %v411 = vld [vmem:[%s2 + $0x110] sm:$0xff]
      %v412 = vld [vmem:[%s2 + $0x118] sm:$0xff]
      %v413 = vld [vmem:[%s2 + $0x120] sm:$0xff]
      %v414 = vld [vmem:[%s2 + $0x128] sm:$0xff]
      %v415 = vld [vmem:[%s2 + $0x130] sm:$0xff]
      %v416 = vld [vmem:[%s2 + $0x138] sm:$0xff]
      %v417 = vld [vmem:[%s2 + $0x140] sm:$0xff]
      %v418 = vld [vmem:[%s2 + $0x148] sm:$0xff]
      %v419 = vld [vmem:[%s2 + $0x150] sm:$0xff]
      %v420 = vld [vmem:[%s2 + $0x158] sm:$0xff]
      %v421 = vld [vmem:[%s2 + $0x160] sm:$0xff]
      %v422 = vld [vmem:[%s2 + $0x168] sm:$0xff]
      %v423 = vld [vmem:[%s2 + $0x170] sm:$0xff]
      %v424 = vld [vmem:[%s2 + $0x178] sm:$0xff]
      %v425 = vld [vmem:[%s2 + $0x180] sm:$0xff]
      %v426 = vld [vmem:[%s2 + $0x188] sm:$0xff]
      %v427 = vld [vmem:[%s2 + $0x190] sm:$0xff]
      %v428 = vld [vmem:[%s2 + $0x198] sm:$0xff]
      %v429 = vld [vmem:[%s2 + $0x1a0] sm:$0xff]
      %v430 = vld [vmem:[%s2 + $0x1a8] sm:$0xff]
      %v431 = vld [vmem:[%s2 + $0x1b0] sm:$0xff]
      %v432 = vld [vmem:[%s2 + $0x1b8] sm:$0xff]
      %v433 = vld [vmem:[%s2 + $0x1c0] sm:$0xff]
      %v434 = vld [vmem:[%s2 + $0x1c8] sm:$0xff]
      %v435 = vld [vmem:[%s2 + $0x1d0] sm:$0xff]
      %v436 = vld [vmem:[%s2 + $0x1d8] sm:$0xff]
      %v437 = vld [vmem:[%s2 + $0x1e0] sm:$0xff]
      %v438 = vld [vmem:[%s2 + $0x1e8] sm:$0xff]
      %v439 = vld [vmem:[%s2 + $0x1f0] sm:$0xff]
      %v440 = vld [vmem:[%s2 + $0x1f8] sm:$0xff]
      %v441 = vld [vmem:[%s2 + $0x200] sm:$0xff]
      %v442 = vld [vmem:[%s2 + $0x208] sm:$0xff]
      %v443 = vld [vmem:[%s2 + $0x210] sm:$0xff]
      %v444 = vld [vmem:[%s2 + $0x218] sm:$0xff]
      %v445 = vld [vmem:[%s2 + $0x220] sm:$0xff]
      %v446 = vld [vmem:[%s2 + $0x228] sm:$0xff]
      %v447 = vld [vmem:[%s2 + $0x230] sm:$0xff]
      %v448 = vld [vmem:[%s2 + $0x238] sm:$0xff]
      %v449 = vld [vmem:[%s2 + $0x240] sm:$0xff]
      %v450 = vld [vmem:[%s2 + $0x248] sm:$0xff]
      %v451 = vld [vmem:[%s2 + $0x250] sm:$0xff]
      %v452 = vld [vmem:[%s2 + $0x258] sm:$0xff]
      %v453 = vld [vmem:[%s2 + $0x260] sm:$0xff]
      %v454 = vld [vmem:[%s2 + $0x268] sm:$0xff]
      %v455 = vld [vmem:[%s2 + $0x270] sm:$0xff]
      %v456 = vld [vmem:[%s2 + $0x278] sm:$0xff]
      %v457 = vld [vmem:[%s2 + $0x280] sm:$0xff]
      %v458 = vld [vmem:[%s2 + $0x288] sm:$0xff]
      %v459 = vld [vmem:[%s2 + $0x290] sm:$0xff]
      %v460 = vld [vmem:[%s2 + $0x298] sm:$0xff]
      %v461 = vld [vmem:[%s2 + $0x2a0] sm:$0xff]
      %v462 = vld [vmem:[%s2 + $0x2a8] sm:$0xff]
      %v463 = vld [vmem:[%s2 + $0x2b0] sm:$0xff]
      %v464 = vld [vmem:[%s2 + $0x2b8] sm:$0xff]
      %v465 = vld [vmem:[%s2 + $0x2c0] sm:$0xff]
      %v466 = vld [vmem:[%s2 + $0x2c8] sm:$0xff]
      %v467 = vld [vmem:[%s2 + $0x2d0] sm:$0xff]
      %v468 = vld [vmem:[%s2 + $0x2d8] sm:$0xff]
      %v469 = vld [vmem:[%s2 + $0x2e0] sm:$0xff]
      %v470 = vld [vmem:[%s2 + $0x2e8] sm:$0xff]
      %v471 = vld [vmem:[%s2 + $0x2f0] sm:$0xff]
      %v472 = vld [vmem:[%s2 + $0x2f8] sm:$0xff]
      %v473 = vld [vmem:[%s2 + $0x300] sm:$0xff]
      %v474 = vld [vmem:[%s2 + $0x308] sm:$0xff]
      %v475 = vld [vmem:[%s2 + $0x310] sm:$0xff]
      %v476 = vld [vmem:[%s2 + $0x318] sm:$0xff]
      %v477 = vld [vmem:[%s2 + $0x320] sm:$0xff]
      %v478 = vld [vmem:[%s2 + $0x328] sm:$0xff]
      %v479 = vld [vmem:[%s2 + $0x330] sm:$0xff]
      %v480 = vld [vmem:[%s2 + $0x338] sm:$0xff]
      %v481 = vld [vmem:[%s2 + $0x340] sm:$0xff]
      %v482 = vld [vmem:[%s2 + $0x348] sm:$0xff]
      %v483 = vld [vmem:[%s2 + $0x350] sm:$0xff]
      %v484 = vld [vmem:[%s2 + $0x358] sm:$0xff]
      %v485 = vld [vmem:[%s2 + $0x360] sm:$0xff]
      %v486 = vld [vmem:[%s2 + $0x368] sm:$0xff]
      %v487 = vld [vmem:[%s2 + $0x370] sm:$0xff]
      %v488 = vld [vmem:[%s2 + $0x378] sm:$0xff]
      %v489 = vld [vmem:[%s2 + $0x380] sm:$0xff]
      %v490 = vld [vmem:[%s2 + $0x388] sm:$0xff]
      %v491 = vld [vmem:[%s2 + $0x390] sm:$0xff]
      %v492 = vld [vmem:[%s2 + $0x398] sm:$0xff]
      %v493 = vld [vmem:[%s2 + $0x3a0] sm:$0xff]
      %v494 = vld [vmem:[%s2 + $0x3a8] sm:$0xff]
      %v495 = vld [vmem:[%s2 + $0x3b0] sm:$0xff]
      %v496 = vld [vmem:[%s2 + $0x3b8] sm:$0xff]
      %v497 = vld [vmem:[%s2 + $0x3c0] sm:$0xff]
      %v498 = vld [vmem:[%s2 + $0x3c8] sm:$0xff]
      %v499 = vld [vmem:[%s2 + $0x3d0] sm:$0xff]
      %v500 = vld [vmem:[%s2 + $0x3d8] sm:$0xff]
      %v501 = vld [vmem:[%s2 + $0x3e0] sm:$0xff]
      %v502 = vld [vmem:[%s2 + $0x3e8] sm:$0xff]
      %v503 = vld [vmem:[%s2 + $0x3f0] sm:$0xff]
      %v504 = vld [vmem:[%s2 + $0x3f8] sm:$0xff]
      %v505 = vld [vmem:[%s2 + $0x400] sm:$0xff]
      %v506 = vld [vmem:[%s2 + $0x408] sm:$0xff]
      %v507 = vld [vmem:[%s2 + $0x410] sm:$0xff]
      %v508 = vld [vmem:[%s2 + $0x418] sm:$0xff]
      %v509 = vld [vmem:[%s2 + $0x420] sm:$0xff]
      %v510 = vld [vmem:[%s2 + $0x428] sm:$0xff]
      %v511 = vld [vmem:[%s2 + $0x430] sm:$0xff]
      %v512 = vld [vmem:[%s2 + $0x438] sm:$0xff]
      %v513 = vld [vmem:[%s2 + $0x440] sm:$0xff]
      %v514 = vld [vmem:[%s2 + $0x448] sm:$0xff]
      %v515 = vld [vmem:[%s2 + $0x450] sm:$0xff]
      %v516 = vld [vmem:[%s2 + $0x458] sm:$0xff]
      %v517 = vld [vmem:[%s2 + $0x460] sm:$0xff]
      %v518 = vld [vmem:[%s2 + $0x468] sm:$0xff]
      %v519 = vld [vmem:[%s2 + $0x470] sm:$0xff]
      %v520 = vld [vmem:[%s2 + $0x478] sm:$0xff]
      %v521 = vld [vmem:[%s2 + $0x480] sm:$0xff]
      %v522 = vld [vmem:[%s2 + $0x488] sm:$0xff]
      %v523 = vld [vmem:[%s2 + $0x490] sm:$0xff]
      %v524 = vld [vmem:[%s2 + $0x498] sm:$0xff]
      %v525 = vld [vmem:[%s2 + $0x4a0] sm:$0xff]
      %v526 = vld [vmem:[%s2 + $0x4a8] sm:$0xff]
      %v527 = vld [vmem:[%s2 + $0x4b0] sm:$0xff]
      %v528 = vld [vmem:[%s2 + $0x4b8] sm:$0xff]
      %v529 = vld [vmem:[%s2 + $0x4c0] sm:$0xff]
      %v530 = vld [vmem:[%s2 + $0x4c8] sm:$0xff]
      %v531 = vld [vmem:[%s2 + $0x4d0] sm:$0xff]
      %v532 = vld [vmem:[%s2 + $0x4d8] sm:$0xff]
      %v533 = vld [vmem:[%s2 + $0x4e0] sm:$0xff]
      %v534 = vld [vmem:[%s2 + $0x4e8] sm:$0xff]
      %v535 = vld [vmem:[%s2 + $0x4f0] sm:$0xff]
      %v536 = vld [vmem:[%s2 + $0x4f8] sm:$0xff]
      %v537 = vld [vmem:[%s2 + $0x500] sm:$0xff]
      %v538 = vld [vmem:[%s2 + $0x508] sm:$0xff]
      %v539 = vld [vmem:[%s2 + $0x510] sm:$0xff]
      %v540 = vld [vmem:[%s2 + $0x518] sm:$0xff]
      %v541 = vld [vmem:[%s2 + $0x520] sm:$0xff]
      %v542 = vld [vmem:[%s2 + $0x528] sm:$0xff]
      %v543 = vld [vmem:[%s2 + $0x530] sm:$0xff]
      %v544 = vld [vmem:[%s2 + $0x538] sm:$0xff]
      %v545 = vld [vmem:[%s2 + $0x540] sm:$0xff]
      %v546 = vld [vmem:[%s2 + $0x548] sm:$0xff]
      %v547 = vld [vmem:[%s2 + $0x550] sm:$0xff]
      %v548 = vld [vmem:[%s2 + $0x558] sm:$0xff]
      %v549 = vld [vmem:[%s2 + $0x560] sm:$0xff]
      %v550 = vld [vmem:[%s2 + $0x568] sm:$0xff]
      %v551 = vld [vmem:[%s2 + $0x570] sm:$0xff]
      %v552 = vld [vmem:[%s2 + $0x578] sm:$0xff]
      %v553 = vld [vmem:[%s2 + $0x580] sm:$0xff]
      %v554 = vld [vmem:[%s2 + $0x588] sm:$0xff]
      %v555 = vld [vmem:[%s2 + $0x590] sm:$0xff]
      %v556 = vld [vmem:[%s2 + $0x598] sm:$0xff]
      %v557 = vld [vmem:[%s2 + $0x5a0] sm:$0xff]
      %v558 = vld [vmem:[%s2 + $0x5a8] sm:$0xff]
      %v559 = vld [vmem:[%s2 + $0x5b0] sm:$0xff]
      %v560 = vld [vmem:[%s2 + $0x5b8] sm:$0xff]
      %v561 = vld [vmem:[%s2 + $0x5c0] sm:$0xff]
      %v562 = vld [vmem:[%s2 + $0x5c8] sm:$0xff]
      %v563 = vld [vmem:[%s2 + $0x5d0] sm:$0xff]
      %v564 = vld [vmem:[%s2 + $0x5d8] sm:$0xff]
      %v565 = vld [vmem:[%s2 + $0x5e0] sm:$0xff]
      %v566 = vld [vmem:[%s2 + $0x5e8] sm:$0xff]
      %v567 = vld [vmem:[%s2 + $0x5f0] sm:$0xff]
      %v568 = vld [vmem:[%s2 + $0x5f8] sm:$0xff]
      %v569 = vld [vmem:[%s300] sm:$0xff]
      %v570 = vld [vmem:[%s300 + $0x8] sm:$0xff]
      %v571 = vld [vmem:[%s2 + $0x600] sm:$0xff]
      %v572 = vld [vmem:[%s2 + $0x608] sm:$0xff]
      %v573 = vld [vmem:[%s2 + $0x610] sm:$0xff]
      %v574 = vld [vmem:[%s2 + $0x618] sm:$0xff]
      %v575 = vld [vmem:[%s2 + $0x620] sm:$0xff]
      %v576 = vld [vmem:[%s2 + $0x628] sm:$0xff]
      %v577 = vld [vmem:[%s2 + $0x630] sm:$0xff]
      %v578 = vld [vmem:[%s2 + $0x638] sm:$0xff]
      %v579 = vld [vmem:[%s2 + $0x640] sm:$0xff]
      %v580 = vld [vmem:[%s2 + $0x648] sm:$0xff]
      %v581 = vld [vmem:[%s2 + $0x650] sm:$0xff]
      %v582 = vld [vmem:[%s2 + $0x658] sm:$0xff]
      %v583 = vld [vmem:[%s2 + $0x660] sm:$0xff]
      %v584 = vld [vmem:[%s2 + $0x668] sm:$0xff]
      %v585 = vld [vmem:[%s2 + $0x670] sm:$0xff]
      %v586 = vld [vmem:[%s2 + $0x678] sm:$0xff]
      %v587 = vld [vmem:[%s2 + $0x680] sm:$0xff]
      %v588 = vld [vmem:[%s2 + $0x688] sm:$0xff]
      %v589 = vld [vmem:[%s2 + $0x690] sm:$0xff]
      %v590 = vld [vmem:[%s2 + $0x698] sm:$0xff]
      %v591 = vld [vmem:[%s2 + $0x6a0] sm:$0xff]
      %v592 = vld [vmem:[%s2 + $0x6a8] sm:$0xff]
      %v593 = vld [vmem:[%s2 + $0x6b0] sm:$0xff]
      %v594 = vld [vmem:[%s2 + $0x6b8] sm:$0xff]
      %v595 = vld [vmem:[%s2 + $0x6c0] sm:$0xff]
      %v596 = vld [vmem:[%s2 + $0x6c8] sm:$0xff]
      %v597 = vld [vmem:[%s2 + $0x6d0] sm:$0xff]
      %v598 = vld [vmem:[%s2 + $0x6d8] sm:$0xff]
      %v599 = vld [vmem:[%s2 + $0x6e0] sm:$0xff]
      %v600 = vld [vmem:[%s2 + $0x6e8] sm:$0xff]
      %v601 = vld [vmem:[%s2 + $0x6f0] sm:$0xff]
      %v602 = vld [vmem:[%s2 + $0x6f8] sm:$0xff]
      %v603 = vld [vmem:[%s2 + $0x700] sm:$0xff]
      %v604 = vld [vmem:[%s2 + $0x708] sm:$0xff]
      %v605 = vld [vmem:[%s2 + $0x710] sm:$0xff]
      %v606 = vld [vmem:[%s2 + $0x718] sm:$0xff]
      %v607 = vld [vmem:[%s2 + $0x720] sm:$0xff]
      %v608 = vld [vmem:[%s2 + $0x728] sm:$0xff]
      %v609 = vld [vmem:[%s2 + $0x730] sm:$0xff]
      %v610 = vld [vmem:[%s2 + $0x738] sm:$0xff]
      %v611 = vld [vmem:[%s2 + $0x740] sm:$0xff]
      %v612 = vld [vmem:[%s2 + $0x748] sm:$0xff]
      %v613 = vld [vmem:[%s2 + $0x750] sm:$0xff]
      %v614 = vld [vmem:[%s2 + $0x758] sm:$0xff]
      %v615 = vld [vmem:[%s2 + $0x760] sm:$0xff]
      %v616 = vld [vmem:[%s2 + $0x768] sm:$0xff]
      %v617 = vld [vmem:[%s2 + $0x770] sm:$0xff]
      %v618 = vld [vmem:[%s2 + $0x778] sm:$0xff]
      %v619 = vld [vmem:[%s2 + $0x780] sm:$0xff]
      %v620 = vld [vmem:[%s2 + $0x788] sm:$0xff]
      %v621 = vld [vmem:[%s2 + $0x790] sm:$0xff]
      %v622 = vld [vmem:[%s2 + $0x798] sm:$0xff]
      %v623 = vld [vmem:[%s2 + $0x7a0] sm:$0xff]
      %v624 = vld [vmem:[%s2 + $0x7a8] sm:$0xff]
      %v625 = vld [vmem:[%s2 + $0x7b0] sm:$0xff]
      %v626 = vld [vmem:[%s2 + $0x7b8] sm:$0xff]
      %v627 = vld [vmem:[%s2 + $0x7c0] sm:$0xff]
      %v628 = vld [vmem:[%s2 + $0x7c8] sm:$0xff]
      %v629 = vld [vmem:[%s2 + $0x7d0] sm:$0xff]
      %v630 = vld [vmem:[%s2 + $0x7d8] sm:$0xff]
      %v631 = vld [vmem:[%s2 + $0x7e0] sm:$0xff]
      %v632 = vld [vmem:[%s2 + $0x7e8] sm:$0xff]
      %v633 = vld [vmem:[%s2 + $0x7f0] sm:$0xff]
      %v634 = vld [vmem:[%s2 + $0x7f8] sm:$0xff]
      %v635 = vld [vmem:[%s2 + $0x800] sm:$0xff]
      %v636 = vld [vmem:[%s2 + $0x808] sm:$0xff]
      %v637 = vld [vmem:[%s2 + $0x810] sm:$0xff]
      %v638 = vld [vmem:[%s2 + $0x818] sm:$0xff]
      %v639 = vld [vmem:[%s2 + $0x820] sm:$0xff]
      %v640 = vld [vmem:[%s2 + $0x828] sm:$0xff]
      %v641 = vld [vmem:[%s2 + $0x830] sm:$0xff]
      %v642 = vld [vmem:[%s2 + $0x838] sm:$0xff]
      %v643 = vld [vmem:[%s2 + $0x840] sm:$0xff]
      %v644 = vld [vmem:[%s2 + $0x848] sm:$0xff]
      %v645 = vld [vmem:[%s2 + $0x850] sm:$0xff]
      %v646 = vld [vmem:[%s2 + $0x858] sm:$0xff]
      %v647 = vld [vmem:[%s2 + $0x860] sm:$0xff]
      %v648 = vld [vmem:[%s2 + $0x868] sm:$0xff]
      %v649 = vld [vmem:[%s2 + $0x870] sm:$0xff]
      %v650 = vld [vmem:[%s2 + $0x878] sm:$0xff]
      %v651 = vld [vmem:[%s2 + $0x880] sm:$0xff]
      %v652 = vld [vmem:[%s2 + $0x888] sm:$0xff]
      %v653 = vld [vmem:[%s2 + $0x890] sm:$0xff]
      %v654 = vld [vmem:[%s2 + $0x898] sm:$0xff]
      %v655 = vld [vmem:[%s2 + $0x8a0] sm:$0xff]
      %v656 = vld [vmem:[%s2 + $0x8a8] sm:$0xff]
      %v657 = vld [vmem:[%s2 + $0x8b0] sm:$0xff]
      %v658 = vld [vmem:[%s2 + $0x8b8] sm:$0xff]
      %v659 = vld [vmem:[%s2 + $0x8c0] sm:$0xff]
      %v660 = vld [vmem:[%s2 + $0x8c8] sm:$0xff]
      %v661 = vld [vmem:[%s2 + $0x8d0] sm:$0xff]
      %v662 = vld [vmem:[%s2 + $0x8d8] sm:$0xff]
      %v663 = vld [vmem:[%s2 + $0x8e0] sm:$0xff]
      %v664 = vld [vmem:[%s2 + $0x8e8] sm:$0xff]
      %v665 = vld [vmem:[%s2 + $0x8f0] sm:$0xff]
      %v666 = vld [vmem:[%s2 + $0x8f8] sm:$0xff]
      %v667 = vld [vmem:[%s2 + $0x900] sm:$0xff]
      %v668 = vld [vmem:[%s2 + $0x908] sm:$0xff]
      %v669 = vld [vmem:[%s2 + $0x910] sm:$0xff]
      %v670 = vld [vmem:[%s2 + $0x918] sm:$0xff]
      %v671 = vld [vmem:[%s2 + $0x920] sm:$0xff]
      %v672 = vld [vmem:[%s2 + $0x928] sm:$0xff]
      %v673 = vld [vmem:[%s2 + $0x930] sm:$0xff]
      %v674 = vld [vmem:[%s2 + $0x938] sm:$0xff]
      %v675 = vld [vmem:[%s2 + $0x940] sm:$0xff]
      %v676 = vld [vmem:[%s2 + $0x948] sm:$0xff]
      %v677 = vld [vmem:[%s2 + $0x950] sm:$0xff]
      %v678 = vld [vmem:[%s2 + $0x958] sm:$0xff]
      %v679 = vld [vmem:[%s2 + $0x960] sm:$0xff]
      %v680 = vld [vmem:[%s2 + $0x968] sm:$0xff]
      %v681 = vld [vmem:[%s2 + $0x970] sm:$0xff]
      %v682 = vld [vmem:[%s2 + $0x978] sm:$0xff]
      %v683 = vld [vmem:[%s2 + $0x980] sm:$0xff]
      %v684 = vld [vmem:[%s2 + $0x988] sm:$0xff]
      %v685 = vld [vmem:[%s2 + $0x990] sm:$0xff]
      %v686 = vld [vmem:[%s2 + $0x998] sm:$0xff]
      %v687 = vld [vmem:[%s2 + $0x9a0] sm:$0xff]
      %v688 = vld [vmem:[%s2 + $0x9a8] sm:$0xff]
      %v689 = vld [vmem:[%s2 + $0x9b0] sm:$0xff]
      %v690 = vld [vmem:[%s2 + $0x9b8] sm:$0xff]
      %v691 = vld [vmem:[%s2 + $0x9c0] sm:$0xff]
      %v692 = vld [vmem:[%s2 + $0x9c8] sm:$0xff]
      %v693 = vld [vmem:[%s2 + $0x9d0] sm:$0xff]
      %v694 = vld [vmem:[%s2 + $0x9d8] sm:$0xff]
      %v695 = vld [vmem:[%s2 + $0x9e0] sm:$0xff]
      %v696 = vld [vmem:[%s2 + $0x9e8] sm:$0xff]
      %v697 = vld [vmem:[%s2 + $0x9f0] sm:$0xff]
      %v698 = vld [vmem:[%s2 + $0x9f8] sm:$0xff]
      %v699 = vld [vmem:[%s2 + $0xa00] sm:$0xff]
      %v700 = vld [vmem:[%s2 + $0xa08] sm:$0xff]
      %v701 = vld [vmem:[%s2 + $0xa10] sm:$0xff]
      %v702 = vld [vmem:[%s2 + $0xa18] sm:$0xff]
      %v703 = vld [vmem:[%s2 + $0xa20] sm:$0xff]
      %v704 = vld [vmem:[%s2 + $0xa28] sm:$0xff]
      %v705 = vld [vmem:[%s2 + $0xa30] sm:$0xff]
      %v706 = vld [vmem:[%s2 + $0xa38] sm:$0xff]
      %v707 = vld [vmem:[%s2 + $0xa40] sm:$0xff]
      %v708 = vld [vmem:[%s2 + $0xa48] sm:$0xff]
      %v709 = vld [vmem:[%s2 + $0xa50] sm:$0xff]
      %v710 = vld [vmem:[%s2 + $0xa58] sm:$0xff]
      %v711 = vld [vmem:[%s2 + $0xa60] sm:$0xff]
      %v712 = vld [vmem:[%s2 + $0xa68] sm:$0xff]
      %v713 = vld [vmem:[%s2 + $0xa70] sm:$0xff]
      %v714 = vld [vmem:[%s2 + $0xa78] sm:$0xff]
      %v715 = vld [vmem:[%s2 + $0xa80] sm:$0xff]
      %v716 = vld [vmem:[%s2 + $0xa88] sm:$0xff]
      %v717 = vld [vmem:[%s2 + $0xa90] sm:$0xff]
      %v718 = vld [vmem:[%s2 + $0xa98] sm:$0xff]
      %v719 = vld [vmem:[%s2 + $0xaa0] sm:$0xff]
      %v720 = vld [vmem:[%s2 + $0xaa8] sm:$0xff]
      %v721 = vld [vmem:[%s2 + $0xab0] sm:$0xff]
      %v722 = vld [vmem:[%s2 + $0xab8] sm:$0xff]
      %v723 = vld [vmem:[%s2 + $0xac0] sm:$0xff]
      %v724 = vld [vmem:[%s2 + $0xac8] sm:$0xff]
      %v725 = vld [vmem:[%s2 + $0xad0] sm:$0xff]
      %v726 = vld [vmem:[%s2 + $0xad8] sm:$0xff]
      %v727 = vld [vmem:[%s2 + $0xae0] sm:$0xff]
      %v728 = vld [vmem:[%s2 + $0xae8] sm:$0xff]
      %v729 = vld [vmem:[%s2 + $0xaf0] sm:$0xff]
      %v730 = vld [vmem:[%s2 + $0xaf8] sm:$0xff]
      %v731 = vld [vmem:[%s2 + $0xb00] sm:$0xff]
      %v732 = vld [vmem:[%s2 + $0xb08] sm:$0xff]
      %v733 = vld [vmem:[%s2 + $0xb10] sm:$0xff]
      %v734 = vld [vmem:[%s2 + $0xb18] sm:$0xff]
      %v735 = vld [vmem:[%s2 + $0xb20] sm:$0xff]
      %v736 = vld [vmem:[%s2 + $0xb28] sm:$0xff]
      %v737 = vld [vmem:[%s2 + $0xb30] sm:$0xff]
      %v738 = vld [vmem:[%s2 + $0xb38] sm:$0xff]
      %v739 = vld [vmem:[%s2 + $0xb40] sm:$0xff]
      %v740 = vld [vmem:[%s2 + $0xb48] sm:$0xff]
      %v741 = vld [vmem:[%s2 + $0xb50] sm:$0xff]
      %v742 = vld [vmem:[%s2 + $0xb58] sm:$0xff]
      %v743 = vld [vmem:[%s2 + $0xb60] sm:$0xff]
      %v744 = vld [vmem:[%s2 + $0xb68] sm:$0xff]
      %v745 = vld [vmem:[%s2 + $0xb70] sm:$0xff]
      %v746 = vld [vmem:[%s2 + $0xb78] sm:$0xff]
      %v747 = vld [vmem:[%s2 + $0xb80] sm:$0xff]
      %v748 = vld [vmem:[%s2 + $0xb88] sm:$0xff]
      %v749 = vld [vmem:[%s2 + $0xb90] sm:$0xff]
      %v750 = vld [vmem:[%s2 + $0xb98] sm:$0xff]
      %v751 = vld [vmem:[%s2 + $0xba0] sm:$0xff]
      %v752 = vld [vmem:[%s2 + $0xba8] sm:$0xff]
      %v753 = vld [vmem:[%s2 + $0xbb0] sm:$0xff]
      %v754 = vld [vmem:[%s2 + $0xbb8] sm:$0xff]
      %v755 = vld [vmem:[%s2 + $0xbc0] sm:$0xff]
      %v756 = vld [vmem:[%s2 + $0xbc8] sm:$0xff]
      %v757 = vld [vmem:[%s2 + $0xbd0] sm:$0xff]
      %v758 = vld [vmem:[%s2 + $0xbd8] sm:$0xff]
      %v759 = vld [vmem:[%s2 + $0xbe0] sm:$0xff]
      %v760 = vld [vmem:[%s2 + $0xbe8] sm:$0xff]
      %v761 = vld [vmem:[%s2 + $0xbf0] sm:$0xff]
      %v762 = vld [vmem:[%s2 + $0xbf8] sm:$0xff]
      %vm829 = vcmask 1046528
      %v830 = vrot.slane %v313, 1
      %v831 = vrot.slane %v315, 1
      %v832 = vsel %vm829, %v830, %v831
      %v833 = vrot.slane %v314, 1
      %v834 = vrot.slane %v316, 1
      %v835 = vsel %vm829, %v833, %v834
      %v836 = vrot.slane %v317, 1
      %v837 = vsel %vm829, %v831, %v836
      %v838 = vrot.slane %v318, 1
      %v839 = vsel %vm829, %v834, %v838
      %v840 = vrot.slane %v319, 1
      %v841 = vsel %vm829, %v836, %v840
      %v842 = vrot.slane %v320, 1
      %v843 = vsel %vm829, %v838, %v842
      %v844 = vrot.slane %v321, 1
      %v845 = vsel %vm829, %v840, %v844
      %v846 = vrot.slane %v322, 1
      %v847 = vsel %vm829, %v842, %v846
      %v848 = vrot.slane %v323, 1
      %v849 = vsel %vm829, %v844, %v848
      %v850 = vrot.slane %v324, 1
      %v851 = vsel %vm829, %v846, %v850
      %v852 = vrot.slane %v325, 1
      %v853 = vsel %vm829, %v848, %v852
      %v854 = vrot.slane %v326, 1
      %v855 = vsel %vm829, %v850, %v854
      %v856 = vrot.slane %v327, 1
      %v857 = vsel %vm829, %v852, %v856
      %v858 = vrot.slane %v328, 1
      %v859 = vsel %vm829, %v854, %v858
      %v860 = vrot.slane %v329, 1
      %v861 = vsel %vm829, %v856, %v860
      %v862 = vrot.slane %v330, 1
      %v863 = vsel %vm829, %v858, %v862
      %v864 = vrot.slane %v331, 1
      %v865 = vsel %vm829, %v860, %v864
      %v866 = vrot.slane %v332, 1
      %v867 = vsel %vm829, %v862, %v866
      %v868 = vrot.slane %v333, 1
      %v869 = vsel %vm829, %v864, %v868
      %v870 = vrot.slane %v334, 1
      %v871 = vsel %vm829, %v866, %v870
      %v872 = vrot.slane %v335, 1
      %v873 = vsel %vm829, %v868, %v872
      %v874 = vrot.slane %v336, 1
      %v875 = vsel %vm829, %v870, %v874
      %v876 = vrot.slane %v337, 1
      %v877 = vsel %vm829, %v872, %v876
      %v878 = vrot.slane %v338, 1
      %v879 = vsel %vm829, %v874, %v878
      %v880 = vrot.slane %v339, 1
      %v881 = vsel %vm829, %v876, %v880
      %v882 = vrot.slane %v340, 1
      %v883 = vsel %vm829, %v878, %v882
      %v884 = vrot.slane %v341, 1
      %v885 = vsel %vm829, %v880, %v884
      %v886 = vrot.slane %v342, 1
      %v887 = vsel %vm829, %v882, %v886
      %v888 = vrot.slane %v343, 1
      %v889 = vsel %vm829, %v884, %v888
      %v890 = vrot.slane %v344, 1
      %v891 = vsel %vm829, %v886, %v890
      %v892 = vrot.slane %v345, 1
      %v893 = vsel %vm829, %v888, %v892
      %v894 = vrot.slane %v346, 1
      %v895 = vsel %vm829, %v890, %v894
      %v896 = vrot.slane %v347, 1
      %v897 = vsel %vm829, %v892, %v896
      %v898 = vrot.slane %v348, 1
      %v899 = vsel %vm829, %v894, %v898
      %v900 = vrot.slane %v349, 1
      %v901 = vsel %vm829, %v896, %v900
      %v902 = vrot.slane %v350, 1
      %v903 = vsel %vm829, %v898, %v902
      %v904 = vrot.slane %v351, 1
      %v905 = vsel %vm829, %v900, %v904
      %v906 = vrot.slane %v352, 1
      %v907 = vsel %vm829, %v902, %v906
      %v908 = vrot.slane %v353, 1
      %v909 = vsel %vm829, %v904, %v908
      %v910 = vrot.slane %v354, 1
      %v911 = vsel %vm829, %v906, %v910
      %v912 = vrot.slane %v355, 1
      %v913 = vsel %vm829, %v908, %v912
      %v914 = vrot.slane %v356, 1
      %v915 = vsel %vm829, %v910, %v914
      %v916 = vrot.slane %v357, 1
      %v917 = vsel %vm829, %v912, %v916
      %v918 = vrot.slane %v358, 1
      %v919 = vsel %vm829, %v914, %v918
      %v920 = vrot.slane %v359, 1
      %v921 = vsel %vm829, %v916, %v920
      %v922 = vrot.slane %v360, 1
      %v923 = vsel %vm829, %v918, %v922
      %v924 = vrot.slane %v361, 1
      %v925 = vsel %vm829, %v920, %v924
      %v926 = vrot.slane %v362, 1
      %v927 = vsel %vm829, %v922, %v926
      %v928 = vrot.slane %v363, 1
      %v929 = vsel %vm829, %v924, %v928
      %v930 = vrot.slane %v364, 1
      %v931 = vsel %vm829, %v926, %v930
      %v932 = vrot.slane %v365, 1
      %v933 = vsel %vm829, %v928, %v932
      %v934 = vrot.slane %v366, 1
      %v935 = vsel %vm829, %v930, %v934
      %v936 = vrot.slane %v367, 1
      %v937 = vsel %vm829, %v932, %v936
      %v938 = vrot.slane %v368, 1
      %v939 = vsel %vm829, %v934, %v938
      %v940 = vrot.slane %v369, 1
      %v941 = vsel %vm829, %v936, %v940
      %v942 = vrot.slane %v370, 1
      %v943 = vsel %vm829, %v938, %v942
      %v944 = vrot.slane %v371, 1
      %v945 = vsel %vm829, %v940, %v944
      %v946 = vrot.slane %v372, 1
      %v947 = vsel %vm829, %v942, %v946
      %v948 = vrot.slane %v373, 1
      %v949 = vsel %vm829, %v944, %v948
      %v950 = vrot.slane %v374, 1
      %v951 = vsel %vm829, %v946, %v950
      %v952 = vrot.slane %v375, 1
      %v953 = vsel %vm829, %v948, %v952
      %v954 = vrot.slane %v376, 1
      %v955 = vsel %vm829, %v950, %v954
      %v956 = vrot.slane %v569, 1
      %v957 = vsel %vm829, %v952, %v956
      %v958 = vrot.slane %v570, 1
      %v959 = vsel %vm829, %v954, %v958
      %1024 = vmatprep.subr.mxu0 %v662
      %1025 = vmatpush1.msra.mxu0 %v661
      %1026 = vmatprep.subr.mxu0 %v656
      %1027 = vmatpush1.msra.mxu0 %v655
      %1028 = vmatprep.subr.mxu0 %v650
      %1029 = vmatpush1.msra.mxu0 %v649
      %1030 = vmatprep.subr.mxu0 %v644
      %1031 = vmatpush1.msra.mxu0 %v643
      %1032 = vmatprep.subr.mxu0 %v638
      %1033 = vmatpush1.msra.mxu0 %v637
      %1034 = vmatprep.subr.mxu0 %v632
      %1035 = vmatpush1.msra.mxu0 %v631
      %1036 = vmatprep.subr.mxu0 %v626
      %1037 = vmatpush1.msra.mxu0 %v625
      %1038 = vmatprep.subr.mxu0 %v620
      %1039 = vmatpush1.msra.mxu0 %v619
      %1040 = vmatprep.subr.mxu0 %v614
      %1041 = vmatpush1.msra.mxu0 %v613
      %1042 = vmatprep.subr.mxu0 %v608
      %1043 = vmatpush1.msra.mxu0 %v607
      %1044 = vmatprep.subr.mxu0 %v602
      %1045 = vmatpush1.msra.mxu0 %v601
      %1046 = vmatprep.subr.mxu0 %v596
      %1047 = vmatpush1.msra.mxu0 %v595
      %1048 = vmatprep.subr.mxu0 %v590
      %1049 = vmatpush1.msra.mxu0 %v589
      %1050 = vmatprep.subr.mxu0 %v584
      %1051 = vmatpush1.msra.mxu0 %v583
      %1052 = vmatprep.subr.mxu0 %v578
      %1053 = vmatpush1.msra.mxu0 %v577
      %1054 = vmatprep.subr.mxu0 %v572
      %1055 = vmatpush1.msra.mxu0 %v571
      %1056 = vmatprep.subr.mxu0 %v758
      %1057 = vmatpush2.msra.mxu0 %v757
      %1058 = vmatprep.subr.mxu0 %v752
      %1059 = vmatpush2.msra.mxu0 %v751
      %1060 = vmatprep.subr.mxu0 %v746
      %1061 = vmatpush2.msra.mxu0 %v745
      %1062 = vmatprep.subr.mxu0 %v740
      %1063 = vmatpush2.msra.mxu0 %v739
      %1064 = vmatprep.subr.mxu0 %v734
      %1065 = vmatpush2.msra.mxu0 %v733
      %1066 = vmatprep.subr.mxu0 %v728
      %1067 = vmatpush2.msra.mxu0 %v727
      %1068 = vmatprep.subr.mxu0 %v722
      %1069 = vmatpush2.msra.mxu0 %v721
      %1070 = vmatprep.subr.mxu0 %v716
      %1071 = vmatpush2.msra.mxu0 %v715
      %1072 = vmatprep.subr.mxu0 %v710
      %1073 = vmatpush2.msra.mxu0 %v709
      %1074 = vmatprep.subr.mxu0 %v704
      %1075 = vmatpush2.msra.mxu0 %v703
      %1076 = vmatprep.subr.mxu0 %v698
      %1077 = vmatpush2.msra.mxu0 %v697
      %1078 = vmatprep.subr.mxu0 %v692
      %1079 = vmatpush2.msra.mxu0 %v691
      %1080 = vmatprep.subr.mxu0 %v686
      %1081 = vmatpush2.msra.mxu0 %v685
      %1082 = vmatprep.subr.mxu0 %v680
      %1083 = vmatpush2.msra.mxu0 %v679
      %1084 = vmatprep.subr.mxu0 %v674
      %1085 = vmatpush2.msra.mxu0 %v673
      %1086 = vmatprep.subr.mxu0 %v668
      %1087 = vmatpush2.msra.mxu0 %v667
      %1088 = vmatprep.mubr.f32.mxu0 %v835
      %1089 = vmatmul.mubr.f32.gmra.mxu0 %v832
      %v1090 = vpop.f32.mrf.mxu0
      %v1091 = vadd.f32 0.0, %v1090
      %v1092 = vpop.f32.mrf.mxu0
      %v1093 = vadd.f32 0.0, %v1092
      %1094 = vmatprep.mubr.f32.mxu0 %v839
      %1095 = vmatmul.mubr.f32.gmra.mxu0 %v837
      %v1096 = vpop.f32.mrf.mxu0
      %v1097 = vadd.f32 0.0, %v1096
      %v1098 = vpop.f32.mrf.mxu0
      %v1099 = vadd.f32 0.0, %v1098
      %1100 = vmatprep.mubr.f32.mxu0 %v843
      %1101 = vmatmul.mubr.f32.gmra.mxu0 %v841
      %v1102 = vpop.f32.mrf.mxu0
      %v1103 = vadd.f32 0.0, %v1102
      %v1104 = vpop.f32.mrf.mxu0
      %v1105 = vadd.f32 0.0, %v1104
      %1106 = vmatprep.mubr.f32.mxu0 %v847
      %1107 = vmatmul.mubr.f32.gmra.mxu0 %v845
      %v1108 = vpop.f32.mrf.mxu0
      %v1109 = vadd.f32 0.0, %v1108
      %v1110 = vpop.f32.mrf.mxu0
      %v1111 = vadd.f32 0.0, %v1110
      %1112 = vmatprep.mubr.f32.mxu0 %v851
      %1113 = vmatmul.mubr.f32.gmra.mxu0 %v849
      %v1114 = vpop.f32.mrf.mxu0
      %v1115 = vadd.f32 0.0, %v1114
      %v1116 = vpop.f32.mrf.mxu0
      %v1117 = vadd.f32 0.0, %v1116
      %1118 = vmatprep.mubr.f32.mxu0 %v855
      %1119 = vmatmul.mubr.f32.gmra.mxu0 %v853
      %v1120 = vpop.f32.mrf.mxu0
      %v1121 = vadd.f32 0.0, %v1120
      %v1122 = vpop.f32.mrf.mxu0
      %v1123 = vadd.f32 0.0, %v1122
      %1124 = vmatprep.mubr.f32.mxu0 %v859
      %1125 = vmatmul.mubr.f32.gmra.mxu0 %v857
      %v1126 = vpop.f32.mrf.mxu0
      %v1127 = vadd.f32 0.0, %v1126
      %v1128 = vpop.f32.mrf.mxu0
      %v1129 = vadd.f32 0.0, %v1128
      %1130 = vmatprep.mubr.f32.mxu0 %v863
      %1131 = vmatmul.mubr.f32.gmra.mxu0 %v861
      %v1132 = vpop.f32.mrf.mxu0
      %v1133 = vadd.f32 0.0, %v1132
      %v1134 = vpop.f32.mrf.mxu0
      %v1135 = vadd.f32 0.0, %v1134
      %1136 = vmatprep.mubr.f32.mxu0 %v867
      %1137 = vmatmul.mubr.f32.gmra.mxu0 %v865
      %v1138 = vpop.f32.mrf.mxu0
      %v1139 = vadd.f32 0.0, %v1138
      %v1140 = vpop.f32.mrf.mxu0
      %v1141 = vadd.f32 0.0, %v1140
      %1142 = vmatprep.mubr.f32.mxu0 %v871
      %1143 = vmatmul.mubr.f32.gmra.mxu0 %v869
      %v1144 = vpop.f32.mrf.mxu0
      %v1145 = vadd.f32 0.0, %v1144
      %v1146 = vpop.f32.mrf.mxu0
      %v1147 = vadd.f32 0.0, %v1146
      %1148 = vmatprep.mubr.f32.mxu0 %v875
      %1149 = vmatmul.mubr.f32.gmra.mxu0 %v873
      %v1150 = vpop.f32.mrf.mxu0
      %v1151 = vadd.f32 0.0, %v1150
      %v1152 = vpop.f32.mrf.mxu0
      %v1153 = vadd.f32 0.0, %v1152
      %1154 = vmatprep.mubr.f32.mxu0 %v879
      %1155 = vmatmul.mubr.f32.gmra.mxu0 %v877
      %v1156 = vpop.f32.mrf.mxu0
      %v1157 = vadd.f32 0.0, %v1156
      %v1158 = vpop.f32.mrf.mxu0
      %v1159 = vadd.f32 0.0, %v1158
      %1160 = vmatprep.mubr.f32.mxu0 %v883
      %1161 = vmatmul.mubr.f32.gmra.mxu0 %v881
      %v1162 = vpop.f32.mrf.mxu0
      %v1163 = vadd.f32 0.0, %v1162
      %v1164 = vpop.f32.mrf.mxu0
      %v1165 = vadd.f32 0.0, %v1164
      %1166 = vmatprep.mubr.f32.mxu0 %v887
      %1167 = vmatmul.mubr.f32.gmra.mxu0 %v885
      %v1168 = vpop.f32.mrf.mxu0
      %v1169 = vadd.f32 0.0, %v1168
      %v1170 = vpop.f32.mrf.mxu0
      %v1171 = vadd.f32 0.0, %v1170
      %1172 = vmatprep.mubr.f32.mxu0 %v891
      %1173 = vmatmul.mubr.f32.gmra.mxu0 %v889
      %v1174 = vpop.f32.mrf.mxu0
      %v1175 = vadd.f32 0.0, %v1174
      %v1176 = vpop.f32.mrf.mxu0
      %v1177 = vadd.f32 0.0, %v1176
      %1178 = vmatprep.mubr.f32.mxu0 %v895
      %1179 = vmatmul.mubr.f32.gmra.mxu0 %v893
      %v1180 = vpop.f32.mrf.mxu0
      %v1181 = vadd.f32 0.0, %v1180
      %v1182 = vpop.f32.mrf.mxu0
      %v1183 = vadd.f32 0.0, %v1182
      %1184 = vmatprep.mubr.f32.mxu0 %v899
      %1185 = vmatmul.mubr.f32.gmra.mxu0 %v897
      %v1186 = vpop.f32.mrf.mxu0
      %v1187 = vadd.f32 0.0, %v1186
      %v1188 = vpop.f32.mrf.mxu0
      %v1189 = vadd.f32 0.0, %v1188
      %1190 = vmatprep.mubr.f32.mxu0 %v903
      %1191 = vmatmul.mubr.f32.gmra.mxu0 %v901
      %v1192 = vpop.f32.mrf.mxu0
      %v1193 = vadd.f32 0.0, %v1192
      %v1194 = vpop.f32.mrf.mxu0
      %v1195 = vadd.f32 0.0, %v1194
      %1196 = vmatprep.mubr.f32.mxu0 %v907
      %1197 = vmatmul.mubr.f32.gmra.mxu0 %v905
      %v1198 = vpop.f32.mrf.mxu0
      %v1199 = vadd.f32 0.0, %v1198
      %v1200 = vpop.f32.mrf.mxu0
      %v1201 = vadd.f32 0.0, %v1200
      %1202 = vmatprep.mubr.f32.mxu0 %v911
      %1203 = vmatmul.mubr.f32.gmra.mxu0 %v909
      %v1204 = vpop.f32.mrf.mxu0
      %v1205 = vadd.f32 0.0, %v1204
      %v1206 = vpop.f32.mrf.mxu0
      %v1207 = vadd.f32 0.0, %v1206
      %1208 = vmatprep.mubr.f32.mxu0 %v915
      %1209 = vmatmul.mubr.f32.gmra.mxu0 %v913
      %v1210 = vpop.f32.mrf.mxu0
      %v1211 = vadd.f32 0.0, %v1210
      %v1212 = vpop.f32.mrf.mxu0
      %v1213 = vadd.f32 0.0, %v1212
      %1214 = vmatprep.mubr.f32.mxu0 %v919
      %1215 = vmatmul.mubr.f32.gmra.mxu0 %v917
      %v1216 = vpop.f32.mrf.mxu0
      %v1217 = vadd.f32 0.0, %v1216
      %v1218 = vpop.f32.mrf.mxu0
      %v1219 = vadd.f32 0.0, %v1218
      %1220 = vmatprep.mubr.f32.mxu0 %v923
      %1221 = vmatmul.mubr.f32.gmra.mxu0 %v921
      %v1222 = vpop.f32.mrf.mxu0
      %v1223 = vadd.f32 0.0, %v1222
      %v1224 = vpop.f32.mrf.mxu0
      %v1225 = vadd.f32 0.0, %v1224
      %1226 = vmatprep.mubr.f32.mxu0 %v927
      %1227 = vmatmul.mubr.f32.gmra.mxu0 %v925
      %v1228 = vpop.f32.mrf.mxu0
      %v1229 = vadd.f32 0.0, %v1228
      %v1230 = vpop.f32.mrf.mxu0
      %v1231 = vadd.f32 0.0, %v1230
      %1232 = vmatprep.mubr.f32.mxu0 %v931
      %1233 = vmatmul.mubr.f32.gmra.mxu0 %v929
      %v1234 = vpop.f32.mrf.mxu0
      %v1235 = vadd.f32 0.0, %v1234
      %v1236 = vpop.f32.mrf.mxu0
      %v1237 = vadd.f32 0.0, %v1236
      %1238 = vmatprep.mubr.f32.mxu0 %v935
      %1239 = vmatmul.mubr.f32.gmra.mxu0 %v933
      %v1240 = vpop.f32.mrf.mxu0
      %v1241 = vadd.f32 0.0, %v1240
      %v1242 = vpop.f32.mrf.mxu0
      %v1243 = vadd.f32 0.0, %v1242
      %1244 = vmatprep.mubr.f32.mxu0 %v939
      %1245 = vmatmul.mubr.f32.gmra.mxu0 %v937
      %v1246 = vpop.f32.mrf.mxu0
      %v1247 = vadd.f32 0.0, %v1246
      %v1248 = vpop.f32.mrf.mxu0
      %v1249 = vadd.f32 0.0, %v1248
      %1250 = vmatprep.mubr.f32.mxu0 %v943
      %1251 = vmatmul.mubr.f32.gmra.mxu0 %v941
      %v1252 = vpop.f32.mrf.mxu0
      %v1253 = vadd.f32 0.0, %v1252
      %v1254 = vpop.f32.mrf.mxu0
      %v1255 = vadd.f32 0.0, %v1254
      %1256 = vmatprep.mubr.f32.mxu0 %v947
      %1257 = vmatmul.mubr.f32.gmra.mxu0 %v945
      %v1258 = vpop.f32.mrf.mxu0
      %v1259 = vadd.f32 0.0, %v1258
      %v1260 = vpop.f32.mrf.mxu0
      %v1261 = vadd.f32 0.0, %v1260
      %1262 = vmatprep.mubr.f32.mxu0 %v951
      %1263 = vmatmul.mubr.f32.gmra.mxu0 %v949
      %v1264 = vpop.f32.mrf.mxu0
      %v1265 = vadd.f32 0.0, %v1264
      %v1266 = vpop.f32.mrf.mxu0
      %v1267 = vadd.f32 0.0, %v1266
      %1268 = vmatprep.mubr.f32.mxu0 %v955
      %1269 = vmatmul.mubr.f32.gmra.mxu0 %v953
      %v1270 = vpop.f32.mrf.mxu0
      %v1271 = vadd.f32 0.0, %v1270
      %v1272 = vpop.f32.mrf.mxu0
      %v1273 = vadd.f32 0.0, %v1272
      %1274 = vmatprep.mubr.f32.mxu0 %v959
      %1275 = vmatmul.mubr.f32.gmra.mxu0 %v957
      %v1276 = vpop.f32.mrf.mxu0
      %v1277 = vadd.f32 0.0, %v1276
      %v1278 = vpop.f32.mrf.mxu0
      %v1279 = vadd.f32 0.0, %v1278
      %1280 = vdwg.mxu0
      %1281 = vmatprep.subr.mxu0 %v664
      %1282 = vmatpush1.msra.mxu0 %v663
      %1283 = vmatprep.subr.mxu0 %v658
      %1284 = vmatpush1.msra.mxu0 %v657
      %1285 = vmatprep.subr.mxu0 %v652
      %1286 = vmatpush1.msra.mxu0 %v651
      %1287 = vmatprep.subr.mxu0 %v646
      %1288 = vmatpush1.msra.mxu0 %v645
      %1289 = vmatprep.subr.mxu0 %v640
      %1290 = vmatpush1.msra.mxu0 %v639
      %1291 = vmatprep.subr.mxu0 %v634
      %1292 = vmatpush1.msra.mxu0 %v633
      %1293 = vmatprep.subr.mxu0 %v628
      %1294 = vmatpush1.msra.mxu0 %v627
      %1295 = vmatprep.subr.mxu0 %v622
      %1296 = vmatpush1.msra.mxu0 %v621
      %1297 = vmatprep.subr.mxu0 %v616
      %1298 = vmatpush1.msra.mxu0 %v615
      %1299 = vmatprep.subr.mxu0 %v610
      %1300 = vmatpush1.msra.mxu0 %v609
      %1301 = vmatprep.subr.mxu0 %v604
      %1302 = vmatpush1.msra.mxu0 %v603
      %1303 = vmatprep.subr.mxu0 %v598
      %1304 = vmatpush1.msra.mxu0 %v597
      %1305 = vmatprep.subr.mxu0 %v592
      %1306 = vmatpush1.msra.mxu0 %v591
      %1307 = vmatprep.subr.mxu0 %v586
      %1308 = vmatpush1.msra.mxu0 %v585
      %1309 = vmatprep.subr.mxu0 %v580
      %1310 = vmatpush1.msra.mxu0 %v579
      %1311 = vmatprep.subr.mxu0 %v574
      %1312 = vmatpush1.msra.mxu0 %v573
      %1313 = vmatprep.subr.mxu0 %v760
      %1314 = vmatpush2.msra.mxu0 %v759
      %1315 = vmatprep.subr.mxu0 %v754
      %1316 = vmatpush2.msra.mxu0 %v753
      %1317 = vmatprep.subr.mxu0 %v748
      %1318 = vmatpush2.msra.mxu0 %v747
      %1319 = vmatprep.subr.mxu0 %v742
      %1320 = vmatpush2.msra.mxu0 %v741
      %1321 = vmatprep.subr.mxu0 %v736
      %1322 = vmatpush2.msra.mxu0 %v735
      %1323 = vmatprep.subr.mxu0 %v730
      %1324 = vmatpush2.msra.mxu0 %v729
      %1325 = vmatprep.subr.mxu0 %v724
      %1326 = vmatpush2.msra.mxu0 %v723
      %1327 = vmatprep.subr.mxu0 %v718
      %1328 = vmatpush2.msra.mxu0 %v717
      %1329 = vmatprep.subr.mxu0 %v712
      %1330 = vmatpush2.msra.mxu0 %v711
      %1331 = vmatprep.subr.mxu0 %v706
      %1332 = vmatpush2.msra.mxu0 %v705
      %1333 = vmatprep.subr.mxu0 %v700
      %1334 = vmatpush2.msra.mxu0 %v699
      %1335 = vmatprep.subr.mxu0 %v694
      %1336 = vmatpush2.msra.mxu0 %v693
      %1337 = vmatprep.subr.mxu0 %v688
      %1338 = vmatpush2.msra.mxu0 %v687
      %1339 = vmatprep.subr.mxu0 %v682
      %1340 = vmatpush2.msra.mxu0 %v681
      %1341 = vmatprep.subr.mxu0 %v676
      %1342 = vmatpush2.msra.mxu0 %v675
      %1343 = vmatprep.subr.mxu0 %v670
      %1344 = vmatpush2.msra.mxu0 %v669
      %1345 = vmatprep.mubr.f32.mxu0 %v835
      %1346 = vmatmul.mubr.f32.gmra.mxu0 %v832
      %v1347 = vpop.f32.mrf.mxu0
      %v1348 = vadd.f32 0.0, %v1347
      %v1349 = vpop.f32.mrf.mxu0
      %v1350 = vadd.f32 0.0, %v1349
      %1351 = vmatprep.mubr.f32.mxu0 %v839
      %1352 = vmatmul.mubr.f32.gmra.mxu0 %v837
      %v1353 = vpop.f32.mrf.mxu0
      %v1354 = vadd.f32 0.0, %v1353
      %v1355 = vpop.f32.mrf.mxu0
      %v1356 = vadd.f32 0.0, %v1355
      %1357 = vmatprep.mubr.f32.mxu0 %v843
      %1358 = vmatmul.mubr.f32.gmra.mxu0 %v841
      %v1359 = vpop.f32.mrf.mxu0
      %v1360 = vadd.f32 0.0, %v1359
      %v1361 = vpop.f32.mrf.mxu0
      %v1362 = vadd.f32 0.0, %v1361
      %1363 = vmatprep.mubr.f32.mxu0 %v847
      %1364 = vmatmul.mubr.f32.gmra.mxu0 %v845
      %v1365 = vpop.f32.mrf.mxu0
      %v1366 = vadd.f32 0.0, %v1365
      %v1367 = vpop.f32.mrf.mxu0
      %v1368 = vadd.f32 0.0, %v1367
      %1369 = vmatprep.mubr.f32.mxu0 %v851
      %1370 = vmatmul.mubr.f32.gmra.mxu0 %v849
      %v1371 = vpop.f32.mrf.mxu0
      %v1372 = vadd.f32 0.0, %v1371
      %v1373 = vpop.f32.mrf.mxu0
      %v1374 = vadd.f32 0.0, %v1373
      %1375 = vmatprep.mubr.f32.mxu0 %v855
      %1376 = vmatmul.mubr.f32.gmra.mxu0 %v853
      %v1377 = vpop.f32.mrf.mxu0
      %v1378 = vadd.f32 0.0, %v1377
      %v1379 = vpop.f32.mrf.mxu0
      %v1380 = vadd.f32 0.0, %v1379
      %1381 = vmatprep.mubr.f32.mxu0 %v859
      %1382 = vmatmul.mubr.f32.gmra.mxu0 %v857
      %v1383 = vpop.f32.mrf.mxu0
      %v1384 = vadd.f32 0.0, %v1383
      %v1385 = vpop.f32.mrf.mxu0
      %v1386 = vadd.f32 0.0, %v1385
      %1387 = vmatprep.mubr.f32.mxu0 %v863
      %1388 = vmatmul.mubr.f32.gmra.mxu0 %v861
      %v1389 = vpop.f32.mrf.mxu0
      %v1390 = vadd.f32 0.0, %v1389
      %v1391 = vpop.f32.mrf.mxu0
      %v1392 = vadd.f32 0.0, %v1391
      %1393 = vmatprep.mubr.f32.mxu0 %v867
      %1394 = vmatmul.mubr.f32.gmra.mxu0 %v865
      %v1395 = vpop.f32.mrf.mxu0
      %v1396 = vadd.f32 0.0, %v1395
      %v1397 = vpop.f32.mrf.mxu0
      %v1398 = vadd.f32 0.0, %v1397
      %1399 = vmatprep.mubr.f32.mxu0 %v871
      %1400 = vmatmul.mubr.f32.gmra.mxu0 %v869
      %v1401 = vpop.f32.mrf.mxu0
      %v1402 = vadd.f32 0.0, %v1401
      %v1403 = vpop.f32.mrf.mxu0
      %v1404 = vadd.f32 0.0, %v1403
      %1405 = vmatprep.mubr.f32.mxu0 %v875
      %1406 = vmatmul.mubr.f32.gmra.mxu0 %v873
      %v1407 = vpop.f32.mrf.mxu0
      %v1408 = vadd.f32 0.0, %v1407
      %v1409 = vpop.f32.mrf.mxu0
      %v1410 = vadd.f32 0.0, %v1409
      %1411 = vmatprep.mubr.f32.mxu0 %v879
      %1412 = vmatmul.mubr.f32.gmra.mxu0 %v877
      %v1413 = vpop.f32.mrf.mxu0
      %v1414 = vadd.f32 0.0, %v1413
      %v1415 = vpop.f32.mrf.mxu0
      %v1416 = vadd.f32 0.0, %v1415
      %1417 = vmatprep.mubr.f32.mxu0 %v883
      %1418 = vmatmul.mubr.f32.gmra.mxu0 %v881
      %v1419 = vpop.f32.mrf.mxu0
      %v1420 = vadd.f32 0.0, %v1419
      %v1421 = vpop.f32.mrf.mxu0
      %v1422 = vadd.f32 0.0, %v1421
      %1423 = vmatprep.mubr.f32.mxu0 %v887
      %1424 = vmatmul.mubr.f32.gmra.mxu0 %v885
      %v1425 = vpop.f32.mrf.mxu0
      %v1426 = vadd.f32 0.0, %v1425
      %v1427 = vpop.f32.mrf.mxu0
      %v1428 = vadd.f32 0.0, %v1427
      %1429 = vmatprep.mubr.f32.mxu0 %v891
      %1430 = vmatmul.mubr.f32.gmra.mxu0 %v889
      %v1431 = vpop.f32.mrf.mxu0
      %v1432 = vadd.f32 0.0, %v1431
      %v1433 = vpop.f32.mrf.mxu0
      %v1434 = vadd.f32 0.0, %v1433
      %1435 = vmatprep.mubr.f32.mxu0 %v895
      %1436 = vmatmul.mubr.f32.gmra.mxu0 %v893
      %v1437 = vpop.f32.mrf.mxu0
      %v1438 = vadd.f32 0.0, %v1437
      %v1439 = vpop.f32.mrf.mxu0
      %v1440 = vadd.f32 0.0, %v1439
      %1441 = vmatprep.mubr.f32.mxu0 %v899
      %1442 = vmatmul.mubr.f32.gmra.mxu0 %v897
      %v1443 = vpop.f32.mrf.mxu0
      %v1444 = vadd.f32 0.0, %v1443
      %v1445 = vpop.f32.mrf.mxu0
      %v1446 = vadd.f32 0.0, %v1445
      %1447 = vmatprep.mubr.f32.mxu0 %v903
      %1448 = vmatmul.mubr.f32.gmra.mxu0 %v901
      %v1449 = vpop.f32.mrf.mxu0
      %v1450 = vadd.f32 0.0, %v1449
      %v1451 = vpop.f32.mrf.mxu0
      %v1452 = vadd.f32 0.0, %v1451
      %1453 = vmatprep.mubr.f32.mxu0 %v907
      %1454 = vmatmul.mubr.f32.gmra.mxu0 %v905
      %v1455 = vpop.f32.mrf.mxu0
      %v1456 = vadd.f32 0.0, %v1455
      %v1457 = vpop.f32.mrf.mxu0
      %v1458 = vadd.f32 0.0, %v1457
      %1459 = vmatprep.mubr.f32.mxu0 %v911
      %1460 = vmatmul.mubr.f32.gmra.mxu0 %v909
      %v1461 = vpop.f32.mrf.mxu0
      %v1462 = vadd.f32 0.0, %v1461
      %v1463 = vpop.f32.mrf.mxu0
      %v1464 = vadd.f32 0.0, %v1463
      %1465 = vmatprep.mubr.f32.mxu0 %v915
      %1466 = vmatmul.mubr.f32.gmra.mxu0 %v913
      %v1467 = vpop.f32.mrf.mxu0
      %v1468 = vadd.f32 0.0, %v1467
      %v1469 = vpop.f32.mrf.mxu0
      %v1470 = vadd.f32 0.0, %v1469
      %1471 = vmatprep.mubr.f32.mxu0 %v919
      %1472 = vmatmul.mubr.f32.gmra.mxu0 %v917
      %v1473 = vpop.f32.mrf.mxu0
      %v1474 = vadd.f32 0.0, %v1473
      %v1475 = vpop.f32.mrf.mxu0
      %v1476 = vadd.f32 0.0, %v1475
      %1477 = vmatprep.mubr.f32.mxu0 %v923
      %1478 = vmatmul.mubr.f32.gmra.mxu0 %v921
      %v1479 = vpop.f32.mrf.mxu0
      %v1480 = vadd.f32 0.0, %v1479
      %v1481 = vpop.f32.mrf.mxu0
      %v1482 = vadd.f32 0.0, %v1481
      %1483 = vmatprep.mubr.f32.mxu0 %v927
      %1484 = vmatmul.mubr.f32.gmra.mxu0 %v925
      %v1485 = vpop.f32.mrf.mxu0
      %v1486 = vadd.f32 0.0, %v1485
      %v1487 = vpop.f32.mrf.mxu0
      %v1488 = vadd.f32 0.0, %v1487
      %1489 = vmatprep.mubr.f32.mxu0 %v931
      %1490 = vmatmul.mubr.f32.gmra.mxu0 %v929
      %v1491 = vpop.f32.mrf.mxu0
      %v1492 = vadd.f32 0.0, %v1491
      %v1493 = vpop.f32.mrf.mxu0
      %v1494 = vadd.f32 0.0, %v1493
      %1495 = vmatprep.mubr.f32.mxu0 %v935
      %1496 = vmatmul.mubr.f32.gmra.mxu0 %v933
      %v1497 = vpop.f32.mrf.mxu0
      %v1498 = vadd.f32 0.0, %v1497
      %v1499 = vpop.f32.mrf.mxu0
      %v1500 = vadd.f32 0.0, %v1499
      %1501 = vmatprep.mubr.f32.mxu0 %v939
      %1502 = vmatmul.mubr.f32.gmra.mxu0 %v937
      %v1503 = vpop.f32.mrf.mxu0
      %v1504 = vadd.f32 0.0, %v1503
      %v1505 = vpop.f32.mrf.mxu0
      %v1506 = vadd.f32 0.0, %v1505
      %1507 = vmatprep.mubr.f32.mxu0 %v943
      %1508 = vmatmul.mubr.f32.gmra.mxu0 %v941
      %v1509 = vpop.f32.mrf.mxu0
      %v1510 = vadd.f32 0.0, %v1509
      %v1511 = vpop.f32.mrf.mxu0
      %v1512 = vadd.f32 0.0, %v1511
      %1513 = vmatprep.mubr.f32.mxu0 %v947
      %1514 = vmatmul.mubr.f32.gmra.mxu0 %v945
      %v1515 = vpop.f32.mrf.mxu0
      %v1516 = vadd.f32 0.0, %v1515
      %v1517 = vpop.f32.mrf.mxu0
      %v1518 = vadd.f32 0.0, %v1517
      %1519 = vmatprep.mubr.f32.mxu0 %v951
      %1520 = vmatmul.mubr.f32.gmra.mxu0 %v949
      %v1521 = vpop.f32.mrf.mxu0
      %v1522 = vadd.f32 0.0, %v1521
      %v1523 = vpop.f32.mrf.mxu0
      %v1524 = vadd.f32 0.0, %v1523
      %1525 = vmatprep.mubr.f32.mxu0 %v955
      %1526 = vmatmul.mubr.f32.gmra.mxu0 %v953
      %v1527 = vpop.f32.mrf.mxu0
      %v1528 = vadd.f32 0.0, %v1527
      %v1529 = vpop.f32.mrf.mxu0
      %v1530 = vadd.f32 0.0, %v1529
      %1531 = vmatprep.mubr.f32.mxu0 %v959
      %1532 = vmatmul.mubr.f32.gmra.mxu0 %v957
      %v1533 = vpop.f32.mrf.mxu0
      %v1534 = vadd.f32 0.0, %v1533
      %v1535 = vpop.f32.mrf.mxu0
      %v1536 = vadd.f32 0.0, %v1535
      %1537 = vdwg.mxu0
      %1538 = vmatprep.subr.mxu0 %v666
      %1539 = vmatpush1.msra.mxu0 %v665
      %1540 = vmatprep.subr.mxu0 %v660
      %1541 = vmatpush1.msra.mxu0 %v659
      %1542 = vmatprep.subr.mxu0 %v654
      %1543 = vmatpush1.msra.mxu0 %v653
      %1544 = vmatprep.subr.mxu0 %v648
      %1545 = vmatpush1.msra.mxu0 %v647
      %1546 = vmatprep.subr.mxu0 %v642
      %1547 = vmatpush1.msra.mxu0 %v641
      %1548 = vmatprep.subr.mxu0 %v636
      %1549 = vmatpush1.msra.mxu0 %v635
      %1550 = vmatprep.subr.mxu0 %v630
      %1551 = vmatpush1.msra.mxu0 %v629
      %1552 = vmatprep.subr.mxu0 %v624
      %1553 = vmatpush1.msra.mxu0 %v623
      %1554 = vmatprep.subr.mxu0 %v618
      %1555 = vmatpush1.msra.mxu0 %v617
      %1556 = vmatprep.subr.mxu0 %v612
      %1557 = vmatpush1.msra.mxu0 %v611
      %1558 = vmatprep.subr.mxu0 %v606
      %1559 = vmatpush1.msra.mxu0 %v605
      %1560 = vmatprep.subr.mxu0 %v600
      %1561 = vmatpush1.msra.mxu0 %v599
      %1562 = vmatprep.subr.mxu0 %v594
      %1563 = vmatpush1.msra.mxu0 %v593
      %1564 = vmatprep.subr.mxu0 %v588
      %1565 = vmatpush1.msra.mxu0 %v587
      %1566 = vmatprep.subr.mxu0 %v582
      %1567 = vmatpush1.msra.mxu0 %v581
      %1568 = vmatprep.subr.mxu0 %v576
      %1569 = vmatpush1.msra.mxu0 %v575
      %1570 = vmatprep.subr.mxu0 %v762
      %1571 = vmatpush2.msra.mxu0 %v761
      %1572 = vmatprep.subr.mxu0 %v756
      %1573 = vmatpush2.msra.mxu0 %v755
      %1574 = vmatprep.subr.mxu0 %v750
      %1575 = vmatpush2.msra.mxu0 %v749
      %1576 = vmatprep.subr.mxu0 %v744
      %1577 = vmatpush2.msra.mxu0 %v743
      %1578 = vmatprep.subr.mxu0 %v738
      %1579 = vmatpush2.msra.mxu0 %v737
      %1580 = vmatprep.subr.mxu0 %v732
      %1581 = vmatpush2.msra.mxu0 %v731
      %1582 = vmatprep.subr.mxu0 %v726
      %1583 = vmatpush2.msra.mxu0 %v725
      %1584 = vmatprep.subr.mxu0 %v720
      %1585 = vmatpush2.msra.mxu0 %v719
      %1586 = vmatprep.subr.mxu0 %v714
      %1587 = vmatpush2.msra.mxu0 %v713
      %1588 = vmatprep.subr.mxu0 %v708
      %1589 = vmatpush2.msra.mxu0 %v707
      %1590 = vmatprep.subr.mxu0 %v702
      %1591 = vmatpush2.msra.mxu0 %v701
      %1592 = vmatprep.subr.mxu0 %v696
      %1593 = vmatpush2.msra.mxu0 %v695
      %1594 = vmatprep.subr.mxu0 %v690
      %1595 = vmatpush2.msra.mxu0 %v689
      %1596 = vmatprep.subr.mxu0 %v684
      %1597 = vmatpush2.msra.mxu0 %v683
      %1598 = vmatprep.subr.mxu0 %v678
      %1599 = vmatpush2.msra.mxu0 %v677
      %1600 = vmatprep.subr.mxu0 %v672
      %1601 = vmatpush2.msra.mxu0 %v671
      %1602 = vmatprep.mubr.f32.mxu0 %v835
      %1603 = vmatmul.mubr.f32.gmra.mxu0 %v832
      %v1604 = vpop.f32.mrf.mxu0
      %v1605 = vadd.f32 0.0, %v1604
      %v1606 = vpop.f32.mrf.mxu0
      %v1607 = vadd.f32 0.0, %v1606
      %1608 = vmatprep.mubr.f32.mxu0 %v839
      %1609 = vmatmul.mubr.f32.gmra.mxu0 %v837
      %v1610 = vpop.f32.mrf.mxu0
      %v1611 = vadd.f32 0.0, %v1610
      %v1612 = vpop.f32.mrf.mxu0
      %v1613 = vadd.f32 0.0, %v1612
      %1614 = vmatprep.mubr.f32.mxu0 %v843
      %1615 = vmatmul.mubr.f32.gmra.mxu0 %v841
      %v1616 = vpop.f32.mrf.mxu0
      %v1617 = vadd.f32 0.0, %v1616
      %v1618 = vpop.f32.mrf.mxu0
      %v1619 = vadd.f32 0.0, %v1618
      %1620 = vmatprep.mubr.f32.mxu0 %v847
      %1621 = vmatmul.mubr.f32.gmra.mxu0 %v845
      %v1622 = vpop.f32.mrf.mxu0
      %v1623 = vadd.f32 0.0, %v1622
      %v1624 = vpop.f32.mrf.mxu0
      %v1625 = vadd.f32 0.0, %v1624
      %1626 = vmatprep.mubr.f32.mxu0 %v851
      %1627 = vmatmul.mubr.f32.gmra.mxu0 %v849
      %v1628 = vpop.f32.mrf.mxu0
      %v1629 = vadd.f32 0.0, %v1628
      %v1630 = vpop.f32.mrf.mxu0
      %v1631 = vadd.f32 0.0, %v1630
      %1632 = vmatprep.mubr.f32.mxu0 %v855
      %1633 = vmatmul.mubr.f32.gmra.mxu0 %v853
      %v1634 = vpop.f32.mrf.mxu0
      %v1635 = vadd.f32 0.0, %v1634
      %v1636 = vpop.f32.mrf.mxu0
      %v1637 = vadd.f32 0.0, %v1636
      %1638 = vmatprep.mubr.f32.mxu0 %v859
      %1639 = vmatmul.mubr.f32.gmra.mxu0 %v857
      %v1640 = vpop.f32.mrf.mxu0
      %v1641 = vadd.f32 0.0, %v1640
      %v1642 = vpop.f32.mrf.mxu0
      %v1643 = vadd.f32 0.0, %v1642
      %1644 = vmatprep.mubr.f32.mxu0 %v863
      %1645 = vmatmul.mubr.f32.gmra.mxu0 %v861
      %v1646 = vpop.f32.mrf.mxu0
      %v1647 = vadd.f32 0.0, %v1646
      %v1648 = vpop.f32.mrf.mxu0
      %v1649 = vadd.f32 0.0, %v1648
      %1650 = vmatprep.mubr.f32.mxu0 %v867
      %1651 = vmatmul.mubr.f32.gmra.mxu0 %v865
      %v1652 = vpop.f32.mrf.mxu0
      %v1653 = vadd.f32 0.0, %v1652
      %v1654 = vpop.f32.mrf.mxu0
      %v1655 = vadd.f32 0.0, %v1654
      %1656 = vmatprep.mubr.f32.mxu0 %v871
      %1657 = vmatmul.mubr.f32.gmra.mxu0 %v869
      %v1658 = vpop.f32.mrf.mxu0
      %v1659 = vadd.f32 0.0, %v1658
      %v1660 = vpop.f32.mrf.mxu0
      %v1661 = vadd.f32 0.0, %v1660
      %1662 = vmatprep.mubr.f32.mxu0 %v875
      %1663 = vmatmul.mubr.f32.gmra.mxu0 %v873
      %v1664 = vpop.f32.mrf.mxu0
      %v1665 = vadd.f32 0.0, %v1664
      %v1666 = vpop.f32.mrf.mxu0
      %v1667 = vadd.f32 0.0, %v1666
      %1668 = vmatprep.mubr.f32.mxu0 %v879
      %1669 = vmatmul.mubr.f32.gmra.mxu0 %v877
      %v1670 = vpop.f32.mrf.mxu0
      %v1671 = vadd.f32 0.0, %v1670
      %v1672 = vpop.f32.mrf.mxu0
      %v1673 = vadd.f32 0.0, %v1672
      %1674 = vmatprep.mubr.f32.mxu0 %v883
      %1675 = vmatmul.mubr.f32.gmra.mxu0 %v881
      %v1676 = vpop.f32.mrf.mxu0
      %v1677 = vadd.f32 0.0, %v1676
      %v1678 = vpop.f32.mrf.mxu0
      %v1679 = vadd.f32 0.0, %v1678
      %1680 = vmatprep.mubr.f32.mxu0 %v887
      %1681 = vmatmul.mubr.f32.gmra.mxu0 %v885
      %v1682 = vpop.f32.mrf.mxu0
      %v1683 = vadd.f32 0.0, %v1682
      %v1684 = vpop.f32.mrf.mxu0
      %v1685 = vadd.f32 0.0, %v1684
      %1686 = vmatprep.mubr.f32.mxu0 %v891
      %1687 = vmatmul.mubr.f32.gmra.mxu0 %v889
      %v1688 = vpop.f32.mrf.mxu0
      %v1689 = vadd.f32 0.0, %v1688
      %v1690 = vpop.f32.mrf.mxu0
      %v1691 = vadd.f32 0.0, %v1690
      %1692 = vmatprep.mubr.f32.mxu0 %v895
      %1693 = vmatmul.mubr.f32.gmra.mxu0 %v893
      %v1694 = vpop.f32.mrf.mxu0
      %v1695 = vadd.f32 0.0, %v1694
      %v1696 = vpop.f32.mrf.mxu0
      %v1697 = vadd.f32 0.0, %v1696
      %1698 = vmatprep.mubr.f32.mxu0 %v899
      %1699 = vmatmul.mubr.f32.gmra.mxu0 %v897
      %v1700 = vpop.f32.mrf.mxu0
      %v1701 = vadd.f32 0.0, %v1700
      %v1702 = vpop.f32.mrf.mxu0
      %v1703 = vadd.f32 0.0, %v1702
      %1704 = vmatprep.mubr.f32.mxu0 %v903
      %1705 = vmatmul.mubr.f32.gmra.mxu0 %v901
      %v1706 = vpop.f32.mrf.mxu0
      %v1707 = vadd.f32 0.0, %v1706
      %v1708 = vpop.f32.mrf.mxu0
      %v1709 = vadd.f32 0.0, %v1708
      %1710 = vmatprep.mubr.f32.mxu0 %v907
      %1711 = vmatmul.mubr.f32.gmra.mxu0 %v905
      %v1712 = vpop.f32.mrf.mxu0
      %v1713 = vadd.f32 0.0, %v1712
      %v1714 = vpop.f32.mrf.mxu0
      %v1715 = vadd.f32 0.0, %v1714
      %1716 = vmatprep.mubr.f32.mxu0 %v911
      %1717 = vmatmul.mubr.f32.gmra.mxu0 %v909
      %v1718 = vpop.f32.mrf.mxu0
      %v1719 = vadd.f32 0.0, %v1718
      %v1720 = vpop.f32.mrf.mxu0
      %v1721 = vadd.f32 0.0, %v1720
      %1722 = vmatprep.mubr.f32.mxu0 %v915
      %1723 = vmatmul.mubr.f32.gmra.mxu0 %v913
      %v1724 = vpop.f32.mrf.mxu0
      %v1725 = vadd.f32 0.0, %v1724
      %v1726 = vpop.f32.mrf.mxu0
      %v1727 = vadd.f32 0.0, %v1726
      %1728 = vmatprep.mubr.f32.mxu0 %v919
      %1729 = vmatmul.mubr.f32.gmra.mxu0 %v917
      %v1730 = vpop.f32.mrf.mxu0
      %v1731 = vadd.f32 0.0, %v1730
      %v1732 = vpop.f32.mrf.mxu0
      %v1733 = vadd.f32 0.0, %v1732
      %1734 = vmatprep.mubr.f32.mxu0 %v923
      %1735 = vmatmul.mubr.f32.gmra.mxu0 %v921
      %v1736 = vpop.f32.mrf.mxu0
      %v1737 = vadd.f32 0.0, %v1736
      %v1738 = vpop.f32.mrf.mxu0
      %v1739 = vadd.f32 0.0, %v1738
      %1740 = vmatprep.mubr.f32.mxu0 %v927
      %1741 = vmatmul.mubr.f32.gmra.mxu0 %v925
      %v1742 = vpop.f32.mrf.mxu0
      %v1743 = vadd.f32 0.0, %v1742
      %v1744 = vpop.f32.mrf.mxu0
      %v1745 = vadd.f32 0.0, %v1744
      %1746 = vmatprep.mubr.f32.mxu0 %v931
      %1747 = vmatmul.mubr.f32.gmra.mxu0 %v929
      %v1748 = vpop.f32.mrf.mxu0
      %v1749 = vadd.f32 0.0, %v1748
      %v1750 = vpop.f32.mrf.mxu0
      %v1751 = vadd.f32 0.0, %v1750
      %1752 = vmatprep.mubr.f32.mxu0 %v935
      %1753 = vmatmul.mubr.f32.gmra.mxu0 %v933
      %v1754 = vpop.f32.mrf.mxu0
      %v1755 = vadd.f32 0.0, %v1754
      %v1756 = vpop.f32.mrf.mxu0
      %v1757 = vadd.f32 0.0, %v1756
      %1758 = vmatprep.mubr.f32.mxu0 %v939
      %1759 = vmatmul.mubr.f32.gmra.mxu0 %v937
      %v1760 = vpop.f32.mrf.mxu0
      %v1761 = vadd.f32 0.0, %v1760
      %v1762 = vpop.f32.mrf.mxu0
      %v1763 = vadd.f32 0.0, %v1762
      %1764 = vmatprep.mubr.f32.mxu0 %v943
      %1765 = vmatmul.mubr.f32.gmra.mxu0 %v941
      %v1766 = vpop.f32.mrf.mxu0
      %v1767 = vadd.f32 0.0, %v1766
      %v1768 = vpop.f32.mrf.mxu0
      %v1769 = vadd.f32 0.0, %v1768
      %1770 = vmatprep.mubr.f32.mxu0 %v947
      %1771 = vmatmul.mubr.f32.gmra.mxu0 %v945
      %v1772 = vpop.f32.mrf.mxu0
      %v1773 = vadd.f32 0.0, %v1772
      %v1774 = vpop.f32.mrf.mxu0
      %v1775 = vadd.f32 0.0, %v1774
      %1776 = vmatprep.mubr.f32.mxu0 %v951
      %1777 = vmatmul.mubr.f32.gmra.mxu0 %v949
      %v1778 = vpop.f32.mrf.mxu0
      %v1779 = vadd.f32 0.0, %v1778
      %v1780 = vpop.f32.mrf.mxu0
      %v1781 = vadd.f32 0.0, %v1780
      %1782 = vmatprep.mubr.f32.mxu0 %v955
      %1783 = vmatmul.mubr.f32.gmra.mxu0 %v953
      %v1784 = vpop.f32.mrf.mxu0
      %v1785 = vadd.f32 0.0, %v1784
      %v1786 = vpop.f32.mrf.mxu0
      %v1787 = vadd.f32 0.0, %v1786
      %1788 = vmatprep.mubr.f32.mxu0 %v959
      %1789 = vmatmul.mubr.f32.gmra.mxu0 %v957
      %v1790 = vpop.f32.mrf.mxu0
      %v1791 = vadd.f32 0.0, %v1790
      %v1792 = vpop.f32.mrf.mxu0
      %v1793 = vadd.f32 0.0, %v1792
      %1794 = vdwg.mxu0
      %1795 = vmatprep.subr.mxu0 %v468
      %1796 = vmatpush1.msra.mxu0 %v467
      %1797 = vmatprep.subr.mxu0 %v462
      %1798 = vmatpush1.msra.mxu0 %v461
      %1799 = vmatprep.subr.mxu0 %v456
      %1800 = vmatpush1.msra.mxu0 %v455
      %1801 = vmatprep.subr.mxu0 %v450
      %1802 = vmatpush1.msra.mxu0 %v449
      %1803 = vmatprep.subr.mxu0 %v444
      %1804 = vmatpush1.msra.mxu0 %v443
      %1805 = vmatprep.subr.mxu0 %v438
      %1806 = vmatpush1.msra.mxu0 %v437
      %1807 = vmatprep.subr.mxu0 %v432
      %1808 = vmatpush1.msra.mxu0 %v431
      %1809 = vmatprep.subr.mxu0 %v426
      %1810 = vmatpush1.msra.mxu0 %v425
      %1811 = vmatprep.subr.mxu0 %v420
      %1812 = vmatpush1.msra.mxu0 %v419
      %1813 = vmatprep.subr.mxu0 %v414
      %1814 = vmatpush1.msra.mxu0 %v413
      %1815 = vmatprep.subr.mxu0 %v408
      %1816 = vmatpush1.msra.mxu0 %v407
      %1817 = vmatprep.subr.mxu0 %v402
      %1818 = vmatpush1.msra.mxu0 %v401
      %1819 = vmatprep.subr.mxu0 %v396
      %1820 = vmatpush1.msra.mxu0 %v395
      %1821 = vmatprep.subr.mxu0 %v390
      %1822 = vmatpush1.msra.mxu0 %v389
      %1823 = vmatprep.subr.mxu0 %v384
      %1824 = vmatpush1.msra.mxu0 %v383
      %1825 = vmatprep.subr.mxu0 %v378
      %1826 = vmatpush1.msra.mxu0 %v377
      %1827 = vmatprep.subr.mxu0 %v564
      %1828 = vmatpush2.msra.mxu0 %v563
      %1829 = vmatprep.subr.mxu0 %v558
      %1830 = vmatpush2.msra.mxu0 %v557
      %1831 = vmatprep.subr.mxu0 %v552
      %1832 = vmatpush2.msra.mxu0 %v551
      %1833 = vmatprep.subr.mxu0 %v546
      %1834 = vmatpush2.msra.mxu0 %v545
      %1835 = vmatprep.subr.mxu0 %v540
      %1836 = vmatpush2.msra.mxu0 %v539
      %1837 = vmatprep.subr.mxu0 %v534
      %1838 = vmatpush2.msra.mxu0 %v533
      %1839 = vmatprep.subr.mxu0 %v528
      %1840 = vmatpush2.msra.mxu0 %v527
      %1841 = vmatprep.subr.mxu0 %v522
      %1842 = vmatpush2.msra.mxu0 %v521
      %1843 = vmatprep.subr.mxu0 %v516
      %1844 = vmatpush2.msra.mxu0 %v515
      %1845 = vmatprep.subr.mxu0 %v510
      %1846 = vmatpush2.msra.mxu0 %v509
      %1847 = vmatprep.subr.mxu0 %v504
      %1848 = vmatpush2.msra.mxu0 %v503
      %1849 = vmatprep.subr.mxu0 %v498
      %1850 = vmatpush2.msra.mxu0 %v497
      %1851 = vmatprep.subr.mxu0 %v492
      %1852 = vmatpush2.msra.mxu0 %v491
      %1853 = vmatprep.subr.mxu0 %v486
      %1854 = vmatpush2.msra.mxu0 %v485
      %1855 = vmatprep.subr.mxu0 %v480
      %1856 = vmatpush2.msra.mxu0 %v479
      %1857 = vmatprep.subr.mxu0 %v474
      %1858 = vmatpush2.msra.mxu0 %v473
      %1859 = vmatprep.mubr.f32.mxu0 %v314
      %1860 = vmatmul.mubr.f32.gmra.mxu0 %v313
      %v1861 = vpop.f32.mrf.mxu0
      %v1862 = vadd.f32 %v1091, %v1861
      %v1863 = vpop.f32.mrf.mxu0
      %v1864 = vadd.f32 %v1093, %v1863
      %1865 = vmatprep.mubr.f32.mxu0 %v316
      %1866 = vmatmul.mubr.f32.gmra.mxu0 %v315
      %v1867 = vpop.f32.mrf.mxu0
      %v1868 = vadd.f32 %v1097, %v1867
      %v1869 = vpop.f32.mrf.mxu0
      %v1870 = vadd.f32 %v1099, %v1869
      %1871 = vmatprep.mubr.f32.mxu0 %v318
      %1872 = vmatmul.mubr.f32.gmra.mxu0 %v317
      %v1873 = vpop.f32.mrf.mxu0
      %v1874 = vadd.f32 %v1103, %v1873
      %v1875 = vpop.f32.mrf.mxu0
      %v1876 = vadd.f32 %v1105, %v1875
      %1877 = vmatprep.mubr.f32.mxu0 %v320
      %1878 = vmatmul.mubr.f32.gmra.mxu0 %v319
      %v1879 = vpop.f32.mrf.mxu0
      %v1880 = vadd.f32 %v1109, %v1879
      %v1881 = vpop.f32.mrf.mxu0
      %v1882 = vadd.f32 %v1111, %v1881
      %1883 = vmatprep.mubr.f32.mxu0 %v322
      %1884 = vmatmul.mubr.f32.gmra.mxu0 %v321
      %v1885 = vpop.f32.mrf.mxu0
      %v1886 = vadd.f32 %v1115, %v1885
      %v1887 = vpop.f32.mrf.mxu0
      %v1888 = vadd.f32 %v1117, %v1887
      %1889 = vmatprep.mubr.f32.mxu0 %v324
      %1890 = vmatmul.mubr.f32.gmra.mxu0 %v323
      %v1891 = vpop.f32.mrf.mxu0
      %v1892 = vadd.f32 %v1121, %v1891
      %v1893 = vpop.f32.mrf.mxu0
      %v1894 = vadd.f32 %v1123, %v1893
      %1895 = vmatprep.mubr.f32.mxu0 %v326
      %1896 = vmatmul.mubr.f32.gmra.mxu0 %v325
      %v1897 = vpop.f32.mrf.mxu0
      %v1898 = vadd.f32 %v1127, %v1897
      %v1899 = vpop.f32.mrf.mxu0
      %v1900 = vadd.f32 %v1129, %v1899
      %1901 = vmatprep.mubr.f32.mxu0 %v328
      %1902 = vmatmul.mubr.f32.gmra.mxu0 %v327
      %v1903 = vpop.f32.mrf.mxu0
      %v1904 = vadd.f32 %v1133, %v1903
      %v1905 = vpop.f32.mrf.mxu0
      %v1906 = vadd.f32 %v1135, %v1905
      %1907 = vmatprep.mubr.f32.mxu0 %v330
      %1908 = vmatmul.mubr.f32.gmra.mxu0 %v329
      %v1909 = vpop.f32.mrf.mxu0
      %v1910 = vadd.f32 %v1139, %v1909
      %v1911 = vpop.f32.mrf.mxu0
      %v1912 = vadd.f32 %v1141, %v1911
      %1913 = vmatprep.mubr.f32.mxu0 %v332
      %1914 = vmatmul.mubr.f32.gmra.mxu0 %v331
      %v1915 = vpop.f32.mrf.mxu0
      %v1916 = vadd.f32 %v1145, %v1915
      %v1917 = vpop.f32.mrf.mxu0
      %v1918 = vadd.f32 %v1147, %v1917
      %1919 = vmatprep.mubr.f32.mxu0 %v334
      %1920 = vmatmul.mubr.f32.gmra.mxu0 %v333
      %v1921 = vpop.f32.mrf.mxu0
      %v1922 = vadd.f32 %v1151, %v1921
      %v1923 = vpop.f32.mrf.mxu0
      %v1924 = vadd.f32 %v1153, %v1923
      %1925 = vmatprep.mubr.f32.mxu0 %v336
      %1926 = vmatmul.mubr.f32.gmra.mxu0 %v335
      %v1927 = vpop.f32.mrf.mxu0
      %v1928 = vadd.f32 %v1157, %v1927
      %v1929 = vpop.f32.mrf.mxu0
      %v1930 = vadd.f32 %v1159, %v1929
      %1931 = vmatprep.mubr.f32.mxu0 %v338
      %1932 = vmatmul.mubr.f32.gmra.mxu0 %v337
      %v1933 = vpop.f32.mrf.mxu0
      %v1934 = vadd.f32 %v1163, %v1933
      %v1935 = vpop.f32.mrf.mxu0
      %v1936 = vadd.f32 %v1165, %v1935
      %1937 = vmatprep.mubr.f32.mxu0 %v340
      %1938 = vmatmul.mubr.f32.gmra.mxu0 %v339
      %v1939 = vpop.f32.mrf.mxu0
      %v1940 = vadd.f32 %v1169, %v1939
      %v1941 = vpop.f32.mrf.mxu0
      %v1942 = vadd.f32 %v1171, %v1941
      %1943 = vmatprep.mubr.f32.mxu0 %v342
      %1944 = vmatmul.mubr.f32.gmra.mxu0 %v341
      %v1945 = vpop.f32.mrf.mxu0
      %v1946 = vadd.f32 %v1175, %v1945
      %v1947 = vpop.f32.mrf.mxu0
      %v1948 = vadd.f32 %v1177, %v1947
      %1949 = vmatprep.mubr.f32.mxu0 %v344
      %1950 = vmatmul.mubr.f32.gmra.mxu0 %v343
      %v1951 = vpop.f32.mrf.mxu0
      %v1952 = vadd.f32 %v1181, %v1951
      %v1953 = vpop.f32.mrf.mxu0
      %v1954 = vadd.f32 %v1183, %v1953
      %1955 = vmatprep.mubr.f32.mxu0 %v346
      %1956 = vmatmul.mubr.f32.gmra.mxu0 %v345
      %v1957 = vpop.f32.mrf.mxu0
      %v1958 = vadd.f32 %v1187, %v1957
      %v1959 = vpop.f32.mrf.mxu0
      %v1960 = vadd.f32 %v1189, %v1959
      %1961 = vmatprep.mubr.f32.mxu0 %v348
      %1962 = vmatmul.mubr.f32.gmra.mxu0 %v347
      %v1963 = vpop.f32.mrf.mxu0
      %v1964 = vadd.f32 %v1193, %v1963
      %v1965 = vpop.f32.mrf.mxu0
      %v1966 = vadd.f32 %v1195, %v1965
      %1967 = vmatprep.mubr.f32.mxu0 %v350
      %1968 = vmatmul.mubr.f32.gmra.mxu0 %v349
      %v1969 = vpop.f32.mrf.mxu0
      %v1970 = vadd.f32 %v1199, %v1969
      %v1971 = vpop.f32.mrf.mxu0
      %v1972 = vadd.f32 %v1201, %v1971
      %1973 = vmatprep.mubr.f32.mxu0 %v352
      %1974 = vmatmul.mubr.f32.gmra.mxu0 %v351
      %v1975 = vpop.f32.mrf.mxu0
      %v1976 = vadd.f32 %v1205, %v1975
      %v1977 = vpop.f32.mrf.mxu0
      %v1978 = vadd.f32 %v1207, %v1977
      %1979 = vmatprep.mubr.f32.mxu0 %v354
      %1980 = vmatmul.mubr.f32.gmra.mxu0 %v353
      %v1981 = vpop.f32.mrf.mxu0
      %v1982 = vadd.f32 %v1211, %v1981
      %v1983 = vpop.f32.mrf.mxu0
      %v1984 = vadd.f32 %v1213, %v1983
      %1985 = vmatprep.mubr.f32.mxu0 %v356
      %1986 = vmatmul.mubr.f32.gmra.mxu0 %v355
      %v1987 = vpop.f32.mrf.mxu0
      %v1988 = vadd.f32 %v1217, %v1987
      %v1989 = vpop.f32.mrf.mxu0
      %v1990 = vadd.f32 %v1219, %v1989
      %1991 = vmatprep.mubr.f32.mxu0 %v358
      %1992 = vmatmul.mubr.f32.gmra.mxu0 %v357
      %v1993 = vpop.f32.mrf.mxu0
      %v1994 = vadd.f32 %v1223, %v1993
      %v1995 = vpop.f32.mrf.mxu0
      %v1996 = vadd.f32 %v1225, %v1995
      %1997 = vmatprep.mubr.f32.mxu0 %v360
      %1998 = vmatmul.mubr.f32.gmra.mxu0 %v359
      %v1999 = vpop.f32.mrf.mxu0
      %v2000 = vadd.f32 %v1229, %v1999
      %v2001 = vpop.f32.mrf.mxu0
      %v2002 = vadd.f32 %v1231, %v2001
      %2003 = vmatprep.mubr.f32.mxu0 %v362
      %2004 = vmatmul.mubr.f32.gmra.mxu0 %v361
      %v2005 = vpop.f32.mrf.mxu0
      %v2006 = vadd.f32 %v1235, %v2005
      %v2007 = vpop.f32.mrf.mxu0
      %v2008 = vadd.f32 %v1237, %v2007
      %2009 = vmatprep.mubr.f32.mxu0 %v364
      %2010 = vmatmul.mubr.f32.gmra.mxu0 %v363
      %v2011 = vpop.f32.mrf.mxu0
      %v2012 = vadd.f32 %v1241, %v2011
      %v2013 = vpop.f32.mrf.mxu0
      %v2014 = vadd.f32 %v1243, %v2013
      %2015 = vmatprep.mubr.f32.mxu0 %v366
      %2016 = vmatmul.mubr.f32.gmra.mxu0 %v365
      %v2017 = vpop.f32.mrf.mxu0
      %v2018 = vadd.f32 %v1247, %v2017
      %v2019 = vpop.f32.mrf.mxu0
      %v2020 = vadd.f32 %v1249, %v2019
      %2021 = vmatprep.mubr.f32.mxu0 %v368
      %2022 = vmatmul.mubr.f32.gmra.mxu0 %v367
      %v2023 = vpop.f32.mrf.mxu0
      %v2024 = vadd.f32 %v1253, %v2023
      %v2025 = vpop.f32.mrf.mxu0
      %v2026 = vadd.f32 %v1255, %v2025
      %2027 = vmatprep.mubr.f32.mxu0 %v370
      %2028 = vmatmul.mubr.f32.gmra.mxu0 %v369
      %v2029 = vpop.f32.mrf.mxu0
      %v2030 = vadd.f32 %v1259, %v2029
      %v2031 = vpop.f32.mrf.mxu0
      %v2032 = vadd.f32 %v1261, %v2031
      %2033 = vmatprep.mubr.f32.mxu0 %v372
      %2034 = vmatmul.mubr.f32.gmra.mxu0 %v371
      %v2035 = vpop.f32.mrf.mxu0
      %v2036 = vadd.f32 %v1265, %v2035
      %v2037 = vpop.f32.mrf.mxu0
      %v2038 = vadd.f32 %v1267, %v2037
      %2039 = vmatprep.mubr.f32.mxu0 %v374
      %2040 = vmatmul.mubr.f32.gmra.mxu0 %v373
      %v2041 = vpop.f32.mrf.mxu0
      %v2042 = vadd.f32 %v1271, %v2041
      %v2043 = vpop.f32.mrf.mxu0
      %v2044 = vadd.f32 %v1273, %v2043
      %2045 = vmatprep.mubr.f32.mxu0 %v376
      %2046 = vmatmul.mubr.f32.gmra.mxu0 %v375
      %v2047 = vpop.f32.mrf.mxu0
      %v2048 = vadd.f32 %v1277, %v2047
      %v2049 = vpop.f32.mrf.mxu0
      %v2050 = vadd.f32 %v1279, %v2049
      %2051 = vdwg.mxu0
      %2052 = vmatprep.subr.mxu0 %v470
      %2053 = vmatpush1.msra.mxu0 %v469
      %2054 = vmatprep.subr.mxu0 %v464
      %2055 = vmatpush1.msra.mxu0 %v463
      %2056 = vmatprep.subr.mxu0 %v458
      %2057 = vmatpush1.msra.mxu0 %v457
      %2058 = vmatprep.subr.mxu0 %v452
      %2059 = vmatpush1.msra.mxu0 %v451
      %2060 = vmatprep.subr.mxu0 %v446
      %2061 = vmatpush1.msra.mxu0 %v445
      %2062 = vmatprep.subr.mxu0 %v440
      %2063 = vmatpush1.msra.mxu0 %v439
      %2064 = vmatprep.subr.mxu0 %v434
      %2065 = vmatpush1.msra.mxu0 %v433
      %2066 = vmatprep.subr.mxu0 %v428
      %2067 = vmatpush1.msra.mxu0 %v427
      %2068 = vmatprep.subr.mxu0 %v422
      %2069 = vmatpush1.msra.mxu0 %v421
      %2070 = vmatprep.subr.mxu0 %v416
      %2071 = vmatpush1.msra.mxu0 %v415
      %2072 = vmatprep.subr.mxu0 %v410
      %2073 = vmatpush1.msra.mxu0 %v409
      %2074 = vmatprep.subr.mxu0 %v404
      %2075 = vmatpush1.msra.mxu0 %v403
      %2076 = vmatprep.subr.mxu0 %v398
      %2077 = vmatpush1.msra.mxu0 %v397
      %2078 = vmatprep.subr.mxu0 %v392
      %2079 = vmatpush1.msra.mxu0 %v391
      %2080 = vmatprep.subr.mxu0 %v386
      %2081 = vmatpush1.msra.mxu0 %v385
      %2082 = vmatprep.subr.mxu0 %v380
      %2083 = vmatpush1.msra.mxu0 %v379
      %2084 = vmatprep.subr.mxu0 %v566
      %2085 = vmatpush2.msra.mxu0 %v565
      %2086 = vmatprep.subr.mxu0 %v560
      %2087 = vmatpush2.msra.mxu0 %v559
      %2088 = vmatprep.subr.mxu0 %v554
      %2089 = vmatpush2.msra.mxu0 %v553
      %2090 = vmatprep.subr.mxu0 %v548
      %2091 = vmatpush2.msra.mxu0 %v547
      %2092 = vmatprep.subr.mxu0 %v542
      %2093 = vmatpush2.msra.mxu0 %v541
      %2094 = vmatprep.subr.mxu0 %v536
      %2095 = vmatpush2.msra.mxu0 %v535
      %2096 = vmatprep.subr.mxu0 %v530
      %2097 = vmatpush2.msra.mxu0 %v529
      %2098 = vmatprep.subr.mxu0 %v524
      %2099 = vmatpush2.msra.mxu0 %v523
      %2100 = vmatprep.subr.mxu0 %v518
      %2101 = vmatpush2.msra.mxu0 %v517
      %2102 = vmatprep.subr.mxu0 %v512
      %2103 = vmatpush2.msra.mxu0 %v511
      %2104 = vmatprep.subr.mxu0 %v506
      %2105 = vmatpush2.msra.mxu0 %v505
      %2106 = vmatprep.subr.mxu0 %v500
      %2107 = vmatpush2.msra.mxu0 %v499
      %2108 = vmatprep.subr.mxu0 %v494
      %2109 = vmatpush2.msra.mxu0 %v493
      %2110 = vmatprep.subr.mxu0 %v488
      %2111 = vmatpush2.msra.mxu0 %v487
      %2112 = vmatprep.subr.mxu0 %v482
      %2113 = vmatpush2.msra.mxu0 %v481
      %2114 = vmatprep.subr.mxu0 %v476
      %2115 = vmatpush2.msra.mxu0 %v475
      %2116 = vmatprep.mubr.f32.mxu0 %v314
      %2117 = vmatmul.mubr.f32.gmra.mxu0 %v313
      %v2118 = vpop.f32.mrf.mxu0
      %v2119 = vadd.f32 %v1348, %v2118
      %v2120 = vpop.f32.mrf.mxu0
      %v2121 = vadd.f32 %v1350, %v2120
      %2122 = vmatprep.mubr.f32.mxu0 %v316
      %2123 = vmatmul.mubr.f32.gmra.mxu0 %v315
      %v2124 = vpop.f32.mrf.mxu0
      %v2125 = vadd.f32 %v1354, %v2124
      %v2126 = vpop.f32.mrf.mxu0
      %v2127 = vadd.f32 %v1356, %v2126
      %2128 = vmatprep.mubr.f32.mxu0 %v318
      %2129 = vmatmul.mubr.f32.gmra.mxu0 %v317
      %v2130 = vpop.f32.mrf.mxu0
      %v2131 = vadd.f32 %v1360, %v2130
      %v2132 = vpop.f32.mrf.mxu0
      %v2133 = vadd.f32 %v1362, %v2132
      %2134 = vmatprep.mubr.f32.mxu0 %v320
      %2135 = vmatmul.mubr.f32.gmra.mxu0 %v319
      %v2136 = vpop.f32.mrf.mxu0
      %v2137 = vadd.f32 %v1366, %v2136
      %v2138 = vpop.f32.mrf.mxu0
      %v2139 = vadd.f32 %v1368, %v2138
      %2140 = vmatprep.mubr.f32.mxu0 %v322
      %2141 = vmatmul.mubr.f32.gmra.mxu0 %v321
      %v2142 = vpop.f32.mrf.mxu0
      %v2143 = vadd.f32 %v1372, %v2142
      %v2144 = vpop.f32.mrf.mxu0
      %v2145 = vadd.f32 %v1374, %v2144
      %2146 = vmatprep.mubr.f32.mxu0 %v324
      %2147 = vmatmul.mubr.f32.gmra.mxu0 %v323
      %v2148 = vpop.f32.mrf.mxu0
      %v2149 = vadd.f32 %v1378, %v2148
      %v2150 = vpop.f32.mrf.mxu0
      %v2151 = vadd.f32 %v1380, %v2150
      %2152 = vmatprep.mubr.f32.mxu0 %v326
      %2153 = vmatmul.mubr.f32.gmra.mxu0 %v325
      %v2154 = vpop.f32.mrf.mxu0
      %v2155 = vadd.f32 %v1384, %v2154
      %v2156 = vpop.f32.mrf.mxu0
      %v2157 = vadd.f32 %v1386, %v2156
      %2158 = vmatprep.mubr.f32.mxu0 %v328
      %2159 = vmatmul.mubr.f32.gmra.mxu0 %v327
      %v2160 = vpop.f32.mrf.mxu0
      %v2161 = vadd.f32 %v1390, %v2160
      %v2162 = vpop.f32.mrf.mxu0
      %v2163 = vadd.f32 %v1392, %v2162
      %2164 = vmatprep.mubr.f32.mxu0 %v330
      %2165 = vmatmul.mubr.f32.gmra.mxu0 %v329
      %v2166 = vpop.f32.mrf.mxu0
      %v2167 = vadd.f32 %v1396, %v2166
      %v2168 = vpop.f32.mrf.mxu0
      %v2169 = vadd.f32 %v1398, %v2168
      %2170 = vmatprep.mubr.f32.mxu0 %v332
      %2171 = vmatmul.mubr.f32.gmra.mxu0 %v331
      %v2172 = vpop.f32.mrf.mxu0
      %v2173 = vadd.f32 %v1402, %v2172
      %v2174 = vpop.f32.mrf.mxu0
      %v2175 = vadd.f32 %v1404, %v2174
      %2176 = vmatprep.mubr.f32.mxu0 %v334
      %2177 = vmatmul.mubr.f32.gmra.mxu0 %v333
      %v2178 = vpop.f32.mrf.mxu0
      %v2179 = vadd.f32 %v1408, %v2178
      %v2180 = vpop.f32.mrf.mxu0
      %v2181 = vadd.f32 %v1410, %v2180
      %2182 = vmatprep.mubr.f32.mxu0 %v336
      %2183 = vmatmul.mubr.f32.gmra.mxu0 %v335
      %v2184 = vpop.f32.mrf.mxu0
      %v2185 = vadd.f32 %v1414, %v2184
      %v2186 = vpop.f32.mrf.mxu0
      %v2187 = vadd.f32 %v1416, %v2186
      %2188 = vmatprep.mubr.f32.mxu0 %v338
      %2189 = vmatmul.mubr.f32.gmra.mxu0 %v337
      %v2190 = vpop.f32.mrf.mxu0
      %v2191 = vadd.f32 %v1420, %v2190
      %v2192 = vpop.f32.mrf.mxu0
      %v2193 = vadd.f32 %v1422, %v2192
      %2194 = vmatprep.mubr.f32.mxu0 %v340
      %2195 = vmatmul.mubr.f32.gmra.mxu0 %v339
      %v2196 = vpop.f32.mrf.mxu0
      %v2197 = vadd.f32 %v1426, %v2196
      %v2198 = vpop.f32.mrf.mxu0
      %v2199 = vadd.f32 %v1428, %v2198
      %2200 = vmatprep.mubr.f32.mxu0 %v342
      %2201 = vmatmul.mubr.f32.gmra.mxu0 %v341
      %v2202 = vpop.f32.mrf.mxu0
      %v2203 = vadd.f32 %v1432, %v2202
      %v2204 = vpop.f32.mrf.mxu0
      %v2205 = vadd.f32 %v1434, %v2204
      %2206 = vmatprep.mubr.f32.mxu0 %v344
      %2207 = vmatmul.mubr.f32.gmra.mxu0 %v343
      %v2208 = vpop.f32.mrf.mxu0
      %v2209 = vadd.f32 %v1438, %v2208
      %v2210 = vpop.f32.mrf.mxu0
      %v2211 = vadd.f32 %v1440, %v2210
      %2212 = vmatprep.mubr.f32.mxu0 %v346
      %2213 = vmatmul.mubr.f32.gmra.mxu0 %v345
      %v2214 = vpop.f32.mrf.mxu0
      %v2215 = vadd.f32 %v1444, %v2214
      %v2216 = vpop.f32.mrf.mxu0
      %v2217 = vadd.f32 %v1446, %v2216
      %2218 = vmatprep.mubr.f32.mxu0 %v348
      %2219 = vmatmul.mubr.f32.gmra.mxu0 %v347
      %v2220 = vpop.f32.mrf.mxu0
      %v2221 = vadd.f32 %v1450, %v2220
      %v2222 = vpop.f32.mrf.mxu0
      %v2223 = vadd.f32 %v1452, %v2222
      %2224 = vmatprep.mubr.f32.mxu0 %v350
      %2225 = vmatmul.mubr.f32.gmra.mxu0 %v349
      %v2226 = vpop.f32.mrf.mxu0
      %v2227 = vadd.f32 %v1456, %v2226
      %v2228 = vpop.f32.mrf.mxu0
      %v2229 = vadd.f32 %v1458, %v2228
      %2230 = vmatprep.mubr.f32.mxu0 %v352
      %2231 = vmatmul.mubr.f32.gmra.mxu0 %v351
      %v2232 = vpop.f32.mrf.mxu0
      %v2233 = vadd.f32 %v1462, %v2232
      %v2234 = vpop.f32.mrf.mxu0
      %v2235 = vadd.f32 %v1464, %v2234
      %2236 = vmatprep.mubr.f32.mxu0 %v354
      %2237 = vmatmul.mubr.f32.gmra.mxu0 %v353
      %v2238 = vpop.f32.mrf.mxu0
      %v2239 = vadd.f32 %v1468, %v2238
      %v2240 = vpop.f32.mrf.mxu0
      %v2241 = vadd.f32 %v1470, %v2240
      %2242 = vmatprep.mubr.f32.mxu0 %v356
      %2243 = vmatmul.mubr.f32.gmra.mxu0 %v355
      %v2244 = vpop.f32.mrf.mxu0
      %v2245 = vadd.f32 %v1474, %v2244
      %v2246 = vpop.f32.mrf.mxu0
      %v2247 = vadd.f32 %v1476, %v2246
      %2248 = vmatprep.mubr.f32.mxu0 %v358
      %2249 = vmatmul.mubr.f32.gmra.mxu0 %v357
      %v2250 = vpop.f32.mrf.mxu0
      %v2251 = vadd.f32 %v1480, %v2250
      %v2252 = vpop.f32.mrf.mxu0
      %v2253 = vadd.f32 %v1482, %v2252
      %2254 = vmatprep.mubr.f32.mxu0 %v360
      %2255 = vmatmul.mubr.f32.gmra.mxu0 %v359
      %v2256 = vpop.f32.mrf.mxu0
      %v2257 = vadd.f32 %v1486, %v2256
      %v2258 = vpop.f32.mrf.mxu0
      %v2259 = vadd.f32 %v1488, %v2258
      %2260 = vmatprep.mubr.f32.mxu0 %v362
      %2261 = vmatmul.mubr.f32.gmra.mxu0 %v361
      %v2262 = vpop.f32.mrf.mxu0
      %v2263 = vadd.f32 %v1492, %v2262
      %v2264 = vpop.f32.mrf.mxu0
      %v2265 = vadd.f32 %v1494, %v2264
      %2266 = vmatprep.mubr.f32.mxu0 %v364
      %2267 = vmatmul.mubr.f32.gmra.mxu0 %v363
      %v2268 = vpop.f32.mrf.mxu0
      %v2269 = vadd.f32 %v1498, %v2268
      %v2270 = vpop.f32.mrf.mxu0
      %v2271 = vadd.f32 %v1500, %v2270
      %2272 = vmatprep.mubr.f32.mxu0 %v366
      %2273 = vmatmul.mubr.f32.gmra.mxu0 %v365
      %v2274 = vpop.f32.mrf.mxu0
      %v2275 = vadd.f32 %v1504, %v2274
      %v2276 = vpop.f32.mrf.mxu0
      %v2277 = vadd.f32 %v1506, %v2276
      %2278 = vmatprep.mubr.f32.mxu0 %v368
      %2279 = vmatmul.mubr.f32.gmra.mxu0 %v367
      %v2280 = vpop.f32.mrf.mxu0
      %v2281 = vadd.f32 %v1510, %v2280
      %v2282 = vpop.f32.mrf.mxu0
      %v2283 = vadd.f32 %v1512, %v2282
      %2284 = vmatprep.mubr.f32.mxu0 %v370
      %2285 = vmatmul.mubr.f32.gmra.mxu0 %v369
      %v2286 = vpop.f32.mrf.mxu0
      %v2287 = vadd.f32 %v1516, %v2286
      %v2288 = vpop.f32.mrf.mxu0
      %v2289 = vadd.f32 %v1518, %v2288
      %2290 = vmatprep.mubr.f32.mxu0 %v372
      %2291 = vmatmul.mubr.f32.gmra.mxu0 %v371
      %v2292 = vpop.f32.mrf.mxu0
      %v2293 = vadd.f32 %v1522, %v2292
      %v2294 = vpop.f32.mrf.mxu0
      %v2295 = vadd.f32 %v1524, %v2294
      %2296 = vmatprep.mubr.f32.mxu0 %v374
      %2297 = vmatmul.mubr.f32.gmra.mxu0 %v373
      %v2298 = vpop.f32.mrf.mxu0
      %v2299 = vadd.f32 %v1528, %v2298
      %v2300 = vpop.f32.mrf.mxu0
      %v2301 = vadd.f32 %v1530, %v2300
      %2302 = vmatprep.mubr.f32.mxu0 %v376
      %2303 = vmatmul.mubr.f32.gmra.mxu0 %v375
      %v2304 = vpop.f32.mrf.mxu0
      %v2305 = vadd.f32 %v1534, %v2304
      %v2306 = vpop.f32.mrf.mxu0
      %v2307 = vadd.f32 %v1536, %v2306
      %2308 = vdwg.mxu0
      %2309 = vmatprep.subr.mxu0 %v472
      %2310 = vmatpush1.msra.mxu0 %v471
      %2311 = vmatprep.subr.mxu0 %v466
      %2312 = vmatpush1.msra.mxu0 %v465
      %2313 = vmatprep.subr.mxu0 %v460
      %2314 = vmatpush1.msra.mxu0 %v459
      %2315 = vmatprep.subr.mxu0 %v454
      %2316 = vmatpush1.msra.mxu0 %v453
      %2317 = vmatprep.subr.mxu0 %v448
      %2318 = vmatpush1.msra.mxu0 %v447
      %2319 = vmatprep.subr.mxu0 %v442
      %2320 = vmatpush1.msra.mxu0 %v441
      %2321 = vmatprep.subr.mxu0 %v436
      %2322 = vmatpush1.msra.mxu0 %v435
      %2323 = vmatprep.subr.mxu0 %v430
      %2324 = vmatpush1.msra.mxu0 %v429
      %2325 = vmatprep.subr.mxu0 %v424
      %2326 = vmatpush1.msra.mxu0 %v423
      %2327 = vmatprep.subr.mxu0 %v418
      %2328 = vmatpush1.msra.mxu0 %v417
      %2329 = vmatprep.subr.mxu0 %v412
      %2330 = vmatpush1.msra.mxu0 %v411
      %2331 = vmatprep.subr.mxu0 %v406
      %2332 = vmatpush1.msra.mxu0 %v405
      %2333 = vmatprep.subr.mxu0 %v400
      %2334 = vmatpush1.msra.mxu0 %v399
      %2335 = vmatprep.subr.mxu0 %v394
      %2336 = vmatpush1.msra.mxu0 %v393
      %2337 = vmatprep.subr.mxu0 %v388
      %2338 = vmatpush1.msra.mxu0 %v387
      %2339 = vmatprep.subr.mxu0 %v382
      %2340 = vmatpush1.msra.mxu0 %v381
      %2341 = vmatprep.subr.mxu0 %v568
      %2342 = vmatpush2.msra.mxu0 %v567
      %2343 = vmatprep.subr.mxu0 %v562
      %2344 = vmatpush2.msra.mxu0 %v561
      %2345 = vmatprep.subr.mxu0 %v556
      %2346 = vmatpush2.msra.mxu0 %v555
      %2347 = vmatprep.subr.mxu0 %v550
      %2348 = vmatpush2.msra.mxu0 %v549
      %2349 = vmatprep.subr.mxu0 %v544
      %2350 = vmatpush2.msra.mxu0 %v543
      %2351 = vmatprep.subr.mxu0 %v538
      %2352 = vmatpush2.msra.mxu0 %v537
      %2353 = vmatprep.subr.mxu0 %v532
      %2354 = vmatpush2.msra.mxu0 %v531
      %2355 = vmatprep.subr.mxu0 %v526
      %2356 = vmatpush2.msra.mxu0 %v525
      %2357 = vmatprep.subr.mxu0 %v520
      %2358 = vmatpush2.msra.mxu0 %v519
      %2359 = vmatprep.subr.mxu0 %v514
      %2360 = vmatpush2.msra.mxu0 %v513
      %2361 = vmatprep.subr.mxu0 %v508
      %2362 = vmatpush2.msra.mxu0 %v507
      %2363 = vmatprep.subr.mxu0 %v502
      %2364 = vmatpush2.msra.mxu0 %v501
      %2365 = vmatprep.subr.mxu0 %v496
      %2366 = vmatpush2.msra.mxu0 %v495
      %2367 = vmatprep.subr.mxu0 %v490
      %2368 = vmatpush2.msra.mxu0 %v489
      %2369 = vmatprep.subr.mxu0 %v484
      %2370 = vmatpush2.msra.mxu0 %v483
      %2371 = vmatprep.subr.mxu0 %v478
      %2372 = vmatpush2.msra.mxu0 %v477
      %2373 = vmatprep.mubr.f32.mxu0 %v314
      %2374 = vmatmul.mubr.f32.gmra.mxu0 %v313
      %v2375 = vpop.f32.mrf.mxu0
      %v2376 = vadd.f32 %v1605, %v2375
      %v2377 = vpop.f32.mrf.mxu0
      %v2378 = vadd.f32 %v1607, %v2377
      %2379 = vmatprep.mubr.f32.mxu0 %v316
      %2380 = vmatmul.mubr.f32.gmra.mxu0 %v315
      %v2381 = vpop.f32.mrf.mxu0
      %v2382 = vadd.f32 %v1611, %v2381
      %v2383 = vpop.f32.mrf.mxu0
      %v2384 = vadd.f32 %v1613, %v2383
      %2385 = vmatprep.mubr.f32.mxu0 %v318
      %2386 = vmatmul.mubr.f32.gmra.mxu0 %v317
      %v2387 = vpop.f32.mrf.mxu0
      %v2388 = vadd.f32 %v1617, %v2387
      %v2389 = vpop.f32.mrf.mxu0
      %v2390 = vadd.f32 %v1619, %v2389
      %2391 = vmatprep.mubr.f32.mxu0 %v320
      %2392 = vmatmul.mubr.f32.gmra.mxu0 %v319
      %v2393 = vpop.f32.mrf.mxu0
      %v2394 = vadd.f32 %v1623, %v2393
      %v2395 = vpop.f32.mrf.mxu0
      %v2396 = vadd.f32 %v1625, %v2395
      %2397 = vmatprep.mubr.f32.mxu0 %v322
      %2398 = vmatmul.mubr.f32.gmra.mxu0 %v321
      %v2399 = vpop.f32.mrf.mxu0
      %v2400 = vadd.f32 %v1629, %v2399
      %v2401 = vpop.f32.mrf.mxu0
      %v2402 = vadd.f32 %v1631, %v2401
      %2403 = vmatprep.mubr.f32.mxu0 %v324
      %2404 = vmatmul.mubr.f32.gmra.mxu0 %v323
      %v2405 = vpop.f32.mrf.mxu0
      %v2406 = vadd.f32 %v1635, %v2405
      %v2407 = vpop.f32.mrf.mxu0
      %v2408 = vadd.f32 %v1637, %v2407
      %2409 = vmatprep.mubr.f32.mxu0 %v326
      %2410 = vmatmul.mubr.f32.gmra.mxu0 %v325
      %v2411 = vpop.f32.mrf.mxu0
      %v2412 = vadd.f32 %v1641, %v2411
      %v2413 = vpop.f32.mrf.mxu0
      %v2414 = vadd.f32 %v1643, %v2413
      %2415 = vmatprep.mubr.f32.mxu0 %v328
      %2416 = vmatmul.mubr.f32.gmra.mxu0 %v327
      %v2417 = vpop.f32.mrf.mxu0
      %v2418 = vadd.f32 %v1647, %v2417
      %v2419 = vpop.f32.mrf.mxu0
      %v2420 = vadd.f32 %v1649, %v2419
      %2421 = vmatprep.mubr.f32.mxu0 %v330
      %2422 = vmatmul.mubr.f32.gmra.mxu0 %v329
      %v2423 = vpop.f32.mrf.mxu0
      %v2424 = vadd.f32 %v1653, %v2423
      %v2425 = vpop.f32.mrf.mxu0
      %v2426 = vadd.f32 %v1655, %v2425
      %2427 = vmatprep.mubr.f32.mxu0 %v332
      %2428 = vmatmul.mubr.f32.gmra.mxu0 %v331
      %v2429 = vpop.f32.mrf.mxu0
      %v2430 = vadd.f32 %v1659, %v2429
      %v2431 = vpop.f32.mrf.mxu0
      %v2432 = vadd.f32 %v1661, %v2431
      %2433 = vmatprep.mubr.f32.mxu0 %v334
      %2434 = vmatmul.mubr.f32.gmra.mxu0 %v333
      %v2435 = vpop.f32.mrf.mxu0
      %v2436 = vadd.f32 %v1665, %v2435
      %v2437 = vpop.f32.mrf.mxu0
      %v2438 = vadd.f32 %v1667, %v2437
      %2439 = vmatprep.mubr.f32.mxu0 %v336
      %2440 = vmatmul.mubr.f32.gmra.mxu0 %v335
      %v2441 = vpop.f32.mrf.mxu0
      %v2442 = vadd.f32 %v1671, %v2441
      %v2443 = vpop.f32.mrf.mxu0
      %v2444 = vadd.f32 %v1673, %v2443
      %2445 = vmatprep.mubr.f32.mxu0 %v338
      %2446 = vmatmul.mubr.f32.gmra.mxu0 %v337
      %v2447 = vpop.f32.mrf.mxu0
      %v2448 = vadd.f32 %v1677, %v2447
      %v2449 = vpop.f32.mrf.mxu0
      %v2450 = vadd.f32 %v1679, %v2449
      %2451 = vmatprep.mubr.f32.mxu0 %v340
      %2452 = vmatmul.mubr.f32.gmra.mxu0 %v339
      %v2453 = vpop.f32.mrf.mxu0
      %v2454 = vadd.f32 %v1683, %v2453
      %v2455 = vpop.f32.mrf.mxu0
      %v2456 = vadd.f32 %v1685, %v2455
      %2457 = vmatprep.mubr.f32.mxu0 %v342
      %2458 = vmatmul.mubr.f32.gmra.mxu0 %v341
      %v2459 = vpop.f32.mrf.mxu0
      %v2460 = vadd.f32 %v1689, %v2459
      %v2461 = vpop.f32.mrf.mxu0
      %v2462 = vadd.f32 %v1691, %v2461
      %2463 = vmatprep.mubr.f32.mxu0 %v344
      %2464 = vmatmul.mubr.f32.gmra.mxu0 %v343
      %v2465 = vpop.f32.mrf.mxu0
      %v2466 = vadd.f32 %v1695, %v2465
      %v2467 = vpop.f32.mrf.mxu0
      %v2468 = vadd.f32 %v1697, %v2467
      %2469 = vmatprep.mubr.f32.mxu0 %v346
      %2470 = vmatmul.mubr.f32.gmra.mxu0 %v345
      %v2471 = vpop.f32.mrf.mxu0
      %v2472 = vadd.f32 %v1701, %v2471
      %v2473 = vpop.f32.mrf.mxu0
      %v2474 = vadd.f32 %v1703, %v2473
      %2475 = vmatprep.mubr.f32.mxu0 %v348
      %2476 = vmatmul.mubr.f32.gmra.mxu0 %v347
      %v2477 = vpop.f32.mrf.mxu0
      %v2478 = vadd.f32 %v1707, %v2477
      %v2479 = vpop.f32.mrf.mxu0
      %v2480 = vadd.f32 %v1709, %v2479
      %2481 = vmatprep.mubr.f32.mxu0 %v350
      %2482 = vmatmul.mubr.f32.gmra.mxu0 %v349
      %v2483 = vpop.f32.mrf.mxu0
      %v2484 = vadd.f32 %v1713, %v2483
      %v2485 = vpop.f32.mrf.mxu0
      %v2486 = vadd.f32 %v1715, %v2485
      %2487 = vmatprep.mubr.f32.mxu0 %v352
      %2488 = vmatmul.mubr.f32.gmra.mxu0 %v351
      %v2489 = vpop.f32.mrf.mxu0
      %v2490 = vadd.f32 %v1719, %v2489
      %v2491 = vpop.f32.mrf.mxu0
      %v2492 = vadd.f32 %v1721, %v2491
      %2493 = vmatprep.mubr.f32.mxu0 %v354
      %2494 = vmatmul.mubr.f32.gmra.mxu0 %v353
      %v2495 = vpop.f32.mrf.mxu0
      %v2496 = vadd.f32 %v1725, %v2495
      %v2497 = vpop.f32.mrf.mxu0
      %v2498 = vadd.f32 %v1727, %v2497
      %2499 = vmatprep.mubr.f32.mxu0 %v356
      %2500 = vmatmul.mubr.f32.gmra.mxu0 %v355
      %v2501 = vpop.f32.mrf.mxu0
      %v2502 = vadd.f32 %v1731, %v2501
      %v2503 = vpop.f32.mrf.mxu0
      %v2504 = vadd.f32 %v1733, %v2503
      %2505 = vmatprep.mubr.f32.mxu0 %v358
      %2506 = vmatmul.mubr.f32.gmra.mxu0 %v357
      %v2507 = vpop.f32.mrf.mxu0
      %v2508 = vadd.f32 %v1737, %v2507
      %v2509 = vpop.f32.mrf.mxu0
      %v2510 = vadd.f32 %v1739, %v2509
      %2511 = vmatprep.mubr.f32.mxu0 %v360
      %2512 = vmatmul.mubr.f32.gmra.mxu0 %v359
      %v2513 = vpop.f32.mrf.mxu0
      %v2514 = vadd.f32 %v1743, %v2513
      %v2515 = vpop.f32.mrf.mxu0
      %v2516 = vadd.f32 %v1745, %v2515
      %2517 = vmatprep.mubr.f32.mxu0 %v362
      %2518 = vmatmul.mubr.f32.gmra.mxu0 %v361
      %v2519 = vpop.f32.mrf.mxu0
      %v2520 = vadd.f32 %v1749, %v2519
      %v2521 = vpop.f32.mrf.mxu0
      %v2522 = vadd.f32 %v1751, %v2521
      %2523 = vmatprep.mubr.f32.mxu0 %v364
      %2524 = vmatmul.mubr.f32.gmra.mxu0 %v363
      %v2525 = vpop.f32.mrf.mxu0
      %v2526 = vadd.f32 %v1755, %v2525
      %v2527 = vpop.f32.mrf.mxu0
      %v2528 = vadd.f32 %v1757, %v2527
      %2529 = vmatprep.mubr.f32.mxu0 %v366
      %2530 = vmatmul.mubr.f32.gmra.mxu0 %v365
      %v2531 = vpop.f32.mrf.mxu0
      %v2532 = vadd.f32 %v1761, %v2531
      %v2533 = vpop.f32.mrf.mxu0
      %v2534 = vadd.f32 %v1763, %v2533
      %2535 = vmatprep.mubr.f32.mxu0 %v368
      %2536 = vmatmul.mubr.f32.gmra.mxu0 %v367
      %v2537 = vpop.f32.mrf.mxu0
      %v2538 = vadd.f32 %v1767, %v2537
      %v2539 = vpop.f32.mrf.mxu0
      %v2540 = vadd.f32 %v1769, %v2539
      %2541 = vmatprep.mubr.f32.mxu0 %v370
      %2542 = vmatmul.mubr.f32.gmra.mxu0 %v369
      %v2543 = vpop.f32.mrf.mxu0
      %v2544 = vadd.f32 %v1773, %v2543
      %v2545 = vpop.f32.mrf.mxu0
      %v2546 = vadd.f32 %v1775, %v2545
      %2547 = vmatprep.mubr.f32.mxu0 %v372
      %2548 = vmatmul.mubr.f32.gmra.mxu0 %v371
      %v2549 = vpop.f32.mrf.mxu0
      %v2550 = vadd.f32 %v1779, %v2549
      %v2551 = vpop.f32.mrf.mxu0
      %v2552 = vadd.f32 %v1781, %v2551
      %2553 = vmatprep.mubr.f32.mxu0 %v374
      %2554 = vmatmul.mubr.f32.gmra.mxu0 %v373
      %v2555 = vpop.f32.mrf.mxu0
      %v2556 = vadd.f32 %v1785, %v2555
      %v2557 = vpop.f32.mrf.mxu0
      %v2558 = vadd.f32 %v1787, %v2557
      %2559 = vmatprep.mubr.f32.mxu0 %v376
      %2560 = vmatmul.mubr.f32.gmra.mxu0 %v375
      %v2561 = vpop.f32.mrf.mxu0
      %v2562 = vadd.f32 %v1791, %v2561
      %v2563 = vpop.f32.mrf.mxu0
      %v2564 = vadd.f32 %v1793, %v2563
      %2565 = vdwg.mxu0
      %v2566 = vld [vmem:[%s2 + $0xc00] sm:$0xff]
      %v2567 = vld [vmem:[%s2 + $0xc08] sm:$0xff]
      %v2568 = vld [vmem:[%s2 + $0xc10] sm:$0xff]
      %v2569 = vld [vmem:[%s2 + $0xc18] sm:$0xff]
      %v2570 = vld [vmem:[%s2 + $0xc20] sm:$0xff]
      %v2571 = vld [vmem:[%s2 + $0xc28] sm:$0xff]
      %v2572 = vld [vmem:[%s2 + $0xc30] sm:$0xff]
      %v2573 = vld [vmem:[%s2 + $0xc38] sm:$0xff]
      %v2574 = vld [vmem:[%s2 + $0xc40] sm:$0xff]
      %v2575 = vld [vmem:[%s2 + $0xc48] sm:$0xff]
      %v2576 = vld [vmem:[%s2 + $0xc50] sm:$0xff]
      %v2577 = vld [vmem:[%s2 + $0xc58] sm:$0xff]
      %v2578 = vld [vmem:[%s2 + $0xc60] sm:$0xff]
      %v2579 = vld [vmem:[%s2 + $0xc68] sm:$0xff]
      %v2580 = vld [vmem:[%s2 + $0xc70] sm:$0xff]
      %v2581 = vld [vmem:[%s2 + $0xc78] sm:$0xff]
      %v2582 = vld [vmem:[%s2 + $0xc80] sm:$0xff]
      %v2583 = vld [vmem:[%s2 + $0xc88] sm:$0xff]
      %v2584 = vld [vmem:[%s2 + $0xc90] sm:$0xff]
      %v2585 = vld [vmem:[%s2 + $0xc98] sm:$0xff]
      %v2586 = vld [vmem:[%s2 + $0xca0] sm:$0xff]
      %v2587 = vld [vmem:[%s2 + $0xca8] sm:$0xff]
      %v2588 = vld [vmem:[%s2 + $0xcb0] sm:$0xff]
      %v2589 = vld [vmem:[%s2 + $0xcb8] sm:$0xff]
      %v2590 = vld [vmem:[%s2 + $0xcc0] sm:$0xff]
      %v2591 = vld [vmem:[%s2 + $0xcc8] sm:$0xff]
      %v2592 = vld [vmem:[%s2 + $0xcd0] sm:$0xff]
      %v2593 = vld [vmem:[%s2 + $0xcd8] sm:$0xff]
      %v2594 = vld [vmem:[%s2 + $0xce0] sm:$0xff]
      %v2595 = vld [vmem:[%s2 + $0xce8] sm:$0xff]
      %v2596 = vld [vmem:[%s2 + $0xcf0] sm:$0xff]
      %v2597 = vld [vmem:[%s2 + $0xcf8] sm:$0xff]
      %v2598 = vld [vmem:[%s2 + $0xd00] sm:$0xff]
      %v2599 = vld [vmem:[%s2 + $0xd08] sm:$0xff]
      %v2600 = vld [vmem:[%s2 + $0xd10] sm:$0xff]
      %v2601 = vld [vmem:[%s2 + $0xd18] sm:$0xff]
      %v2602 = vld [vmem:[%s2 + $0xd20] sm:$0xff]
      %v2603 = vld [vmem:[%s2 + $0xd28] sm:$0xff]
      %v2604 = vld [vmem:[%s2 + $0xd30] sm:$0xff]
      %v2605 = vld [vmem:[%s2 + $0xd38] sm:$0xff]
      %v2606 = vld [vmem:[%s2 + $0xd40] sm:$0xff]
      %v2607 = vld [vmem:[%s2 + $0xd48] sm:$0xff]
      %v2608 = vld [vmem:[%s2 + $0xd50] sm:$0xff]
      %v2609 = vld [vmem:[%s2 + $0xd58] sm:$0xff]
      %v2610 = vld [vmem:[%s2 + $0xd60] sm:$0xff]
      %v2611 = vld [vmem:[%s2 + $0xd68] sm:$0xff]
      %v2612 = vld [vmem:[%s2 + $0xd70] sm:$0xff]
      %v2613 = vld [vmem:[%s2 + $0xd78] sm:$0xff]
      %v2614 = vld [vmem:[%s2 + $0xd80] sm:$0xff]
      %v2615 = vld [vmem:[%s2 + $0xd88] sm:$0xff]
      %v2616 = vld [vmem:[%s2 + $0xd90] sm:$0xff]
      %v2617 = vld [vmem:[%s2 + $0xd98] sm:$0xff]
      %v2618 = vld [vmem:[%s2 + $0xda0] sm:$0xff]
      %v2619 = vld [vmem:[%s2 + $0xda8] sm:$0xff]
      %v2620 = vld [vmem:[%s2 + $0xdb0] sm:$0xff]
      %v2621 = vld [vmem:[%s2 + $0xdb8] sm:$0xff]
      %v2622 = vld [vmem:[%s2 + $0xdc0] sm:$0xff]
      %v2623 = vld [vmem:[%s2 + $0xdc8] sm:$0xff]
      %v2624 = vld [vmem:[%s2 + $0xdd0] sm:$0xff]
      %v2625 = vld [vmem:[%s2 + $0xdd8] sm:$0xff]
      %v2626 = vld [vmem:[%s2 + $0xde0] sm:$0xff]
      %v2627 = vld [vmem:[%s2 + $0xde8] sm:$0xff]
      %v2628 = vld [vmem:[%s2 + $0xdf0] sm:$0xff]
      %v2629 = vld [vmem:[%s2 + $0xdf8] sm:$0xff]
      %v2630 = vld [vmem:[%s2 + $0xe00] sm:$0xff]
      %v2631 = vld [vmem:[%s2 + $0xe08] sm:$0xff]
      %v2632 = vld [vmem:[%s2 + $0xe10] sm:$0xff]
      %v2633 = vld [vmem:[%s2 + $0xe18] sm:$0xff]
      %v2634 = vld [vmem:[%s2 + $0xe20] sm:$0xff]
      %v2635 = vld [vmem:[%s2 + $0xe28] sm:$0xff]
      %v2636 = vld [vmem:[%s2 + $0xe30] sm:$0xff]
      %v2637 = vld [vmem:[%s2 + $0xe38] sm:$0xff]
      %v2638 = vld [vmem:[%s2 + $0xe40] sm:$0xff]
      %v2639 = vld [vmem:[%s2 + $0xe48] sm:$0xff]
      %v2640 = vld [vmem:[%s2 + $0xe50] sm:$0xff]
      %v2641 = vld [vmem:[%s2 + $0xe58] sm:$0xff]
      %v2642 = vld [vmem:[%s2 + $0xe60] sm:$0xff]
      %v2643 = vld [vmem:[%s2 + $0xe68] sm:$0xff]
      %v2644 = vld [vmem:[%s2 + $0xe70] sm:$0xff]
      %v2645 = vld [vmem:[%s2 + $0xe78] sm:$0xff]
      %v2646 = vld [vmem:[%s2 + $0xe80] sm:$0xff]
      %v2647 = vld [vmem:[%s2 + $0xe88] sm:$0xff]
      %v2648 = vld [vmem:[%s2 + $0xe90] sm:$0xff]
      %v2649 = vld [vmem:[%s2 + $0xe98] sm:$0xff]
      %v2650 = vld [vmem:[%s2 + $0xea0] sm:$0xff]
      %v2651 = vld [vmem:[%s2 + $0xea8] sm:$0xff]
      %v2652 = vld [vmem:[%s2 + $0xeb0] sm:$0xff]
      %v2653 = vld [vmem:[%s2 + $0xeb8] sm:$0xff]
      %v2654 = vld [vmem:[%s2 + $0xec0] sm:$0xff]
      %v2655 = vld [vmem:[%s2 + $0xec8] sm:$0xff]
      %v2656 = vld [vmem:[%s2 + $0xed0] sm:$0xff]
      %v2657 = vld [vmem:[%s2 + $0xed8] sm:$0xff]
      %v2658 = vld [vmem:[%s2 + $0xee0] sm:$0xff]
      %v2659 = vld [vmem:[%s2 + $0xee8] sm:$0xff]
      %v2660 = vld [vmem:[%s2 + $0xef0] sm:$0xff]
      %v2661 = vld [vmem:[%s2 + $0xef8] sm:$0xff]
      %v2662 = vld [vmem:[%s2 + $0xf00] sm:$0xff]
      %v2663 = vld [vmem:[%s2 + $0xf08] sm:$0xff]
      %v2664 = vld [vmem:[%s2 + $0xf10] sm:$0xff]
      %v2665 = vld [vmem:[%s2 + $0xf18] sm:$0xff]
      %v2666 = vld [vmem:[%s2 + $0xf20] sm:$0xff]
      %v2667 = vld [vmem:[%s2 + $0xf28] sm:$0xff]
      %v2668 = vld [vmem:[%s2 + $0xf30] sm:$0xff]
      %v2669 = vld [vmem:[%s2 + $0xf38] sm:$0xff]
      %v2670 = vld [vmem:[%s2 + $0xf40] sm:$0xff]
      %v2671 = vld [vmem:[%s2 + $0xf48] sm:$0xff]
      %v2672 = vld [vmem:[%s2 + $0xf50] sm:$0xff]
      %v2673 = vld [vmem:[%s2 + $0xf58] sm:$0xff]
      %v2674 = vld [vmem:[%s2 + $0xf60] sm:$0xff]
      %v2675 = vld [vmem:[%s2 + $0xf68] sm:$0xff]
      %v2676 = vld [vmem:[%s2 + $0xf70] sm:$0xff]
      %v2677 = vld [vmem:[%s2 + $0xf78] sm:$0xff]
      %v2678 = vld [vmem:[%s2 + $0xf80] sm:$0xff]
      %v2679 = vld [vmem:[%s2 + $0xf88] sm:$0xff]
      %v2680 = vld [vmem:[%s2 + $0xf90] sm:$0xff]
      %v2681 = vld [vmem:[%s2 + $0xf98] sm:$0xff]
      %v2682 = vld [vmem:[%s2 + $0xfa0] sm:$0xff]
      %v2683 = vld [vmem:[%s2 + $0xfa8] sm:$0xff]
      %v2684 = vld [vmem:[%s2 + $0xfb0] sm:$0xff]
      %v2685 = vld [vmem:[%s2 + $0xfb8] sm:$0xff]
      %v2686 = vld [vmem:[%s2 + $0xfc0] sm:$0xff]
      %v2687 = vld [vmem:[%s2 + $0xfc8] sm:$0xff]
      %v2688 = vld [vmem:[%s2 + $0xfd0] sm:$0xff]
      %v2689 = vld [vmem:[%s2 + $0xfd8] sm:$0xff]
      %v2690 = vld [vmem:[%s2 + $0xfe0] sm:$0xff]
      %v2691 = vld [vmem:[%s2 + $0xfe8] sm:$0xff]
      %v2692 = vld [vmem:[%s2 + $0xff0] sm:$0xff]
      %v2693 = vld [vmem:[%s2 + $0xff8] sm:$0xff]
      %v2694 = vld [vmem:[%s2 + $0x1000] sm:$0xff]
      %v2695 = vld [vmem:[%s2 + $0x1008] sm:$0xff]
      %v2696 = vld [vmem:[%s2 + $0x1010] sm:$0xff]
      %v2697 = vld [vmem:[%s2 + $0x1018] sm:$0xff]
      %v2698 = vld [vmem:[%s2 + $0x1020] sm:$0xff]
      %v2699 = vld [vmem:[%s2 + $0x1028] sm:$0xff]
      %v2700 = vld [vmem:[%s2 + $0x1030] sm:$0xff]
      %v2701 = vld [vmem:[%s2 + $0x1038] sm:$0xff]
      %v2702 = vld [vmem:[%s2 + $0x1040] sm:$0xff]
      %v2703 = vld [vmem:[%s2 + $0x1048] sm:$0xff]
      %v2704 = vld [vmem:[%s2 + $0x1050] sm:$0xff]
      %v2705 = vld [vmem:[%s2 + $0x1058] sm:$0xff]
      %v2706 = vld [vmem:[%s2 + $0x1060] sm:$0xff]
      %v2707 = vld [vmem:[%s2 + $0x1068] sm:$0xff]
      %v2708 = vld [vmem:[%s2 + $0x1070] sm:$0xff]
      %v2709 = vld [vmem:[%s2 + $0x1078] sm:$0xff]
      %v2710 = vld [vmem:[%s2 + $0x1080] sm:$0xff]
      %v2711 = vld [vmem:[%s2 + $0x1088] sm:$0xff]
      %v2712 = vld [vmem:[%s2 + $0x1090] sm:$0xff]
      %v2713 = vld [vmem:[%s2 + $0x1098] sm:$0xff]
      %v2714 = vld [vmem:[%s2 + $0x10a0] sm:$0xff]
      %v2715 = vld [vmem:[%s2 + $0x10a8] sm:$0xff]
      %v2716 = vld [vmem:[%s2 + $0x10b0] sm:$0xff]
      %v2717 = vld [vmem:[%s2 + $0x10b8] sm:$0xff]
      %v2718 = vld [vmem:[%s2 + $0x10c0] sm:$0xff]
      %v2719 = vld [vmem:[%s2 + $0x10c8] sm:$0xff]
      %v2720 = vld [vmem:[%s2 + $0x10d0] sm:$0xff]
      %v2721 = vld [vmem:[%s2 + $0x10d8] sm:$0xff]
      %v2722 = vld [vmem:[%s2 + $0x10e0] sm:$0xff]
      %v2723 = vld [vmem:[%s2 + $0x10e8] sm:$0xff]
      %v2724 = vld [vmem:[%s2 + $0x10f0] sm:$0xff]
      %v2725 = vld [vmem:[%s2 + $0x10f8] sm:$0xff]
      %v2726 = vld [vmem:[%s2 + $0x1100] sm:$0xff]
      %v2727 = vld [vmem:[%s2 + $0x1108] sm:$0xff]
      %v2728 = vld [vmem:[%s2 + $0x1110] sm:$0xff]
      %v2729 = vld [vmem:[%s2 + $0x1118] sm:$0xff]
      %v2730 = vld [vmem:[%s2 + $0x1120] sm:$0xff]
      %v2731 = vld [vmem:[%s2 + $0x1128] sm:$0xff]
      %v2732 = vld [vmem:[%s2 + $0x1130] sm:$0xff]
      %v2733 = vld [vmem:[%s2 + $0x1138] sm:$0xff]
      %v2734 = vld [vmem:[%s2 + $0x1140] sm:$0xff]
      %v2735 = vld [vmem:[%s2 + $0x1148] sm:$0xff]
      %v2736 = vld [vmem:[%s2 + $0x1150] sm:$0xff]
      %v2737 = vld [vmem:[%s2 + $0x1158] sm:$0xff]
      %v2738 = vld [vmem:[%s2 + $0x1160] sm:$0xff]
      %v2739 = vld [vmem:[%s2 + $0x1168] sm:$0xff]
      %v2740 = vld [vmem:[%s2 + $0x1170] sm:$0xff]
      %v2741 = vld [vmem:[%s2 + $0x1178] sm:$0xff]
      %v2742 = vld [vmem:[%s2 + $0x1180] sm:$0xff]
      %v2743 = vld [vmem:[%s2 + $0x1188] sm:$0xff]
      %v2744 = vld [vmem:[%s2 + $0x1190] sm:$0xff]
      %v2745 = vld [vmem:[%s2 + $0x1198] sm:$0xff]
      %v2746 = vld [vmem:[%s2 + $0x11a0] sm:$0xff]
      %v2747 = vld [vmem:[%s2 + $0x11a8] sm:$0xff]
      %v2748 = vld [vmem:[%s2 + $0x11b0] sm:$0xff]
      %v2749 = vld [vmem:[%s2 + $0x11b8] sm:$0xff]
      %v2750 = vld [vmem:[%s2 + $0x11c0] sm:$0xff]
      %v2751 = vld [vmem:[%s2 + $0x11c8] sm:$0xff]
      %v2752 = vld [vmem:[%s2 + $0x11d0] sm:$0xff]
      %v2753 = vld [vmem:[%s2 + $0x11d8] sm:$0xff]
      %v2754 = vld [vmem:[%s2 + $0x11e0] sm:$0xff]
      %v2755 = vld [vmem:[%s2 + $0x11e8] sm:$0xff]
      %v2756 = vld [vmem:[%s2 + $0x11f0] sm:$0xff]
      %v2757 = vld [vmem:[%s2 + $0x11f8] sm:$0xff]
      %vm2758 = vcmask 1045504
      %v2759 = vrot.slane %v313, 2
      %v2760 = vrot.slane %v315, 2
      %v2761 = vsel %vm2758, %v2759, %v2760
      %v2762 = vrot.slane %v314, 2
      %v2763 = vrot.slane %v316, 2
      %v2764 = vsel %vm2758, %v2762, %v2763
      %v2765 = vrot.slane %v317, 2
      %v2766 = vsel %vm2758, %v2760, %v2765
      %v2767 = vrot.slane %v318, 2
      %v2768 = vsel %vm2758, %v2763, %v2767
      %v2769 = vrot.slane %v319, 2
      %v2770 = vsel %vm2758, %v2765, %v2769
      %v2771 = vrot.slane %v320, 2
      %v2772 = vsel %vm2758, %v2767, %v2771
      %v2773 = vrot.slane %v321, 2
      %v2774 = vsel %vm2758, %v2769, %v2773
      %v2775 = vrot.slane %v322, 2
      %v2776 = vsel %vm2758, %v2771, %v2775
      %v2777 = vrot.slane %v323, 2
      %v2778 = vsel %vm2758, %v2773, %v2777
      %v2779 = vrot.slane %v324, 2
      %v2780 = vsel %vm2758, %v2775, %v2779
      %v2781 = vrot.slane %v325, 2
      %v2782 = vsel %vm2758, %v2777, %v2781
      %v2783 = vrot.slane %v326, 2
      %v2784 = vsel %vm2758, %v2779, %v2783
      %v2785 = vrot.slane %v327, 2
      %v2786 = vsel %vm2758, %v2781, %v2785
      %v2787 = vrot.slane %v328, 2
      %v2788 = vsel %vm2758, %v2783, %v2787
      %v2789 = vrot.slane %v329, 2
      %v2790 = vsel %vm2758, %v2785, %v2789
      %v2791 = vrot.slane %v330, 2
      %v2792 = vsel %vm2758, %v2787, %v2791
      %v2793 = vrot.slane %v331, 2
      %v2794 = vsel %vm2758, %v2789, %v2793
      %v2795 = vrot.slane %v332, 2
      %v2796 = vsel %vm2758, %v2791, %v2795
      %v2797 = vrot.slane %v333, 2
      %v2798 = vsel %vm2758, %v2793, %v2797
      %v2799 = vrot.slane %v334, 2
      %v2800 = vsel %vm2758, %v2795, %v2799
      %v2801 = vrot.slane %v335, 2
      %v2802 = vsel %vm2758, %v2797, %v2801
      %v2803 = vrot.slane %v336, 2
      %v2804 = vsel %vm2758, %v2799, %v2803
      %v2805 = vrot.slane %v337, 2
      %v2806 = vsel %vm2758, %v2801, %v2805
      %v2807 = vrot.slane %v338, 2
      %v2808 = vsel %vm2758, %v2803, %v2807
      %v2809 = vrot.slane %v339, 2
      %v2810 = vsel %vm2758, %v2805, %v2809
      %v2811 = vrot.slane %v340, 2
      %v2812 = vsel %vm2758, %v2807, %v2811
      %v2813 = vrot.slane %v341, 2
      %v2814 = vsel %vm2758, %v2809, %v2813
      %v2815 = vrot.slane %v342, 2
      %v2816 = vsel %vm2758, %v2811, %v2815
      %v2817 = vrot.slane %v343, 2
      %v2818 = vsel %vm2758, %v2813, %v2817
      %v2819 = vrot.slane %v344, 2
      %v2820 = vsel %vm2758, %v2815, %v2819
      %v2821 = vrot.slane %v345, 2
      %v2822 = vsel %vm2758, %v2817, %v2821
      %v2823 = vrot.slane %v346, 2
      %v2824 = vsel %vm2758, %v2819, %v2823
      %v2825 = vrot.slane %v347, 2
      %v2826 = vsel %vm2758, %v2821, %v2825
      %v2827 = vrot.slane %v348, 2
      %v2828 = vsel %vm2758, %v2823, %v2827
      %v2829 = vrot.slane %v349, 2
      %v2830 = vsel %vm2758, %v2825, %v2829
      %v2831 = vrot.slane %v350, 2
      %v2832 = vsel %vm2758, %v2827, %v2831
      %v2833 = vrot.slane %v351, 2
      %v2834 = vsel %vm2758, %v2829, %v2833
      %v2835 = vrot.slane %v352, 2
      %v2836 = vsel %vm2758, %v2831, %v2835
      %v2837 = vrot.slane %v353, 2
      %v2838 = vsel %vm2758, %v2833, %v2837
      %v2839 = vrot.slane %v354, 2
      %v2840 = vsel %vm2758, %v2835, %v2839
      %v2841 = vrot.slane %v355, 2
      %v2842 = vsel %vm2758, %v2837, %v2841
      %v2843 = vrot.slane %v356, 2
      %v2844 = vsel %vm2758, %v2839, %v2843
      %v2845 = vrot.slane %v357, 2
      %v2846 = vsel %vm2758, %v2841, %v2845
      %v2847 = vrot.slane %v358, 2
      %v2848 = vsel %vm2758, %v2843, %v2847
      %v2849 = vrot.slane %v359, 2
      %v2850 = vsel %vm2758, %v2845, %v2849
      %v2851 = vrot.slane %v360, 2
      %v2852 = vsel %vm2758, %v2847, %v2851
      %v2853 = vrot.slane %v361, 2
      %v2854 = vsel %vm2758, %v2849, %v2853
      %v2855 = vrot.slane %v362, 2
      %v2856 = vsel %vm2758, %v2851, %v2855
      %v2857 = vrot.slane %v363, 2
      %v2858 = vsel %vm2758, %v2853, %v2857
      %v2859 = vrot.slane %v364, 2
      %v2860 = vsel %vm2758, %v2855, %v2859
      %v2861 = vrot.slane %v365, 2
      %v2862 = vsel %vm2758, %v2857, %v2861
      %v2863 = vrot.slane %v366, 2
      %v2864 = vsel %vm2758, %v2859, %v2863
      %v2865 = vrot.slane %v367, 2
      %v2866 = vsel %vm2758, %v2861, %v2865
      %v2867 = vrot.slane %v368, 2
      %v2868 = vsel %vm2758, %v2863, %v2867
      %v2869 = vrot.slane %v369, 2
      %v2870 = vsel %vm2758, %v2865, %v2869
      %v2871 = vrot.slane %v370, 2
      %v2872 = vsel %vm2758, %v2867, %v2871
      %v2873 = vrot.slane %v371, 2
      %v2874 = vsel %vm2758, %v2869, %v2873
      %v2875 = vrot.slane %v372, 2
      %v2876 = vsel %vm2758, %v2871, %v2875
      %v2877 = vrot.slane %v373, 2
      %v2878 = vsel %vm2758, %v2873, %v2877
      %v2879 = vrot.slane %v374, 2
      %v2880 = vsel %vm2758, %v2875, %v2879
      %v2881 = vrot.slane %v375, 2
      %v2882 = vsel %vm2758, %v2877, %v2881
      %v2883 = vrot.slane %v376, 2
      %v2884 = vsel %vm2758, %v2879, %v2883
      %v2885 = vrot.slane %v569, 2
      %v2886 = vsel %vm2758, %v2881, %v2885
      %v2887 = vrot.slane %v570, 2
      %v2888 = vsel %vm2758, %v2883, %v2887
      %2953 = vmatprep.subr.mxu0 %v2657
      %2954 = vmatpush1.msra.mxu0 %v2656
      %2955 = vmatprep.subr.mxu0 %v2651
      %2956 = vmatpush1.msra.mxu0 %v2650
      %2957 = vmatprep.subr.mxu0 %v2645
      %2958 = vmatpush1.msra.mxu0 %v2644
      %2959 = vmatprep.subr.mxu0 %v2639
      %2960 = vmatpush1.msra.mxu0 %v2638
      %2961 = vmatprep.subr.mxu0 %v2633
      %2962 = vmatpush1.msra.mxu0 %v2632
      %2963 = vmatprep.subr.mxu0 %v2627
      %2964 = vmatpush1.msra.mxu0 %v2626
      %2965 = vmatprep.subr.mxu0 %v2621
      %2966 = vmatpush1.msra.mxu0 %v2620
      %2967 = vmatprep.subr.mxu0 %v2615
      %2968 = vmatpush1.msra.mxu0 %v2614
      %2969 = vmatprep.subr.mxu0 %v2609
      %2970 = vmatpush1.msra.mxu0 %v2608
      %2971 = vmatprep.subr.mxu0 %v2603
      %2972 = vmatpush1.msra.mxu0 %v2602
      %2973 = vmatprep.subr.mxu0 %v2597
      %2974 = vmatpush1.msra.mxu0 %v2596
      %2975 = vmatprep.subr.mxu0 %v2591
      %2976 = vmatpush1.msra.mxu0 %v2590
      %2977 = vmatprep.subr.mxu0 %v2585
      %2978 = vmatpush1.msra.mxu0 %v2584
      %2979 = vmatprep.subr.mxu0 %v2579
      %2980 = vmatpush1.msra.mxu0 %v2578
      %2981 = vmatprep.subr.mxu0 %v2573
      %2982 = vmatpush1.msra.mxu0 %v2572
      %2983 = vmatprep.subr.mxu0 %v2567
      %2984 = vmatpush1.msra.mxu0 %v2566
      %2985 = vmatprep.subr.mxu0 %v2753
      %2986 = vmatpush2.msra.mxu0 %v2752
      %2987 = vmatprep.subr.mxu0 %v2747
      %2988 = vmatpush2.msra.mxu0 %v2746
      %2989 = vmatprep.subr.mxu0 %v2741
      %2990 = vmatpush2.msra.mxu0 %v2740
      %2991 = vmatprep.subr.mxu0 %v2735
      %2992 = vmatpush2.msra.mxu0 %v2734
      %2993 = vmatprep.subr.mxu0 %v2729
      %2994 = vmatpush2.msra.mxu0 %v2728
      %2995 = vmatprep.subr.mxu0 %v2723
      %2996 = vmatpush2.msra.mxu0 %v2722
      %2997 = vmatprep.subr.mxu0 %v2717
      %2998 = vmatpush2.msra.mxu0 %v2716
      %2999 = vmatprep.subr.mxu0 %v2711
      %3000 = vmatpush2.msra.mxu0 %v2710
      %3001 = vmatprep.subr.mxu0 %v2705
      %3002 = vmatpush2.msra.mxu0 %v2704
      %3003 = vmatprep.subr.mxu0 %v2699
      %3004 = vmatpush2.msra.mxu0 %v2698
      %3005 = vmatprep.subr.mxu0 %v2693
      %3006 = vmatpush2.msra.mxu0 %v2692
      %3007 = vmatprep.subr.mxu0 %v2687
      %3008 = vmatpush2.msra.mxu0 %v2686
      %3009 = vmatprep.subr.mxu0 %v2681
      %3010 = vmatpush2.msra.mxu0 %v2680
      %3011 = vmatprep.subr.mxu0 %v2675
      %3012 = vmatpush2.msra.mxu0 %v2674
      %3013 = vmatprep.subr.mxu0 %v2669
      %3014 = vmatpush2.msra.mxu0 %v2668
      %3015 = vmatprep.subr.mxu0 %v2663
      %3016 = vmatpush2.msra.mxu0 %v2662
      %3017 = vmatprep.mubr.f32.mxu0 %v2764
      %3018 = vmatmul.mubr.f32.gmra.mxu0 %v2761
      %v3019 = vpop.f32.mrf.mxu0
      %v3020 = vadd.f32 0.0, %v3019
      %v3021 = vpop.f32.mrf.mxu0
      %v3022 = vadd.f32 0.0, %v3021
      %3023 = vmatprep.mubr.f32.mxu0 %v2768
      %3024 = vmatmul.mubr.f32.gmra.mxu0 %v2766
      %v3025 = vpop.f32.mrf.mxu0
      %v3026 = vadd.f32 0.0, %v3025
      %v3027 = vpop.f32.mrf.mxu0
      %v3028 = vadd.f32 0.0, %v3027
      %3029 = vmatprep.mubr.f32.mxu0 %v2772
      %3030 = vmatmul.mubr.f32.gmra.mxu0 %v2770
      %v3031 = vpop.f32.mrf.mxu0
      %v3032 = vadd.f32 0.0, %v3031
      %v3033 = vpop.f32.mrf.mxu0
      %v3034 = vadd.f32 0.0, %v3033
      %3035 = vmatprep.mubr.f32.mxu0 %v2776
      %3036 = vmatmul.mubr.f32.gmra.mxu0 %v2774
      %v3037 = vpop.f32.mrf.mxu0
      %v3038 = vadd.f32 0.0, %v3037
      %v3039 = vpop.f32.mrf.mxu0
      %v3040 = vadd.f32 0.0, %v3039
      %3041 = vmatprep.mubr.f32.mxu0 %v2780
      %3042 = vmatmul.mubr.f32.gmra.mxu0 %v2778
      %v3043 = vpop.f32.mrf.mxu0
      %v3044 = vadd.f32 0.0, %v3043
      %v3045 = vpop.f32.mrf.mxu0
      %v3046 = vadd.f32 0.0, %v3045
      %3047 = vmatprep.mubr.f32.mxu0 %v2784
      %3048 = vmatmul.mubr.f32.gmra.mxu0 %v2782
      %v3049 = vpop.f32.mrf.mxu0
      %v3050 = vadd.f32 0.0, %v3049
      %v3051 = vpop.f32.mrf.mxu0
      %v3052 = vadd.f32 0.0, %v3051
      %3053 = vmatprep.mubr.f32.mxu0 %v2788
      %3054 = vmatmul.mubr.f32.gmra.mxu0 %v2786
      %v3055 = vpop.f32.mrf.mxu0
      %v3056 = vadd.f32 0.0, %v3055
      %v3057 = vpop.f32.mrf.mxu0
      %v3058 = vadd.f32 0.0, %v3057
      %3059 = vmatprep.mubr.f32.mxu0 %v2792
      %3060 = vmatmul.mubr.f32.gmra.mxu0 %v2790
      %v3061 = vpop.f32.mrf.mxu0
      %v3062 = vadd.f32 0.0, %v3061
      %v3063 = vpop.f32.mrf.mxu0
      %v3064 = vadd.f32 0.0, %v3063
      %3065 = vmatprep.mubr.f32.mxu0 %v2796
      %3066 = vmatmul.mubr.f32.gmra.mxu0 %v2794
      %v3067 = vpop.f32.mrf.mxu0
      %v3068 = vadd.f32 0.0, %v3067
      %v3069 = vpop.f32.mrf.mxu0
      %v3070 = vadd.f32 0.0, %v3069
      %3071 = vmatprep.mubr.f32.mxu0 %v2800
      %3072 = vmatmul.mubr.f32.gmra.mxu0 %v2798
      %v3073 = vpop.f32.mrf.mxu0
      %v3074 = vadd.f32 0.0, %v3073
      %v3075 = vpop.f32.mrf.mxu0
      %v3076 = vadd.f32 0.0, %v3075
      %3077 = vmatprep.mubr.f32.mxu0 %v2804
      %3078 = vmatmul.mubr.f32.gmra.mxu0 %v2802
      %v3079 = vpop.f32.mrf.mxu0
      %v3080 = vadd.f32 0.0, %v3079
      %v3081 = vpop.f32.mrf.mxu0
      %v3082 = vadd.f32 0.0, %v3081
      %3083 = vmatprep.mubr.f32.mxu0 %v2808
      %3084 = vmatmul.mubr.f32.gmra.mxu0 %v2806
      %v3085 = vpop.f32.mrf.mxu0
      %v3086 = vadd.f32 0.0, %v3085
      %v3087 = vpop.f32.mrf.mxu0
      %v3088 = vadd.f32 0.0, %v3087
      %3089 = vmatprep.mubr.f32.mxu0 %v2812
      %3090 = vmatmul.mubr.f32.gmra.mxu0 %v2810
      %v3091 = vpop.f32.mrf.mxu0
      %v3092 = vadd.f32 0.0, %v3091
      %v3093 = vpop.f32.mrf.mxu0
      %v3094 = vadd.f32 0.0, %v3093
      %3095 = vmatprep.mubr.f32.mxu0 %v2816
      %3096 = vmatmul.mubr.f32.gmra.mxu0 %v2814
      %v3097 = vpop.f32.mrf.mxu0
      %v3098 = vadd.f32 0.0, %v3097
      %v3099 = vpop.f32.mrf.mxu0
      %v3100 = vadd.f32 0.0, %v3099
      %3101 = vmatprep.mubr.f32.mxu0 %v2820
      %3102 = vmatmul.mubr.f32.gmra.mxu0 %v2818
      %v3103 = vpop.f32.mrf.mxu0
      %v3104 = vadd.f32 0.0, %v3103
      %v3105 = vpop.f32.mrf.mxu0
      %v3106 = vadd.f32 0.0, %v3105
      %3107 = vmatprep.mubr.f32.mxu0 %v2824
      %3108 = vmatmul.mubr.f32.gmra.mxu0 %v2822
      %v3109 = vpop.f32.mrf.mxu0
      %v3110 = vadd.f32 0.0, %v3109
      %v3111 = vpop.f32.mrf.mxu0
      %v3112 = vadd.f32 0.0, %v3111
      %3113 = vmatprep.mubr.f32.mxu0 %v2828
      %3114 = vmatmul.mubr.f32.gmra.mxu0 %v2826
      %v3115 = vpop.f32.mrf.mxu0
      %v3116 = vadd.f32 0.0, %v3115
      %v3117 = vpop.f32.mrf.mxu0
      %v3118 = vadd.f32 0.0, %v3117
      %3119 = vmatprep.mubr.f32.mxu0 %v2832
      %3120 = vmatmul.mubr.f32.gmra.mxu0 %v2830
      %v3121 = vpop.f32.mrf.mxu0
      %v3122 = vadd.f32 0.0, %v3121
      %v3123 = vpop.f32.mrf.mxu0
      %v3124 = vadd.f32 0.0, %v3123
      %3125 = vmatprep.mubr.f32.mxu0 %v2836
      %3126 = vmatmul.mubr.f32.gmra.mxu0 %v2834
      %v3127 = vpop.f32.mrf.mxu0
      %v3128 = vadd.f32 0.0, %v3127
      %v3129 = vpop.f32.mrf.mxu0
      %v3130 = vadd.f32 0.0, %v3129
      %3131 = vmatprep.mubr.f32.mxu0 %v2840
      %3132 = vmatmul.mubr.f32.gmra.mxu0 %v2838
      %v3133 = vpop.f32.mrf.mxu0
      %v3134 = vadd.f32 0.0, %v3133
      %v3135 = vpop.f32.mrf.mxu0
      %v3136 = vadd.f32 0.0, %v3135
      %3137 = vmatprep.mubr.f32.mxu0 %v2844
      %3138 = vmatmul.mubr.f32.gmra.mxu0 %v2842
      %v3139 = vpop.f32.mrf.mxu0
      %v3140 = vadd.f32 0.0, %v3139
      %v3141 = vpop.f32.mrf.mxu0
      %v3142 = vadd.f32 0.0, %v3141
      %3143 = vmatprep.mubr.f32.mxu0 %v2848
      %3144 = vmatmul.mubr.f32.gmra.mxu0 %v2846
      %v3145 = vpop.f32.mrf.mxu0
      %v3146 = vadd.f32 0.0, %v3145
      %v3147 = vpop.f32.mrf.mxu0
      %v3148 = vadd.f32 0.0, %v3147
      %3149 = vmatprep.mubr.f32.mxu0 %v2852
      %3150 = vmatmul.mubr.f32.gmra.mxu0 %v2850
      %v3151 = vpop.f32.mrf.mxu0
      %v3152 = vadd.f32 0.0, %v3151
      %v3153 = vpop.f32.mrf.mxu0
      %v3154 = vadd.f32 0.0, %v3153
      %3155 = vmatprep.mubr.f32.mxu0 %v2856
      %3156 = vmatmul.mubr.f32.gmra.mxu0 %v2854
      %v3157 = vpop.f32.mrf.mxu0
      %v3158 = vadd.f32 0.0, %v3157
      %v3159 = vpop.f32.mrf.mxu0
      %v3160 = vadd.f32 0.0, %v3159
      %3161 = vmatprep.mubr.f32.mxu0 %v2860
      %3162 = vmatmul.mubr.f32.gmra.mxu0 %v2858
      %v3163 = vpop.f32.mrf.mxu0
      %v3164 = vadd.f32 0.0, %v3163
      %v3165 = vpop.f32.mrf.mxu0
      %v3166 = vadd.f32 0.0, %v3165
      %3167 = vmatprep.mubr.f32.mxu0 %v2864
      %3168 = vmatmul.mubr.f32.gmra.mxu0 %v2862
      %v3169 = vpop.f32.mrf.mxu0
      %v3170 = vadd.f32 0.0, %v3169
      %v3171 = vpop.f32.mrf.mxu0
      %v3172 = vadd.f32 0.0, %v3171
      %3173 = vmatprep.mubr.f32.mxu0 %v2868
      %3174 = vmatmul.mubr.f32.gmra.mxu0 %v2866
      %v3175 = vpop.f32.mrf.mxu0
      %v3176 = vadd.f32 0.0, %v3175
      %v3177 = vpop.f32.mrf.mxu0
      %v3178 = vadd.f32 0.0, %v3177
      %3179 = vmatprep.mubr.f32.mxu0 %v2872
      %3180 = vmatmul.mubr.f32.gmra.mxu0 %v2870
      %v3181 = vpop.f32.mrf.mxu0
      %v3182 = vadd.f32 0.0, %v3181
      %v3183 = vpop.f32.mrf.mxu0
      %v3184 = vadd.f32 0.0, %v3183
      %3185 = vmatprep.mubr.f32.mxu0 %v2876
      %3186 = vmatmul.mubr.f32.gmra.mxu0 %v2874
      %v3187 = vpop.f32.mrf.mxu0
      %v3188 = vadd.f32 0.0, %v3187
      %v3189 = vpop.f32.mrf.mxu0
      %v3190 = vadd.f32 0.0, %v3189
      %3191 = vmatprep.mubr.f32.mxu0 %v2880
      %3192 = vmatmul.mubr.f32.gmra.mxu0 %v2878
      %v3193 = vpop.f32.mrf.mxu0
      %v3194 = vadd.f32 0.0, %v3193
      %v3195 = vpop.f32.mrf.mxu0
      %v3196 = vadd.f32 0.0, %v3195
      %3197 = vmatprep.mubr.f32.mxu0 %v2884
      %3198 = vmatmul.mubr.f32.gmra.mxu0 %v2882
      %v3199 = vpop.f32.mrf.mxu0
      %v3200 = vadd.f32 0.0, %v3199
      %v3201 = vpop.f32.mrf.mxu0
      %v3202 = vadd.f32 0.0, %v3201
      %3203 = vmatprep.mubr.f32.mxu0 %v2888
      %3204 = vmatmul.mubr.f32.gmra.mxu0 %v2886
      %v3205 = vpop.f32.mrf.mxu0
      %v3206 = vadd.f32 0.0, %v3205
      %v3207 = vpop.f32.mrf.mxu0
      %v3208 = vadd.f32 0.0, %v3207
      %3209 = vdwg.mxu0
      %3210 = vmatprep.subr.mxu0 %v2659
      %3211 = vmatpush1.msra.mxu0 %v2658
      %3212 = vmatprep.subr.mxu0 %v2653
      %3213 = vmatpush1.msra.mxu0 %v2652
      %3214 = vmatprep.subr.mxu0 %v2647
      %3215 = vmatpush1.msra.mxu0 %v2646
      %3216 = vmatprep.subr.mxu0 %v2641
      %3217 = vmatpush1.msra.mxu0 %v2640
      %3218 = vmatprep.subr.mxu0 %v2635
      %3219 = vmatpush1.msra.mxu0 %v2634
      %3220 = vmatprep.subr.mxu0 %v2629
      %3221 = vmatpush1.msra.mxu0 %v2628
      %3222 = vmatprep.subr.mxu0 %v2623
      %3223 = vmatpush1.msra.mxu0 %v2622
      %3224 = vmatprep.subr.mxu0 %v2617
      %3225 = vmatpush1.msra.mxu0 %v2616
      %3226 = vmatprep.subr.mxu0 %v2611
      %3227 = vmatpush1.msra.mxu0 %v2610
      %3228 = vmatprep.subr.mxu0 %v2605
      %3229 = vmatpush1.msra.mxu0 %v2604
      %3230 = vmatprep.subr.mxu0 %v2599
      %3231 = vmatpush1.msra.mxu0 %v2598
      %3232 = vmatprep.subr.mxu0 %v2593
      %3233 = vmatpush1.msra.mxu0 %v2592
      %3234 = vmatprep.subr.mxu0 %v2587
      %3235 = vmatpush1.msra.mxu0 %v2586
      %3236 = vmatprep.subr.mxu0 %v2581
      %3237 = vmatpush1.msra.mxu0 %v2580
      %3238 = vmatprep.subr.mxu0 %v2575
      %3239 = vmatpush1.msra.mxu0 %v2574
      %3240 = vmatprep.subr.mxu0 %v2569
      %3241 = vmatpush1.msra.mxu0 %v2568
      %3242 = vmatprep.subr.mxu0 %v2755
      %3243 = vmatpush2.msra.mxu0 %v2754
      %3244 = vmatprep.subr.mxu0 %v2749
      %3245 = vmatpush2.msra.mxu0 %v2748
      %3246 = vmatprep.subr.mxu0 %v2743
      %3247 = vmatpush2.msra.mxu0 %v2742
      %3248 = vmatprep.subr.mxu0 %v2737
      %3249 = vmatpush2.msra.mxu0 %v2736
      %3250 = vmatprep.subr.mxu0 %v2731
      %3251 = vmatpush2.msra.mxu0 %v2730
      %3252 = vmatprep.subr.mxu0 %v2725
      %3253 = vmatpush2.msra.mxu0 %v2724
      %3254 = vmatprep.subr.mxu0 %v2719
      %3255 = vmatpush2.msra.mxu0 %v2718
      %3256 = vmatprep.subr.mxu0 %v2713
      %3257 = vmatpush2.msra.mxu0 %v2712
      %3258 = vmatprep.subr.mxu0 %v2707
      %3259 = vmatpush2.msra.mxu0 %v2706
      %3260 = vmatprep.subr.mxu0 %v2701
      %3261 = vmatpush2.msra.mxu0 %v2700
      %3262 = vmatprep.subr.mxu0 %v2695
      %3263 = vmatpush2.msra.mxu0 %v2694
      %3264 = vmatprep.subr.mxu0 %v2689
      %3265 = vmatpush2.msra.mxu0 %v2688
      %3266 = vmatprep.subr.mxu0 %v2683
      %3267 = vmatpush2.msra.mxu0 %v2682
      %3268 = vmatprep.subr.mxu0 %v2677
      %3269 = vmatpush2.msra.mxu0 %v2676
      %3270 = vmatprep.subr.mxu0 %v2671
      %3271 = vmatpush2.msra.mxu0 %v2670
      %3272 = vmatprep.subr.mxu0 %v2665
      %3273 = vmatpush2.msra.mxu0 %v2664
      %3274 = vmatprep.mubr.f32.mxu0 %v2764
      %3275 = vmatmul.mubr.f32.gmra.mxu0 %v2761
      %v3276 = vpop.f32.mrf.mxu0
      %v3277 = vadd.f32 0.0, %v3276
      %v3278 = vpop.f32.mrf.mxu0
      %v3279 = vadd.f32 0.0, %v3278
      %3280 = vmatprep.mubr.f32.mxu0 %v2768
      %3281 = vmatmul.mubr.f32.gmra.mxu0 %v2766
      %v3282 = vpop.f32.mrf.mxu0
      %v3283 = vadd.f32 0.0, %v3282
      %v3284 = vpop.f32.mrf.mxu0
      %v3285 = vadd.f32 0.0, %v3284
      %3286 = vmatprep.mubr.f32.mxu0 %v2772
      %3287 = vmatmul.mubr.f32.gmra.mxu0 %v2770
      %v3288 = vpop.f32.mrf.mxu0
      %v3289 = vadd.f32 0.0, %v3288
      %v3290 = vpop.f32.mrf.mxu0
      %v3291 = vadd.f32 0.0, %v3290
      %3292 = vmatprep.mubr.f32.mxu0 %v2776
      %3293 = vmatmul.mubr.f32.gmra.mxu0 %v2774
      %v3294 = vpop.f32.mrf.mxu0
      %v3295 = vadd.f32 0.0, %v3294
      %v3296 = vpop.f32.mrf.mxu0
      %v3297 = vadd.f32 0.0, %v3296
      %3298 = vmatprep.mubr.f32.mxu0 %v2780
      %3299 = vmatmul.mubr.f32.gmra.mxu0 %v2778
      %v3300 = vpop.f32.mrf.mxu0
      %v3301 = vadd.f32 0.0, %v3300
      %v3302 = vpop.f32.mrf.mxu0
      %v3303 = vadd.f32 0.0, %v3302
      %3304 = vmatprep.mubr.f32.mxu0 %v2784
      %3305 = vmatmul.mubr.f32.gmra.mxu0 %v2782
      %v3306 = vpop.f32.mrf.mxu0
      %v3307 = vadd.f32 0.0, %v3306
      %v3308 = vpop.f32.mrf.mxu0
      %v3309 = vadd.f32 0.0, %v3308
      %3310 = vmatprep.mubr.f32.mxu0 %v2788
      %3311 = vmatmul.mubr.f32.gmra.mxu0 %v2786
      %v3312 = vpop.f32.mrf.mxu0
      %v3313 = vadd.f32 0.0, %v3312
      %v3314 = vpop.f32.mrf.mxu0
      %v3315 = vadd.f32 0.0, %v3314
      %3316 = vmatprep.mubr.f32.mxu0 %v2792
      %3317 = vmatmul.mubr.f32.gmra.mxu0 %v2790
      %v3318 = vpop.f32.mrf.mxu0
      %v3319 = vadd.f32 0.0, %v3318
      %v3320 = vpop.f32.mrf.mxu0
      %v3321 = vadd.f32 0.0, %v3320
      %3322 = vmatprep.mubr.f32.mxu0 %v2796
      %3323 = vmatmul.mubr.f32.gmra.mxu0 %v2794
      %v3324 = vpop.f32.mrf.mxu0
      %v3325 = vadd.f32 0.0, %v3324
      %v3326 = vpop.f32.mrf.mxu0
      %v3327 = vadd.f32 0.0, %v3326
      %3328 = vmatprep.mubr.f32.mxu0 %v2800
      %3329 = vmatmul.mubr.f32.gmra.mxu0 %v2798
      %v3330 = vpop.f32.mrf.mxu0
      %v3331 = vadd.f32 0.0, %v3330
      %v3332 = vpop.f32.mrf.mxu0
      %v3333 = vadd.f32 0.0, %v3332
      %3334 = vmatprep.mubr.f32.mxu0 %v2804
      %3335 = vmatmul.mubr.f32.gmra.mxu0 %v2802
      %v3336 = vpop.f32.mrf.mxu0
      %v3337 = vadd.f32 0.0, %v3336
      %v3338 = vpop.f32.mrf.mxu0
      %v3339 = vadd.f32 0.0, %v3338
      %3340 = vmatprep.mubr.f32.mxu0 %v2808
      %3341 = vmatmul.mubr.f32.gmra.mxu0 %v2806
      %v3342 = vpop.f32.mrf.mxu0
      %v3343 = vadd.f32 0.0, %v3342
      %v3344 = vpop.f32.mrf.mxu0
      %v3345 = vadd.f32 0.0, %v3344
      %3346 = vmatprep.mubr.f32.mxu0 %v2812
      %3347 = vmatmul.mubr.f32.gmra.mxu0 %v2810
      %v3348 = vpop.f32.mrf.mxu0
      %v3349 = vadd.f32 0.0, %v3348
      %v3350 = vpop.f32.mrf.mxu0
      %v3351 = vadd.f32 0.0, %v3350
      %3352 = vmatprep.mubr.f32.mxu0 %v2816
      %3353 = vmatmul.mubr.f32.gmra.mxu0 %v2814
      %v3354 = vpop.f32.mrf.mxu0
      %v3355 = vadd.f32 0.0, %v3354
      %v3356 = vpop.f32.mrf.mxu0
      %v3357 = vadd.f32 0.0, %v3356
      %3358 = vmatprep.mubr.f32.mxu0 %v2820
      %3359 = vmatmul.mubr.f32.gmra.mxu0 %v2818
      %v3360 = vpop.f32.mrf.mxu0
      %v3361 = vadd.f32 0.0, %v3360
      %v3362 = vpop.f32.mrf.mxu0
      %v3363 = vadd.f32 0.0, %v3362
      %3364 = vmatprep.mubr.f32.mxu0 %v2824
      %3365 = vmatmul.mubr.f32.gmra.mxu0 %v2822
      %v3366 = vpop.f32.mrf.mxu0
      %v3367 = vadd.f32 0.0, %v3366
      %v3368 = vpop.f32.mrf.mxu0
      %v3369 = vadd.f32 0.0, %v3368
      %3370 = vmatprep.mubr.f32.mxu0 %v2828
      %3371 = vmatmul.mubr.f32.gmra.mxu0 %v2826
      %v3372 = vpop.f32.mrf.mxu0
      %v3373 = vadd.f32 0.0, %v3372
      %v3374 = vpop.f32.mrf.mxu0
      %v3375 = vadd.f32 0.0, %v3374
      %3376 = vmatprep.mubr.f32.mxu0 %v2832
      %3377 = vmatmul.mubr.f32.gmra.mxu0 %v2830
      %v3378 = vpop.f32.mrf.mxu0
      %v3379 = vadd.f32 0.0, %v3378
      %v3380 = vpop.f32.mrf.mxu0
      %v3381 = vadd.f32 0.0, %v3380
      %3382 = vmatprep.mubr.f32.mxu0 %v2836
      %3383 = vmatmul.mubr.f32.gmra.mxu0 %v2834
      %v3384 = vpop.f32.mrf.mxu0
      %v3385 = vadd.f32 0.0, %v3384
      %v3386 = vpop.f32.mrf.mxu0
      %v3387 = vadd.f32 0.0, %v3386
      %3388 = vmatprep.mubr.f32.mxu0 %v2840
      %3389 = vmatmul.mubr.f32.gmra.mxu0 %v2838
      %v3390 = vpop.f32.mrf.mxu0
      %v3391 = vadd.f32 0.0, %v3390
      %v3392 = vpop.f32.mrf.mxu0
      %v3393 = vadd.f32 0.0, %v3392
      %3394 = vmatprep.mubr.f32.mxu0 %v2844
      %3395 = vmatmul.mubr.f32.gmra.mxu0 %v2842
      %v3396 = vpop.f32.mrf.mxu0
      %v3397 = vadd.f32 0.0, %v3396
      %v3398 = vpop.f32.mrf.mxu0
      %v3399 = vadd.f32 0.0, %v3398
      %3400 = vmatprep.mubr.f32.mxu0 %v2848
      %3401 = vmatmul.mubr.f32.gmra.mxu0 %v2846
      %v3402 = vpop.f32.mrf.mxu0
      %v3403 = vadd.f32 0.0, %v3402
      %v3404 = vpop.f32.mrf.mxu0
      %v3405 = vadd.f32 0.0, %v3404
      %3406 = vmatprep.mubr.f32.mxu0 %v2852
      %3407 = vmatmul.mubr.f32.gmra.mxu0 %v2850
      %v3408 = vpop.f32.mrf.mxu0
      %v3409 = vadd.f32 0.0, %v3408
      %v3410 = vpop.f32.mrf.mxu0
      %v3411 = vadd.f32 0.0, %v3410
      %3412 = vmatprep.mubr.f32.mxu0 %v2856
      %3413 = vmatmul.mubr.f32.gmra.mxu0 %v2854
      %v3414 = vpop.f32.mrf.mxu0
      %v3415 = vadd.f32 0.0, %v3414
      %v3416 = vpop.f32.mrf.mxu0
      %v3417 = vadd.f32 0.0, %v3416
      %3418 = vmatprep.mubr.f32.mxu0 %v2860
      %3419 = vmatmul.mubr.f32.gmra.mxu0 %v2858
      %v3420 = vpop.f32.mrf.mxu0
      %v3421 = vadd.f32 0.0, %v3420
      %v3422 = vpop.f32.mrf.mxu0
      %v3423 = vadd.f32 0.0, %v3422
      %3424 = vmatprep.mubr.f32.mxu0 %v2864
      %3425 = vmatmul.mubr.f32.gmra.mxu0 %v2862
      %v3426 = vpop.f32.mrf.mxu0
      %v3427 = vadd.f32 0.0, %v3426
      %v3428 = vpop.f32.mrf.mxu0
      %v3429 = vadd.f32 0.0, %v3428
      %3430 = vmatprep.mubr.f32.mxu0 %v2868
      %3431 = vmatmul.mubr.f32.gmra.mxu0 %v2866
      %v3432 = vpop.f32.mrf.mxu0
      %v3433 = vadd.f32 0.0, %v3432
      %v3434 = vpop.f32.mrf.mxu0
      %v3435 = vadd.f32 0.0, %v3434
      %3436 = vmatprep.mubr.f32.mxu0 %v2872
      %3437 = vmatmul.mubr.f32.gmra.mxu0 %v2870
      %v3438 = vpop.f32.mrf.mxu0
      %v3439 = vadd.f32 0.0, %v3438
      %v3440 = vpop.f32.mrf.mxu0
      %v3441 = vadd.f32 0.0, %v3440
      %3442 = vmatprep.mubr.f32.mxu0 %v2876
      %3443 = vmatmul.mubr.f32.gmra.mxu0 %v2874
      %v3444 = vpop.f32.mrf.mxu0
      %v3445 = vadd.f32 0.0, %v3444
      %v3446 = vpop.f32.mrf.mxu0
      %v3447 = vadd.f32 0.0, %v3446
      %3448 = vmatprep.mubr.f32.mxu0 %v2880
      %3449 = vmatmul.mubr.f32.gmra.mxu0 %v2878
      %v3450 = vpop.f32.mrf.mxu0
      %v3451 = vadd.f32 0.0, %v3450
      %v3452 = vpop.f32.mrf.mxu0
      %v3453 = vadd.f32 0.0, %v3452
      %3454 = vmatprep.mubr.f32.mxu0 %v2884
      %3455 = vmatmul.mubr.f32.gmra.mxu0 %v2882
      %v3456 = vpop.f32.mrf.mxu0
      %v3457 = vadd.f32 0.0, %v3456
      %v3458 = vpop.f32.mrf.mxu0
      %v3459 = vadd.f32 0.0, %v3458
      %3460 = vmatprep.mubr.f32.mxu0 %v2888
      %3461 = vmatmul.mubr.f32.gmra.mxu0 %v2886
      %v3462 = vpop.f32.mrf.mxu0
      %v3463 = vadd.f32 0.0, %v3462
      %v3464 = vpop.f32.mrf.mxu0
      %v3465 = vadd.f32 0.0, %v3464
      %3466 = vdwg.mxu0
      %3467 = vmatprep.subr.mxu0 %v2661
      %3468 = vmatpush1.msra.mxu0 %v2660
      %3469 = vmatprep.subr.mxu0 %v2655
      %3470 = vmatpush1.msra.mxu0 %v2654
      %3471 = vmatprep.subr.mxu0 %v2649
      %3472 = vmatpush1.msra.mxu0 %v2648
      %3473 = vmatprep.subr.mxu0 %v2643
      %3474 = vmatpush1.msra.mxu0 %v2642
      %3475 = vmatprep.subr.mxu0 %v2637
      %3476 = vmatpush1.msra.mxu0 %v2636
      %3477 = vmatprep.subr.mxu0 %v2631
      %3478 = vmatpush1.msra.mxu0 %v2630
      %3479 = vmatprep.subr.mxu0 %v2625
      %3480 = vmatpush1.msra.mxu0 %v2624
      %3481 = vmatprep.subr.mxu0 %v2619
      %3482 = vmatpush1.msra.mxu0 %v2618
      %3483 = vmatprep.subr.mxu0 %v2613
      %3484 = vmatpush1.msra.mxu0 %v2612
      %3485 = vmatprep.subr.mxu0 %v2607
      %3486 = vmatpush1.msra.mxu0 %v2606
      %3487 = vmatprep.subr.mxu0 %v2601
      %3488 = vmatpush1.msra.mxu0 %v2600
      %3489 = vmatprep.subr.mxu0 %v2595
      %3490 = vmatpush1.msra.mxu0 %v2594
      %3491 = vmatprep.subr.mxu0 %v2589
      %3492 = vmatpush1.msra.mxu0 %v2588
      %3493 = vmatprep.subr.mxu0 %v2583
      %3494 = vmatpush1.msra.mxu0 %v2582
      %3495 = vmatprep.subr.mxu0 %v2577
      %3496 = vmatpush1.msra.mxu0 %v2576
      %3497 = vmatprep.subr.mxu0 %v2571
      %3498 = vmatpush1.msra.mxu0 %v2570
      %3499 = vmatprep.subr.mxu0 %v2757
      %3500 = vmatpush2.msra.mxu0 %v2756
      %3501 = vmatprep.subr.mxu0 %v2751
      %3502 = vmatpush2.msra.mxu0 %v2750
      %3503 = vmatprep.subr.mxu0 %v2745
      %3504 = vmatpush2.msra.mxu0 %v2744
      %3505 = vmatprep.subr.mxu0 %v2739
      %3506 = vmatpush2.msra.mxu0 %v2738
      %3507 = vmatprep.subr.mxu0 %v2733
      %3508 = vmatpush2.msra.mxu0 %v2732
      %3509 = vmatprep.subr.mxu0 %v2727
      %3510 = vmatpush2.msra.mxu0 %v2726
      %3511 = vmatprep.subr.mxu0 %v2721
      %3512 = vmatpush2.msra.mxu0 %v2720
      %3513 = vmatprep.subr.mxu0 %v2715
      %3514 = vmatpush2.msra.mxu0 %v2714
      %3515 = vmatprep.subr.mxu0 %v2709
      %3516 = vmatpush2.msra.mxu0 %v2708
      %3517 = vmatprep.subr.mxu0 %v2703
      %3518 = vmatpush2.msra.mxu0 %v2702
      %3519 = vmatprep.subr.mxu0 %v2697
      %3520 = vmatpush2.msra.mxu0 %v2696
      %3521 = vmatprep.subr.mxu0 %v2691
      %3522 = vmatpush2.msra.mxu0 %v2690
      %3523 = vmatprep.subr.mxu0 %v2685
      %3524 = vmatpush2.msra.mxu0 %v2684
      %3525 = vmatprep.subr.mxu0 %v2679
      %3526 = vmatpush2.msra.mxu0 %v2678
      %3527 = vmatprep.subr.mxu0 %v2673
      %3528 = vmatpush2.msra.mxu0 %v2672
      %3529 = vmatprep.subr.mxu0 %v2667
      %3530 = vmatpush2.msra.mxu0 %v2666
      %3531 = vmatprep.mubr.f32.mxu0 %v2764
      %3532 = vmatmul.mubr.f32.gmra.mxu0 %v2761
      %v3533 = vpop.f32.mrf.mxu0
      %v3534 = vadd.f32 0.0, %v3533
      %v3535 = vpop.f32.mrf.mxu0
      %v3536 = vadd.f32 0.0, %v3535
      %3537 = vmatprep.mubr.f32.mxu0 %v2768
      %3538 = vmatmul.mubr.f32.gmra.mxu0 %v2766
      %v3539 = vpop.f32.mrf.mxu0
      %v3540 = vadd.f32 0.0, %v3539
      %v3541 = vpop.f32.mrf.mxu0
      %v3542 = vadd.f32 0.0, %v3541
      %3543 = vmatprep.mubr.f32.mxu0 %v2772
      %3544 = vmatmul.mubr.f32.gmra.mxu0 %v2770
      %v3545 = vpop.f32.mrf.mxu0
      %v3546 = vadd.f32 0.0, %v3545
      %v3547 = vpop.f32.mrf.mxu0
      %v3548 = vadd.f32 0.0, %v3547
      %3549 = vmatprep.mubr.f32.mxu0 %v2776
      %3550 = vmatmul.mubr.f32.gmra.mxu0 %v2774
      %v3551 = vpop.f32.mrf.mxu0
      %v3552 = vadd.f32 0.0, %v3551
      %v3553 = vpop.f32.mrf.mxu0
      %v3554 = vadd.f32 0.0, %v3553
      %3555 = vmatprep.mubr.f32.mxu0 %v2780
      %3556 = vmatmul.mubr.f32.gmra.mxu0 %v2778
      %v3557 = vpop.f32.mrf.mxu0
      %v3558 = vadd.f32 0.0, %v3557
      %v3559 = vpop.f32.mrf.mxu0
      %v3560 = vadd.f32 0.0, %v3559
      %3561 = vmatprep.mubr.f32.mxu0 %v2784
      %3562 = vmatmul.mubr.f32.gmra.mxu0 %v2782
      %v3563 = vpop.f32.mrf.mxu0
      %v3564 = vadd.f32 0.0, %v3563
      %v3565 = vpop.f32.mrf.mxu0
      %v3566 = vadd.f32 0.0, %v3565
      %3567 = vmatprep.mubr.f32.mxu0 %v2788
      %3568 = vmatmul.mubr.f32.gmra.mxu0 %v2786
      %v3569 = vpop.f32.mrf.mxu0
      %v3570 = vadd.f32 0.0, %v3569
      %v3571 = vpop.f32.mrf.mxu0
      %v3572 = vadd.f32 0.0, %v3571
      %3573 = vmatprep.mubr.f32.mxu0 %v2792
      %3574 = vmatmul.mubr.f32.gmra.mxu0 %v2790
      %v3575 = vpop.f32.mrf.mxu0
      %v3576 = vadd.f32 0.0, %v3575
      %v3577 = vpop.f32.mrf.mxu0
      %v3578 = vadd.f32 0.0, %v3577
      %3579 = vmatprep.mubr.f32.mxu0 %v2796
      %3580 = vmatmul.mubr.f32.gmra.mxu0 %v2794
      %v3581 = vpop.f32.mrf.mxu0
      %v3582 = vadd.f32 0.0, %v3581
      %v3583 = vpop.f32.mrf.mxu0
      %v3584 = vadd.f32 0.0, %v3583
      %3585 = vmatprep.mubr.f32.mxu0 %v2800
      %3586 = vmatmul.mubr.f32.gmra.mxu0 %v2798
      %v3587 = vpop.f32.mrf.mxu0
      %v3588 = vadd.f32 0.0, %v3587
      %v3589 = vpop.f32.mrf.mxu0
      %v3590 = vadd.f32 0.0, %v3589
      %3591 = vmatprep.mubr.f32.mxu0 %v2804
      %3592 = vmatmul.mubr.f32.gmra.mxu0 %v2802
      %v3593 = vpop.f32.mrf.mxu0
      %v3594 = vadd.f32 0.0, %v3593
      %v3595 = vpop.f32.mrf.mxu0
      %v3596 = vadd.f32 0.0, %v3595
      %3597 = vmatprep.mubr.f32.mxu0 %v2808
      %3598 = vmatmul.mubr.f32.gmra.mxu0 %v2806
      %v3599 = vpop.f32.mrf.mxu0
      %v3600 = vadd.f32 0.0, %v3599
      %v3601 = vpop.f32.mrf.mxu0
      %v3602 = vadd.f32 0.0, %v3601
      %3603 = vmatprep.mubr.f32.mxu0 %v2812
      %3604 = vmatmul.mubr.f32.gmra.mxu0 %v2810
      %v3605 = vpop.f32.mrf.mxu0
      %v3606 = vadd.f32 0.0, %v3605
      %v3607 = vpop.f32.mrf.mxu0
      %v3608 = vadd.f32 0.0, %v3607
      %3609 = vmatprep.mubr.f32.mxu0 %v2816
      %3610 = vmatmul.mubr.f32.gmra.mxu0 %v2814
      %v3611 = vpop.f32.mrf.mxu0
      %v3612 = vadd.f32 0.0, %v3611
      %v3613 = vpop.f32.mrf.mxu0
      %v3614 = vadd.f32 0.0, %v3613
      %3615 = vmatprep.mubr.f32.mxu0 %v2820
      %3616 = vmatmul.mubr.f32.gmra.mxu0 %v2818
      %v3617 = vpop.f32.mrf.mxu0
      %v3618 = vadd.f32 0.0, %v3617
      %v3619 = vpop.f32.mrf.mxu0
      %v3620 = vadd.f32 0.0, %v3619
      %3621 = vmatprep.mubr.f32.mxu0 %v2824
      %3622 = vmatmul.mubr.f32.gmra.mxu0 %v2822
      %v3623 = vpop.f32.mrf.mxu0
      %v3624 = vadd.f32 0.0, %v3623
      %v3625 = vpop.f32.mrf.mxu0
      %v3626 = vadd.f32 0.0, %v3625
      %3627 = vmatprep.mubr.f32.mxu0 %v2828
      %3628 = vmatmul.mubr.f32.gmra.mxu0 %v2826
      %v3629 = vpop.f32.mrf.mxu0
      %v3630 = vadd.f32 0.0, %v3629
      %v3631 = vpop.f32.mrf.mxu0
      %v3632 = vadd.f32 0.0, %v3631
      %3633 = vmatprep.mubr.f32.mxu0 %v2832
      %3634 = vmatmul.mubr.f32.gmra.mxu0 %v2830
      %v3635 = vpop.f32.mrf.mxu0
      %v3636 = vadd.f32 0.0, %v3635
      %v3637 = vpop.f32.mrf.mxu0
      %v3638 = vadd.f32 0.0, %v3637
      %3639 = vmatprep.mubr.f32.mxu0 %v2836
      %3640 = vmatmul.mubr.f32.gmra.mxu0 %v2834
      %v3641 = vpop.f32.mrf.mxu0
      %v3642 = vadd.f32 0.0, %v3641
      %v3643 = vpop.f32.mrf.mxu0
      %v3644 = vadd.f32 0.0, %v3643
      %3645 = vmatprep.mubr.f32.mxu0 %v2840
      %3646 = vmatmul.mubr.f32.gmra.mxu0 %v2838
      %v3647 = vpop.f32.mrf.mxu0
      %v3648 = vadd.f32 0.0, %v3647
      %v3649 = vpop.f32.mrf.mxu0
      %v3650 = vadd.f32 0.0, %v3649
      %3651 = vmatprep.mubr.f32.mxu0 %v2844
      %3652 = vmatmul.mubr.f32.gmra.mxu0 %v2842
      %v3653 = vpop.f32.mrf.mxu0
      %v3654 = vadd.f32 0.0, %v3653
      %v3655 = vpop.f32.mrf.mxu0
      %v3656 = vadd.f32 0.0, %v3655
      %3657 = vmatprep.mubr.f32.mxu0 %v2848
      %3658 = vmatmul.mubr.f32.gmra.mxu0 %v2846
      %v3659 = vpop.f32.mrf.mxu0
      %v3660 = vadd.f32 0.0, %v3659
      %v3661 = vpop.f32.mrf.mxu0
      %v3662 = vadd.f32 0.0, %v3661
      %3663 = vmatprep.mubr.f32.mxu0 %v2852
      %3664 = vmatmul.mubr.f32.gmra.mxu0 %v2850
      %v3665 = vpop.f32.mrf.mxu0
      %v3666 = vadd.f32 0.0, %v3665
      %v3667 = vpop.f32.mrf.mxu0
      %v3668 = vadd.f32 0.0, %v3667
      %3669 = vmatprep.mubr.f32.mxu0 %v2856
      %3670 = vmatmul.mubr.f32.gmra.mxu0 %v2854
      %v3671 = vpop.f32.mrf.mxu0
      %v3672 = vadd.f32 0.0, %v3671
      %v3673 = vpop.f32.mrf.mxu0
      %v3674 = vadd.f32 0.0, %v3673
      %3675 = vmatprep.mubr.f32.mxu0 %v2860
      %3676 = vmatmul.mubr.f32.gmra.mxu0 %v2858
      %v3677 = vpop.f32.mrf.mxu0
      %v3678 = vadd.f32 0.0, %v3677
      %v3679 = vpop.f32.mrf.mxu0
      %v3680 = vadd.f32 0.0, %v3679
      %3681 = vmatprep.mubr.f32.mxu0 %v2864
      %3682 = vmatmul.mubr.f32.gmra.mxu0 %v2862
      %v3683 = vpop.f32.mrf.mxu0
      %v3684 = vadd.f32 0.0, %v3683
      %v3685 = vpop.f32.mrf.mxu0
      %v3686 = vadd.f32 0.0, %v3685
      %3687 = vmatprep.mubr.f32.mxu0 %v2868
      %3688 = vmatmul.mubr.f32.gmra.mxu0 %v2866
      %v3689 = vpop.f32.mrf.mxu0
      %v3690 = vadd.f32 0.0, %v3689
      %v3691 = vpop.f32.mrf.mxu0
      %v3692 = vadd.f32 0.0, %v3691
      %3693 = vmatprep.mubr.f32.mxu0 %v2872
      %3694 = vmatmul.mubr.f32.gmra.mxu0 %v2870
      %v3695 = vpop.f32.mrf.mxu0
      %v3696 = vadd.f32 0.0, %v3695
      %v3697 = vpop.f32.mrf.mxu0
      %v3698 = vadd.f32 0.0, %v3697
      %3699 = vmatprep.mubr.f32.mxu0 %v2876
      %3700 = vmatmul.mubr.f32.gmra.mxu0 %v2874
      %v3701 = vpop.f32.mrf.mxu0
      %v3702 = vadd.f32 0.0, %v3701
      %v3703 = vpop.f32.mrf.mxu0
      %v3704 = vadd.f32 0.0, %v3703
      %3705 = vmatprep.mubr.f32.mxu0 %v2880
      %3706 = vmatmul.mubr.f32.gmra.mxu0 %v2878
      %v3707 = vpop.f32.mrf.mxu0
      %v3708 = vadd.f32 0.0, %v3707
      %v3709 = vpop.f32.mrf.mxu0
      %v3710 = vadd.f32 0.0, %v3709
      %3711 = vmatprep.mubr.f32.mxu0 %v2884
      %3712 = vmatmul.mubr.f32.gmra.mxu0 %v2882
      %v3713 = vpop.f32.mrf.mxu0
      %v3714 = vadd.f32 0.0, %v3713
      %v3715 = vpop.f32.mrf.mxu0
      %v3716 = vadd.f32 0.0, %v3715
      %3717 = vmatprep.mubr.f32.mxu0 %v2888
      %3718 = vmatmul.mubr.f32.gmra.mxu0 %v2886
      %v3719 = vpop.f32.mrf.mxu0
      %v3720 = vadd.f32 0.0, %v3719
      %v3721 = vpop.f32.mrf.mxu0
      %v3722 = vadd.f32 0.0, %v3721
      %3723 = vdwg.mxu0
      %v3724 = vadd.f32 %v1862, %v3020
      %v3725 = vadd.f32 %v1864, %v3022
      %v3726 = vadd.f32 %v2119, %v3277
      %v3727 = vadd.f32 %v2121, %v3279
      %v3728 = vadd.f32 %v2376, %v3534
      %v3729 = vadd.f32 %v2378, %v3536
      %v3730 = vadd.f32 %v1868, %v3026
      %v3731 = vadd.f32 %v1870, %v3028
      %v3732 = vadd.f32 %v2125, %v3283
      %v3733 = vadd.f32 %v2127, %v3285
      %v3734 = vadd.f32 %v2382, %v3540
      %v3735 = vadd.f32 %v2384, %v3542
      %v3736 = vadd.f32 %v1874, %v3032
      %v3737 = vadd.f32 %v1876, %v3034
      %v3738 = vadd.f32 %v2131, %v3289
      %v3739 = vadd.f32 %v2133, %v3291
      %v3740 = vadd.f32 %v2388, %v3546
      %v3741 = vadd.f32 %v2390, %v3548
      %v3742 = vadd.f32 %v1880, %v3038
      %v3743 = vadd.f32 %v1882, %v3040
      %v3744 = vadd.f32 %v2137, %v3295
      %v3745 = vadd.f32 %v2139, %v3297
      %v3746 = vadd.f32 %v2394, %v3552
      %v3747 = vadd.f32 %v2396, %v3554
      %v3748 = vadd.f32 %v1886, %v3044
      %v3749 = vadd.f32 %v1888, %v3046
      %v3750 = vadd.f32 %v2143, %v3301
      %v3751 = vadd.f32 %v2145, %v3303
      %v3752 = vadd.f32 %v2400, %v3558
      %v3753 = vadd.f32 %v2402, %v3560
      %v3754 = vadd.f32 %v1892, %v3050
      %v3755 = vadd.f32 %v1894, %v3052
      %v3756 = vadd.f32 %v2149, %v3307
      %v3757 = vadd.f32 %v2151, %v3309
      %v3758 = vadd.f32 %v2406, %v3564
      %v3759 = vadd.f32 %v2408, %v3566
      %v3760 = vadd.f32 %v1898, %v3056
      %v3761 = vadd.f32 %v1900, %v3058
      %v3762 = vadd.f32 %v2155, %v3313
      %v3763 = vadd.f32 %v2157, %v3315
      %v3764 = vadd.f32 %v2412, %v3570
      %v3765 = vadd.f32 %v2414, %v3572
      %v3766 = vadd.f32 %v1904, %v3062
      %v3767 = vadd.f32 %v1906, %v3064
      %v3768 = vadd.f32 %v2161, %v3319
      %v3769 = vadd.f32 %v2163, %v3321
      %v3770 = vadd.f32 %v2418, %v3576
      %v3771 = vadd.f32 %v2420, %v3578
      %v3772 = vadd.f32 %v1910, %v3068
      %v3773 = vadd.f32 %v1912, %v3070
      %v3774 = vadd.f32 %v2167, %v3325
      %v3775 = vadd.f32 %v2169, %v3327
      %v3776 = vadd.f32 %v2424, %v3582
      %v3777 = vadd.f32 %v2426, %v3584
      %v3778 = vadd.f32 %v1916, %v3074
      %v3779 = vadd.f32 %v1918, %v3076
      %v3780 = vadd.f32 %v2173, %v3331
      %v3781 = vadd.f32 %v2175, %v3333
      %v3782 = vadd.f32 %v2430, %v3588
      %v3783 = vadd.f32 %v2432, %v3590
      %v3784 = vadd.f32 %v1922, %v3080
      %v3785 = vadd.f32 %v1924, %v3082
      %v3786 = vadd.f32 %v2179, %v3337
      %v3787 = vadd.f32 %v2181, %v3339
      %v3788 = vadd.f32 %v2436, %v3594
      %v3789 = vadd.f32 %v2438, %v3596
      %v3790 = vadd.f32 %v1928, %v3086
      %v3791 = vadd.f32 %v1930, %v3088
      %v3792 = vadd.f32 %v2185, %v3343
      %v3793 = vadd.f32 %v2187, %v3345
      %v3794 = vadd.f32 %v2442, %v3600
      %v3795 = vadd.f32 %v2444, %v3602
      %v3796 = vadd.f32 %v1934, %v3092
      %v3797 = vadd.f32 %v1936, %v3094
      %v3798 = vadd.f32 %v2191, %v3349
      %v3799 = vadd.f32 %v2193, %v3351
      %v3800 = vadd.f32 %v2448, %v3606
      %v3801 = vadd.f32 %v2450, %v3608
      %v3802 = vadd.f32 %v1940, %v3098
      %v3803 = vadd.f32 %v1942, %v3100
      %v3804 = vadd.f32 %v2197, %v3355
      %v3805 = vadd.f32 %v2199, %v3357
      %v3806 = vadd.f32 %v2454, %v3612
      %v3807 = vadd.f32 %v2456, %v3614
      %v3808 = vadd.f32 %v1946, %v3104
      %v3809 = vadd.f32 %v1948, %v3106
      %v3810 = vadd.f32 %v2203, %v3361
      %v3811 = vadd.f32 %v2205, %v3363
      %v3812 = vadd.f32 %v2460, %v3618
      %v3813 = vadd.f32 %v2462, %v3620
      %v3814 = vadd.f32 %v1952, %v3110
      %v3815 = vadd.f32 %v1954, %v3112
      %v3816 = vadd.f32 %v2209, %v3367
      %v3817 = vadd.f32 %v2211, %v3369
      %v3818 = vadd.f32 %v2466, %v3624
      %v3819 = vadd.f32 %v2468, %v3626
      %v3820 = vadd.f32 %v1958, %v3116
      %v3821 = vadd.f32 %v1960, %v3118
      %v3822 = vadd.f32 %v2215, %v3373
      %v3823 = vadd.f32 %v2217, %v3375
      %v3824 = vadd.f32 %v2472, %v3630
      %v3825 = vadd.f32 %v2474, %v3632
      %v3826 = vadd.f32 %v1964, %v3122
      %v3827 = vadd.f32 %v1966, %v3124
      %v3828 = vadd.f32 %v2221, %v3379
      %v3829 = vadd.f32 %v2223, %v3381
      %v3830 = vadd.f32 %v2478, %v3636
      %v3831 = vadd.f32 %v2480, %v3638
      %v3832 = vadd.f32 %v1970, %v3128
      %v3833 = vadd.f32 %v1972, %v3130
      %v3834 = vadd.f32 %v2227, %v3385
      %v3835 = vadd.f32 %v2229, %v3387
      %v3836 = vadd.f32 %v2484, %v3642
      %v3837 = vadd.f32 %v2486, %v3644
      %v3838 = vadd.f32 %v1976, %v3134
      %v3839 = vadd.f32 %v1978, %v3136
      %v3840 = vadd.f32 %v2233, %v3391
      %v3841 = vadd.f32 %v2235, %v3393
      %v3842 = vadd.f32 %v2490, %v3648
      %v3843 = vadd.f32 %v2492, %v3650
      %v3844 = vadd.f32 %v1982, %v3140
      %v3845 = vadd.f32 %v1984, %v3142
      %v3846 = vadd.f32 %v2239, %v3397
      %v3847 = vadd.f32 %v2241, %v3399
      %v3848 = vadd.f32 %v2496, %v3654
      %v3849 = vadd.f32 %v2498, %v3656
      %v3850 = vadd.f32 %v1988, %v3146
      %v3851 = vadd.f32 %v1990, %v3148
      %v3852 = vadd.f32 %v2245, %v3403
      %v3853 = vadd.f32 %v2247, %v3405
      %v3854 = vadd.f32 %v2502, %v3660
      %v3855 = vadd.f32 %v2504, %v3662
      %v3856 = vadd.f32 %v1994, %v3152
      %v3857 = vadd.f32 %v1996, %v3154
      %v3858 = vadd.f32 %v2251, %v3409
      %v3859 = vadd.f32 %v2253, %v3411
      %v3860 = vadd.f32 %v2508, %v3666
      %v3861 = vadd.f32 %v2510, %v3668
      %v3862 = vadd.f32 %v2000, %v3158
      %v3863 = vadd.f32 %v2002, %v3160
      %v3864 = vadd.f32 %v2257, %v3415
      %v3865 = vadd.f32 %v2259, %v3417
      %v3866 = vadd.f32 %v2514, %v3672
      %v3867 = vadd.f32 %v2516, %v3674
      %v3868 = vadd.f32 %v2006, %v3164
      %v3869 = vadd.f32 %v2008, %v3166
      %v3870 = vadd.f32 %v2263, %v3421
      %v3871 = vadd.f32 %v2265, %v3423
      %v3872 = vadd.f32 %v2520, %v3678
      %v3873 = vadd.f32 %v2522, %v3680
      %v3874 = vadd.f32 %v2012, %v3170
      %v3875 = vadd.f32 %v2014, %v3172
      %v3876 = vadd.f32 %v2269, %v3427
      %v3877 = vadd.f32 %v2271, %v3429
      %v3878 = vadd.f32 %v2526, %v3684
      %v3879 = vadd.f32 %v2528, %v3686
      %v3880 = vadd.f32 %v2018, %v3176
      %v3881 = vadd.f32 %v2020, %v3178
      %v3882 = vadd.f32 %v2275, %v3433
      %v3883 = vadd.f32 %v2277, %v3435
      %v3884 = vadd.f32 %v2532, %v3690
      %v3885 = vadd.f32 %v2534, %v3692
      %v3886 = vadd.f32 %v2024, %v3182
      %v3887 = vadd.f32 %v2026, %v3184
      %v3888 = vadd.f32 %v2281, %v3439
      %v3889 = vadd.f32 %v2283, %v3441
      %v3890 = vadd.f32 %v2538, %v3696
      %v3891 = vadd.f32 %v2540, %v3698
      %v3892 = vadd.f32 %v2030, %v3188
      %v3893 = vadd.f32 %v2032, %v3190
      %v3894 = vadd.f32 %v2287, %v3445
      %v3895 = vadd.f32 %v2289, %v3447
      %v3896 = vadd.f32 %v2544, %v3702
      %v3897 = vadd.f32 %v2546, %v3704
      %v3898 = vadd.f32 %v2036, %v3194
      %v3899 = vadd.f32 %v2038, %v3196
      %v3900 = vadd.f32 %v2293, %v3451
      %v3901 = vadd.f32 %v2295, %v3453
      %v3902 = vadd.f32 %v2550, %v3708
      %v3903 = vadd.f32 %v2552, %v3710
      %v3904 = vadd.f32 %v2042, %v3200
      %v3905 = vadd.f32 %v2044, %v3202
      %v3906 = vadd.f32 %v2299, %v3457
      %v3907 = vadd.f32 %v2301, %v3459
      %v3908 = vadd.f32 %v2556, %v3714
      %v3909 = vadd.f32 %v2558, %v3716
      %v3910 = vadd.f32 %v2048, %v3206
      %v3911 = vadd.f32 %v2050, %v3208
      %v3912 = vadd.f32 %v2305, %v3463
      %v3913 = vadd.f32 %v2307, %v3465
      %v3914 = vadd.f32 %v2562, %v3720
      %v3915 = vadd.f32 %v2564, %v3722
      %v3916 = vld [vmem:[%s2 + $0x1200] sm:$0xff]
      %v3917 = vld [vmem:[%s2 + $0x1208] sm:$0xff]
      %v3918 = vld [vmem:[%s2 + $0x1210] sm:$0xff]
      %v3919 = vld [vmem:[%s2 + $0x1218] sm:$0xff]
      %v3920 = vld [vmem:[%s2 + $0x1220] sm:$0xff]
      %v3921 = vld [vmem:[%s2 + $0x1228] sm:$0xff]
      %v3922 = vld [vmem:[%s2 + $0x1230] sm:$0xff]
      %v3923 = vld [vmem:[%s2 + $0x1238] sm:$0xff]
      %v3924 = vld [vmem:[%s2 + $0x1240] sm:$0xff]
      %v3925 = vld [vmem:[%s2 + $0x1248] sm:$0xff]
      %v3926 = vld [vmem:[%s2 + $0x1250] sm:$0xff]
      %v3927 = vld [vmem:[%s2 + $0x1258] sm:$0xff]
      %v3928 = vld [vmem:[%s2 + $0x1260] sm:$0xff]
      %v3929 = vld [vmem:[%s2 + $0x1268] sm:$0xff]
      %v3930 = vld [vmem:[%s2 + $0x1270] sm:$0xff]
      %v3931 = vld [vmem:[%s2 + $0x1278] sm:$0xff]
      %v3932 = vld [vmem:[%s2 + $0x1280] sm:$0xff]
      %v3933 = vld [vmem:[%s2 + $0x1288] sm:$0xff]
      %v3934 = vld [vmem:[%s2 + $0x1290] sm:$0xff]
      %v3935 = vld [vmem:[%s2 + $0x1298] sm:$0xff]
      %v3936 = vld [vmem:[%s2 + $0x12a0] sm:$0xff]
      %v3937 = vld [vmem:[%s2 + $0x12a8] sm:$0xff]
      %v3938 = vld [vmem:[%s2 + $0x12b0] sm:$0xff]
      %v3939 = vld [vmem:[%s2 + $0x12b8] sm:$0xff]
      %v3940 = vld [vmem:[%s2 + $0x12c0] sm:$0xff]
      %v3941 = vld [vmem:[%s2 + $0x12c8] sm:$0xff]
      %v3942 = vld [vmem:[%s2 + $0x12d0] sm:$0xff]
      %v3943 = vld [vmem:[%s2 + $0x12d8] sm:$0xff]
      %v3944 = vld [vmem:[%s2 + $0x12e0] sm:$0xff]
      %v3945 = vld [vmem:[%s2 + $0x12e8] sm:$0xff]
      %v3946 = vld [vmem:[%s2 + $0x12f0] sm:$0xff]
      %v3947 = vld [vmem:[%s2 + $0x12f8] sm:$0xff]
      %v3948 = vld [vmem:[%s2 + $0x1300] sm:$0xff]
      %v3949 = vld [vmem:[%s2 + $0x1308] sm:$0xff]
      %v3950 = vld [vmem:[%s2 + $0x1310] sm:$0xff]
      %v3951 = vld [vmem:[%s2 + $0x1318] sm:$0xff]
      %v3952 = vld [vmem:[%s2 + $0x1320] sm:$0xff]
      %v3953 = vld [vmem:[%s2 + $0x1328] sm:$0xff]
      %v3954 = vld [vmem:[%s2 + $0x1330] sm:$0xff]
      %v3955 = vld [vmem:[%s2 + $0x1338] sm:$0xff]
      %v3956 = vld [vmem:[%s2 + $0x1340] sm:$0xff]
      %v3957 = vld [vmem:[%s2 + $0x1348] sm:$0xff]
      %v3958 = vld [vmem:[%s2 + $0x1350] sm:$0xff]
      %v3959 = vld [vmem:[%s2 + $0x1358] sm:$0xff]
      %v3960 = vld [vmem:[%s2 + $0x1360] sm:$0xff]
      %v3961 = vld [vmem:[%s2 + $0x1368] sm:$0xff]
      %v3962 = vld [vmem:[%s2 + $0x1370] sm:$0xff]
      %v3963 = vld [vmem:[%s2 + $0x1378] sm:$0xff]
      %v3964 = vld [vmem:[%s2 + $0x1380] sm:$0xff]
      %v3965 = vld [vmem:[%s2 + $0x1388] sm:$0xff]
      %v3966 = vld [vmem:[%s2 + $0x1390] sm:$0xff]
      %v3967 = vld [vmem:[%s2 + $0x1398] sm:$0xff]
      %v3968 = vld [vmem:[%s2 + $0x13a0] sm:$0xff]
      %v3969 = vld [vmem:[%s2 + $0x13a8] sm:$0xff]
      %v3970 = vld [vmem:[%s2 + $0x13b0] sm:$0xff]
      %v3971 = vld [vmem:[%s2 + $0x13b8] sm:$0xff]
      %v3972 = vld [vmem:[%s2 + $0x13c0] sm:$0xff]
      %v3973 = vld [vmem:[%s2 + $0x13c8] sm:$0xff]
      %v3974 = vld [vmem:[%s2 + $0x13d0] sm:$0xff]
      %v3975 = vld [vmem:[%s2 + $0x13d8] sm:$0xff]
      %v3976 = vld [vmem:[%s2 + $0x13e0] sm:$0xff]
      %v3977 = vld [vmem:[%s2 + $0x13e8] sm:$0xff]
      %v3978 = vld [vmem:[%s2 + $0x13f0] sm:$0xff]
      %v3979 = vld [vmem:[%s2 + $0x13f8] sm:$0xff]
      %v3980 = vld [vmem:[%s2 + $0x1400] sm:$0xff]
      %v3981 = vld [vmem:[%s2 + $0x1408] sm:$0xff]
      %v3982 = vld [vmem:[%s2 + $0x1410] sm:$0xff]
      %v3983 = vld [vmem:[%s2 + $0x1418] sm:$0xff]
      %v3984 = vld [vmem:[%s2 + $0x1420] sm:$0xff]
      %v3985 = vld [vmem:[%s2 + $0x1428] sm:$0xff]
      %v3986 = vld [vmem:[%s2 + $0x1430] sm:$0xff]
      %v3987 = vld [vmem:[%s2 + $0x1438] sm:$0xff]
      %v3988 = vld [vmem:[%s2 + $0x1440] sm:$0xff]
      %v3989 = vld [vmem:[%s2 + $0x1448] sm:$0xff]
      %v3990 = vld [vmem:[%s2 + $0x1450] sm:$0xff]
      %v3991 = vld [vmem:[%s2 + $0x1458] sm:$0xff]
      %v3992 = vld [vmem:[%s2 + $0x1460] sm:$0xff]
      %v3993 = vld [vmem:[%s2 + $0x1468] sm:$0xff]
      %v3994 = vld [vmem:[%s2 + $0x1470] sm:$0xff]
      %v3995 = vld [vmem:[%s2 + $0x1478] sm:$0xff]
      %v3996 = vld [vmem:[%s2 + $0x1480] sm:$0xff]
      %v3997 = vld [vmem:[%s2 + $0x1488] sm:$0xff]
      %v3998 = vld [vmem:[%s2 + $0x1490] sm:$0xff]
      %v3999 = vld [vmem:[%s2 + $0x1498] sm:$0xff]
      %v4000 = vld [vmem:[%s2 + $0x14a0] sm:$0xff]
      %v4001 = vld [vmem:[%s2 + $0x14a8] sm:$0xff]
      %v4002 = vld [vmem:[%s2 + $0x14b0] sm:$0xff]
      %v4003 = vld [vmem:[%s2 + $0x14b8] sm:$0xff]
      %v4004 = vld [vmem:[%s2 + $0x14c0] sm:$0xff]
      %v4005 = vld [vmem:[%s2 + $0x14c8] sm:$0xff]
      %v4006 = vld [vmem:[%s2 + $0x14d0] sm:$0xff]
      %v4007 = vld [vmem:[%s2 + $0x14d8] sm:$0xff]
      %v4008 = vld [vmem:[%s2 + $0x14e0] sm:$0xff]
      %v4009 = vld [vmem:[%s2 + $0x14e8] sm:$0xff]
      %v4010 = vld [vmem:[%s2 + $0x14f0] sm:$0xff]
      %v4011 = vld [vmem:[%s2 + $0x14f8] sm:$0xff]
      %v4012 = vld [vmem:[%s2 + $0x1500] sm:$0xff]
      %v4013 = vld [vmem:[%s2 + $0x1508] sm:$0xff]
      %v4014 = vld [vmem:[%s2 + $0x1510] sm:$0xff]
      %v4015 = vld [vmem:[%s2 + $0x1518] sm:$0xff]
      %v4016 = vld [vmem:[%s2 + $0x1520] sm:$0xff]
      %v4017 = vld [vmem:[%s2 + $0x1528] sm:$0xff]
      %v4018 = vld [vmem:[%s2 + $0x1530] sm:$0xff]
      %v4019 = vld [vmem:[%s2 + $0x1538] sm:$0xff]
      %v4020 = vld [vmem:[%s2 + $0x1540] sm:$0xff]
      %v4021 = vld [vmem:[%s2 + $0x1548] sm:$0xff]
      %v4022 = vld [vmem:[%s2 + $0x1550] sm:$0xff]
      %v4023 = vld [vmem:[%s2 + $0x1558] sm:$0xff]
      %v4024 = vld [vmem:[%s2 + $0x1560] sm:$0xff]
      %v4025 = vld [vmem:[%s2 + $0x1568] sm:$0xff]
      %v4026 = vld [vmem:[%s2 + $0x1570] sm:$0xff]
      %v4027 = vld [vmem:[%s2 + $0x1578] sm:$0xff]
      %v4028 = vld [vmem:[%s2 + $0x1580] sm:$0xff]
      %v4029 = vld [vmem:[%s2 + $0x1588] sm:$0xff]
      %v4030 = vld [vmem:[%s2 + $0x1590] sm:$0xff]
      %v4031 = vld [vmem:[%s2 + $0x1598] sm:$0xff]
      %v4032 = vld [vmem:[%s2 + $0x15a0] sm:$0xff]
      %v4033 = vld [vmem:[%s2 + $0x15a8] sm:$0xff]
      %v4034 = vld [vmem:[%s2 + $0x15b0] sm:$0xff]
      %v4035 = vld [vmem:[%s2 + $0x15b8] sm:$0xff]
      %v4036 = vld [vmem:[%s2 + $0x15c0] sm:$0xff]
      %v4037 = vld [vmem:[%s2 + $0x15c8] sm:$0xff]
      %v4038 = vld [vmem:[%s2 + $0x15d0] sm:$0xff]
      %v4039 = vld [vmem:[%s2 + $0x15d8] sm:$0xff]
      %v4040 = vld [vmem:[%s2 + $0x15e0] sm:$0xff]
      %v4041 = vld [vmem:[%s2 + $0x15e8] sm:$0xff]
      %v4042 = vld [vmem:[%s2 + $0x15f0] sm:$0xff]
      %v4043 = vld [vmem:[%s2 + $0x15f8] sm:$0xff]
      %v4044 = vld [vmem:[%s2 + $0x1600] sm:$0xff]
      %v4045 = vld [vmem:[%s2 + $0x1608] sm:$0xff]
      %v4046 = vld [vmem:[%s2 + $0x1610] sm:$0xff]
      %v4047 = vld [vmem:[%s2 + $0x1618] sm:$0xff]
      %v4048 = vld [vmem:[%s2 + $0x1620] sm:$0xff]
      %v4049 = vld [vmem:[%s2 + $0x1628] sm:$0xff]
      %v4050 = vld [vmem:[%s2 + $0x1630] sm:$0xff]
      %v4051 = vld [vmem:[%s2 + $0x1638] sm:$0xff]
      %v4052 = vld [vmem:[%s2 + $0x1640] sm:$0xff]
      %v4053 = vld [vmem:[%s2 + $0x1648] sm:$0xff]
      %v4054 = vld [vmem:[%s2 + $0x1650] sm:$0xff]
      %v4055 = vld [vmem:[%s2 + $0x1658] sm:$0xff]
      %v4056 = vld [vmem:[%s2 + $0x1660] sm:$0xff]
      %v4057 = vld [vmem:[%s2 + $0x1668] sm:$0xff]
      %v4058 = vld [vmem:[%s2 + $0x1670] sm:$0xff]
      %v4059 = vld [vmem:[%s2 + $0x1678] sm:$0xff]
      %v4060 = vld [vmem:[%s2 + $0x1680] sm:$0xff]
      %v4061 = vld [vmem:[%s2 + $0x1688] sm:$0xff]
      %v4062 = vld [vmem:[%s2 + $0x1690] sm:$0xff]
      %v4063 = vld [vmem:[%s2 + $0x1698] sm:$0xff]
      %v4064 = vld [vmem:[%s2 + $0x16a0] sm:$0xff]
      %v4065 = vld [vmem:[%s2 + $0x16a8] sm:$0xff]
      %v4066 = vld [vmem:[%s2 + $0x16b0] sm:$0xff]
      %v4067 = vld [vmem:[%s2 + $0x16b8] sm:$0xff]
      %v4068 = vld [vmem:[%s2 + $0x16c0] sm:$0xff]
      %v4069 = vld [vmem:[%s2 + $0x16c8] sm:$0xff]
      %v4070 = vld [vmem:[%s2 + $0x16d0] sm:$0xff]
      %v4071 = vld [vmem:[%s2 + $0x16d8] sm:$0xff]
      %v4072 = vld [vmem:[%s2 + $0x16e0] sm:$0xff]
      %v4073 = vld [vmem:[%s2 + $0x16e8] sm:$0xff]
      %v4074 = vld [vmem:[%s2 + $0x16f0] sm:$0xff]
      %v4075 = vld [vmem:[%s2 + $0x16f8] sm:$0xff]
      %v4076 = vld [vmem:[%s2 + $0x1700] sm:$0xff]
      %v4077 = vld [vmem:[%s2 + $0x1708] sm:$0xff]
      %v4078 = vld [vmem:[%s2 + $0x1710] sm:$0xff]
      %v4079 = vld [vmem:[%s2 + $0x1718] sm:$0xff]
      %v4080 = vld [vmem:[%s2 + $0x1720] sm:$0xff]
      %v4081 = vld [vmem:[%s2 + $0x1728] sm:$0xff]
      %v4082 = vld [vmem:[%s2 + $0x1730] sm:$0xff]
      %v4083 = vld [vmem:[%s2 + $0x1738] sm:$0xff]
      %v4084 = vld [vmem:[%s2 + $0x1740] sm:$0xff]
      %v4085 = vld [vmem:[%s2 + $0x1748] sm:$0xff]
      %v4086 = vld [vmem:[%s2 + $0x1750] sm:$0xff]
      %v4087 = vld [vmem:[%s2 + $0x1758] sm:$0xff]
      %v4088 = vld [vmem:[%s2 + $0x1760] sm:$0xff]
      %v4089 = vld [vmem:[%s2 + $0x1768] sm:$0xff]
      %v4090 = vld [vmem:[%s2 + $0x1770] sm:$0xff]
      %v4091 = vld [vmem:[%s2 + $0x1778] sm:$0xff]
      %v4092 = vld [vmem:[%s2 + $0x1780] sm:$0xff]
      %v4093 = vld [vmem:[%s2 + $0x1788] sm:$0xff]
      %v4094 = vld [vmem:[%s2 + $0x1790] sm:$0xff]
      %v4095 = vld [vmem:[%s2 + $0x1798] sm:$0xff]
      %v4096 = vld [vmem:[%s2 + $0x17a0] sm:$0xff]
      %v4097 = vld [vmem:[%s2 + $0x17a8] sm:$0xff]
      %v4098 = vld [vmem:[%s2 + $0x17b0] sm:$0xff]
      %v4099 = vld [vmem:[%s2 + $0x17b8] sm:$0xff]
      %v4100 = vld [vmem:[%s2 + $0x17c0] sm:$0xff]
      %v4101 = vld [vmem:[%s2 + $0x17c8] sm:$0xff]
      %v4102 = vld [vmem:[%s2 + $0x17d0] sm:$0xff]
      %v4103 = vld [vmem:[%s2 + $0x17d8] sm:$0xff]
      %v4104 = vld [vmem:[%s2 + $0x17e0] sm:$0xff]
      %v4105 = vld [vmem:[%s2 + $0x17e8] sm:$0xff]
      %v4106 = vld [vmem:[%s2 + $0x17f0] sm:$0xff]
      %v4107 = vld [vmem:[%s2 + $0x17f8] sm:$0xff]
      %vm4108 = vcmask 1044480
      %v4109 = vrot.slane %v313, 3
      %v4110 = vrot.slane %v315, 3
      %v4111 = vsel %vm4108, %v4109, %v4110
      %v4112 = vrot.slane %v314, 3
      %v4113 = vrot.slane %v316, 3
      %v4114 = vsel %vm4108, %v4112, %v4113
      %v4115 = vrot.slane %v317, 3
      %v4116 = vsel %vm4108, %v4110, %v4115
      %v4117 = vrot.slane %v318, 3
      %v4118 = vsel %vm4108, %v4113, %v4117
      %v4119 = vrot.slane %v319, 3
      %v4120 = vsel %vm4108, %v4115, %v4119
      %v4121 = vrot.slane %v320, 3
      %v4122 = vsel %vm4108, %v4117, %v4121
      %v4123 = vrot.slane %v321, 3
      %v4124 = vsel %vm4108, %v4119, %v4123
      %v4125 = vrot.slane %v322, 3
      %v4126 = vsel %vm4108, %v4121, %v4125
      %v4127 = vrot.slane %v323, 3
      %v4128 = vsel %vm4108, %v4123, %v4127
      %v4129 = vrot.slane %v324, 3
      %v4130 = vsel %vm4108, %v4125, %v4129
      %v4131 = vrot.slane %v325, 3
      %v4132 = vsel %vm4108, %v4127, %v4131
      %v4133 = vrot.slane %v326, 3
      %v4134 = vsel %vm4108, %v4129, %v4133
      %v4135 = vrot.slane %v327, 3
      %v4136 = vsel %vm4108, %v4131, %v4135
      %v4137 = vrot.slane %v328, 3
      %v4138 = vsel %vm4108, %v4133, %v4137
      %v4139 = vrot.slane %v329, 3
      %v4140 = vsel %vm4108, %v4135, %v4139
      %v4141 = vrot.slane %v330, 3
      %v4142 = vsel %vm4108, %v4137, %v4141
      %v4143 = vrot.slane %v331, 3
      %v4144 = vsel %vm4108, %v4139, %v4143
      %v4145 = vrot.slane %v332, 3
      %v4146 = vsel %vm4108, %v4141, %v4145
      %v4147 = vrot.slane %v333, 3
      %v4148 = vsel %vm4108, %v4143, %v4147
      %v4149 = vrot.slane %v334, 3
      %v4150 = vsel %vm4108, %v4145, %v4149
      %v4151 = vrot.slane %v335, 3
      %v4152 = vsel %vm4108, %v4147, %v4151
      %v4153 = vrot.slane %v336, 3
      %v4154 = vsel %vm4108, %v4149, %v4153
      %v4155 = vrot.slane %v337, 3
      %v4156 = vsel %vm4108, %v4151, %v4155
      %v4157 = vrot.slane %v338, 3
      %v4158 = vsel %vm4108, %v4153, %v4157
      %v4159 = vrot.slane %v339, 3
      %v4160 = vsel %vm4108, %v4155, %v4159
      %v4161 = vrot.slane %v340, 3
      %v4162 = vsel %vm4108, %v4157, %v4161
      %v4163 = vrot.slane %v341, 3
      %v4164 = vsel %vm4108, %v4159, %v4163
      %v4165 = vrot.slane %v342, 3
      %v4166 = vsel %vm4108, %v4161, %v4165
      %v4167 = vrot.slane %v343, 3
      %v4168 = vsel %vm4108, %v4163, %v4167
      %v4169 = vrot.slane %v344, 3
      %v4170 = vsel %vm4108, %v4165, %v4169
      %v4171 = vrot.slane %v345, 3
      %v4172 = vsel %vm4108, %v4167, %v4171
      %v4173 = vrot.slane %v346, 3
      %v4174 = vsel %vm4108, %v4169, %v4173
      %v4175 = vrot.slane %v347, 3
      %v4176 = vsel %vm4108, %v4171, %v4175
      %v4177 = vrot.slane %v348, 3
      %v4178 = vsel %vm4108, %v4173, %v4177
      %v4179 = vrot.slane %v349, 3
      %v4180 = vsel %vm4108, %v4175, %v4179
      %v4181 = vrot.slane %v350, 3
      %v4182 = vsel %vm4108, %v4177, %v4181
      %v4183 = vrot.slane %v351, 3
      %v4184 = vsel %vm4108, %v4179, %v4183
      %v4185 = vrot.slane %v352, 3
      %v4186 = vsel %vm4108, %v4181, %v4185
      %v4187 = vrot.slane %v353, 3
      %v4188 = vsel %vm4108, %v4183, %v4187
      %v4189 = vrot.slane %v354, 3
      %v4190 = vsel %vm4108, %v4185, %v4189
      %v4191 = vrot.slane %v355, 3
      %v4192 = vsel %vm4108, %v4187, %v4191
      %v4193 = vrot.slane %v356, 3
      %v4194 = vsel %vm4108, %v4189, %v4193
      %v4195 = vrot.slane %v357, 3
      %v4196 = vsel %vm4108, %v4191, %v4195
      %v4197 = vrot.slane %v358, 3
      %v4198 = vsel %vm4108, %v4193, %v4197
      %v4199 = vrot.slane %v359, 3
      %v4200 = vsel %vm4108, %v4195, %v4199
      %v4201 = vrot.slane %v360, 3
      %v4202 = vsel %vm4108, %v4197, %v4201
      %v4203 = vrot.slane %v361, 3
      %v4204 = vsel %vm4108, %v4199, %v4203
      %v4205 = vrot.slane %v362, 3
      %v4206 = vsel %vm4108, %v4201, %v4205
      %v4207 = vrot.slane %v363, 3
      %v4208 = vsel %vm4108, %v4203, %v4207
      %v4209 = vrot.slane %v364, 3
      %v4210 = vsel %vm4108, %v4205, %v4209
      %v4211 = vrot.slane %v365, 3
      %v4212 = vsel %vm4108, %v4207, %v4211
      %v4213 = vrot.slane %v366, 3
      %v4214 = vsel %vm4108, %v4209, %v4213
      %v4215 = vrot.slane %v367, 3
      %v4216 = vsel %vm4108, %v4211, %v4215
      %v4217 = vrot.slane %v368, 3
      %v4218 = vsel %vm4108, %v4213, %v4217
      %v4219 = vrot.slane %v369, 3
      %v4220 = vsel %vm4108, %v4215, %v4219
      %v4221 = vrot.slane %v370, 3
      %v4222 = vsel %vm4108, %v4217, %v4221
      %v4223 = vrot.slane %v371, 3
      %v4224 = vsel %vm4108, %v4219, %v4223
      %v4225 = vrot.slane %v372, 3
      %v4226 = vsel %vm4108, %v4221, %v4225
      %v4227 = vrot.slane %v373, 3
      %v4228 = vsel %vm4108, %v4223, %v4227
      %v4229 = vrot.slane %v374, 3
      %v4230 = vsel %vm4108, %v4225, %v4229
      %v4231 = vrot.slane %v375, 3
      %v4232 = vsel %vm4108, %v4227, %v4231
      %v4233 = vrot.slane %v376, 3
      %v4234 = vsel %vm4108, %v4229, %v4233
      %v4235 = vrot.slane %v569, 3
      %v4236 = vsel %vm4108, %v4231, %v4235
      %v4237 = vrot.slane %v570, 3
      %v4238 = vsel %vm4108, %v4233, %v4237
      %4303 = vmatprep.subr.mxu0 %v4007
      %4304 = vmatpush1.msra.mxu0 %v4006
      %4305 = vmatprep.subr.mxu0 %v4001
      %4306 = vmatpush1.msra.mxu0 %v4000
      %4307 = vmatprep.subr.mxu0 %v3995
      %4308 = vmatpush1.msra.mxu0 %v3994
      %4309 = vmatprep.subr.mxu0 %v3989
      %4310 = vmatpush1.msra.mxu0 %v3988
      %4311 = vmatprep.subr.mxu0 %v3983
      %4312 = vmatpush1.msra.mxu0 %v3982
      %4313 = vmatprep.subr.mxu0 %v3977
      %4314 = vmatpush1.msra.mxu0 %v3976
      %4315 = vmatprep.subr.mxu0 %v3971
      %4316 = vmatpush1.msra.mxu0 %v3970
      %4317 = vmatprep.subr.mxu0 %v3965
      %4318 = vmatpush1.msra.mxu0 %v3964
      %4319 = vmatprep.subr.mxu0 %v3959
      %4320 = vmatpush1.msra.mxu0 %v3958
      %4321 = vmatprep.subr.mxu0 %v3953
      %4322 = vmatpush1.msra.mxu0 %v3952
      %4323 = vmatprep.subr.mxu0 %v3947
      %4324 = vmatpush1.msra.mxu0 %v3946
      %4325 = vmatprep.subr.mxu0 %v3941
      %4326 = vmatpush1.msra.mxu0 %v3940
      %4327 = vmatprep.subr.mxu0 %v3935
      %4328 = vmatpush1.msra.mxu0 %v3934
      %4329 = vmatprep.subr.mxu0 %v3929
      %4330 = vmatpush1.msra.mxu0 %v3928
      %4331 = vmatprep.subr.mxu0 %v3923
      %4332 = vmatpush1.msra.mxu0 %v3922
      %4333 = vmatprep.subr.mxu0 %v3917
      %4334 = vmatpush1.msra.mxu0 %v3916
      %4335 = vmatprep.subr.mxu0 %v4103
      %4336 = vmatpush2.msra.mxu0 %v4102
      %4337 = vmatprep.subr.mxu0 %v4097
      %4338 = vmatpush2.msra.mxu0 %v4096
      %4339 = vmatprep.subr.mxu0 %v4091
      %4340 = vmatpush2.msra.mxu0 %v4090
      %4341 = vmatprep.subr.mxu0 %v4085
      %4342 = vmatpush2.msra.mxu0 %v4084
      %4343 = vmatprep.subr.mxu0 %v4079
      %4344 = vmatpush2.msra.mxu0 %v4078
      %4345 = vmatprep.subr.mxu0 %v4073
      %4346 = vmatpush2.msra.mxu0 %v4072
      %4347 = vmatprep.subr.mxu0 %v4067
      %4348 = vmatpush2.msra.mxu0 %v4066
      %4349 = vmatprep.subr.mxu0 %v4061
      %4350 = vmatpush2.msra.mxu0 %v4060
      %4351 = vmatprep.subr.mxu0 %v4055
      %4352 = vmatpush2.msra.mxu0 %v4054
      %4353 = vmatprep.subr.mxu0 %v4049
      %4354 = vmatpush2.msra.mxu0 %v4048
      %4355 = vmatprep.subr.mxu0 %v4043
      %4356 = vmatpush2.msra.mxu0 %v4042
      %4357 = vmatprep.subr.mxu0 %v4037
      %4358 = vmatpush2.msra.mxu0 %v4036
      %4359 = vmatprep.subr.mxu0 %v4031
      %4360 = vmatpush2.msra.mxu0 %v4030
      %4361 = vmatprep.subr.mxu0 %v4025
      %4362 = vmatpush2.msra.mxu0 %v4024
      %4363 = vmatprep.subr.mxu0 %v4019
      %4364 = vmatpush2.msra.mxu0 %v4018
      %4365 = vmatprep.subr.mxu0 %v4013
      %4366 = vmatpush2.msra.mxu0 %v4012
      %4367 = vmatprep.mubr.f32.mxu0 %v4114
      %4368 = vmatmul.mubr.f32.gmra.mxu0 %v4111
      %v4369 = vpop.f32.mrf.mxu0
      %v4370 = vadd.f32 0.0, %v4369
      %v4371 = vpop.f32.mrf.mxu0
      %v4372 = vadd.f32 0.0, %v4371
      %4373 = vmatprep.mubr.f32.mxu0 %v4118
      %4374 = vmatmul.mubr.f32.gmra.mxu0 %v4116
      %v4375 = vpop.f32.mrf.mxu0
      %v4376 = vadd.f32 0.0, %v4375
      %v4377 = vpop.f32.mrf.mxu0
      %v4378 = vadd.f32 0.0, %v4377
      %4379 = vmatprep.mubr.f32.mxu0 %v4122
      %4380 = vmatmul.mubr.f32.gmra.mxu0 %v4120
      %v4381 = vpop.f32.mrf.mxu0
      %v4382 = vadd.f32 0.0, %v4381
      %v4383 = vpop.f32.mrf.mxu0
      %v4384 = vadd.f32 0.0, %v4383
      %4385 = vmatprep.mubr.f32.mxu0 %v4126
      %4386 = vmatmul.mubr.f32.gmra.mxu0 %v4124
      %v4387 = vpop.f32.mrf.mxu0
      %v4388 = vadd.f32 0.0, %v4387
      %v4389 = vpop.f32.mrf.mxu0
      %v4390 = vadd.f32 0.0, %v4389
      %4391 = vmatprep.mubr.f32.mxu0 %v4130
      %4392 = vmatmul.mubr.f32.gmra.mxu0 %v4128
      %v4393 = vpop.f32.mrf.mxu0
      %v4394 = vadd.f32 0.0, %v4393
      %v4395 = vpop.f32.mrf.mxu0
      %v4396 = vadd.f32 0.0, %v4395
      %4397 = vmatprep.mubr.f32.mxu0 %v4134
      %4398 = vmatmul.mubr.f32.gmra.mxu0 %v4132
      %v4399 = vpop.f32.mrf.mxu0
      %v4400 = vadd.f32 0.0, %v4399
      %v4401 = vpop.f32.mrf.mxu0
      %v4402 = vadd.f32 0.0, %v4401
      %4403 = vmatprep.mubr.f32.mxu0 %v4138
      %4404 = vmatmul.mubr.f32.gmra.mxu0 %v4136
      %v4405 = vpop.f32.mrf.mxu0
      %v4406 = vadd.f32 0.0, %v4405
      %v4407 = vpop.f32.mrf.mxu0
      %v4408 = vadd.f32 0.0, %v4407
      %4409 = vmatprep.mubr.f32.mxu0 %v4142
      %4410 = vmatmul.mubr.f32.gmra.mxu0 %v4140
      %v4411 = vpop.f32.mrf.mxu0
      %v4412 = vadd.f32 0.0, %v4411
      %v4413 = vpop.f32.mrf.mxu0
      %v4414 = vadd.f32 0.0, %v4413
      %4415 = vmatprep.mubr.f32.mxu0 %v4146
      %4416 = vmatmul.mubr.f32.gmra.mxu0 %v4144
      %v4417 = vpop.f32.mrf.mxu0
      %v4418 = vadd.f32 0.0, %v4417
      %v4419 = vpop.f32.mrf.mxu0
      %v4420 = vadd.f32 0.0, %v4419
      %4421 = vmatprep.mubr.f32.mxu0 %v4150
      %4422 = vmatmul.mubr.f32.gmra.mxu0 %v4148
      %v4423 = vpop.f32.mrf.mxu0
      %v4424 = vadd.f32 0.0, %v4423
      %v4425 = vpop.f32.mrf.mxu0
      %v4426 = vadd.f32 0.0, %v4425
      %4427 = vmatprep.mubr.f32.mxu0 %v4154
      %4428 = vmatmul.mubr.f32.gmra.mxu0 %v4152
      %v4429 = vpop.f32.mrf.mxu0
      %v4430 = vadd.f32 0.0, %v4429
      %v4431 = vpop.f32.mrf.mxu0
      %v4432 = vadd.f32 0.0, %v4431
      %4433 = vmatprep.mubr.f32.mxu0 %v4158
      %4434 = vmatmul.mubr.f32.gmra.mxu0 %v4156
      %v4435 = vpop.f32.mrf.mxu0
      %v4436 = vadd.f32 0.0, %v4435
      %v4437 = vpop.f32.mrf.mxu0
      %v4438 = vadd.f32 0.0, %v4437
      %4439 = vmatprep.mubr.f32.mxu0 %v4162
      %4440 = vmatmul.mubr.f32.gmra.mxu0 %v4160
      %v4441 = vpop.f32.mrf.mxu0
      %v4442 = vadd.f32 0.0, %v4441
      %v4443 = vpop.f32.mrf.mxu0
      %v4444 = vadd.f32 0.0, %v4443
      %4445 = vmatprep.mubr.f32.mxu0 %v4166
      %4446 = vmatmul.mubr.f32.gmra.mxu0 %v4164
      %v4447 = vpop.f32.mrf.mxu0
      %v4448 = vadd.f32 0.0, %v4447
      %v4449 = vpop.f32.mrf.mxu0
      %v4450 = vadd.f32 0.0, %v4449
      %4451 = vmatprep.mubr.f32.mxu0 %v4170
      %4452 = vmatmul.mubr.f32.gmra.mxu0 %v4168
      %v4453 = vpop.f32.mrf.mxu0
      %v4454 = vadd.f32 0.0, %v4453
      %v4455 = vpop.f32.mrf.mxu0
      %v4456 = vadd.f32 0.0, %v4455
      %4457 = vmatprep.mubr.f32.mxu0 %v4174
      %4458 = vmatmul.mubr.f32.gmra.mxu0 %v4172
      %v4459 = vpop.f32.mrf.mxu0
      %v4460 = vadd.f32 0.0, %v4459
      %v4461 = vpop.f32.mrf.mxu0
      %v4462 = vadd.f32 0.0, %v4461
      %4463 = vmatprep.mubr.f32.mxu0 %v4178
      %4464 = vmatmul.mubr.f32.gmra.mxu0 %v4176
      %v4465 = vpop.f32.mrf.mxu0
      %v4466 = vadd.f32 0.0, %v4465
      %v4467 = vpop.f32.mrf.mxu0
      %v4468 = vadd.f32 0.0, %v4467
      %4469 = vmatprep.mubr.f32.mxu0 %v4182
      %4470 = vmatmul.mubr.f32.gmra.mxu0 %v4180
      %v4471 = vpop.f32.mrf.mxu0
      %v4472 = vadd.f32 0.0, %v4471
      %v4473 = vpop.f32.mrf.mxu0
      %v4474 = vadd.f32 0.0, %v4473
      %4475 = vmatprep.mubr.f32.mxu0 %v4186
      %4476 = vmatmul.mubr.f32.gmra.mxu0 %v4184
      %v4477 = vpop.f32.mrf.mxu0
      %v4478 = vadd.f32 0.0, %v4477
      %v4479 = vpop.f32.mrf.mxu0
      %v4480 = vadd.f32 0.0, %v4479
      %4481 = vmatprep.mubr.f32.mxu0 %v4190
      %4482 = vmatmul.mubr.f32.gmra.mxu0 %v4188
      %v4483 = vpop.f32.mrf.mxu0
      %v4484 = vadd.f32 0.0, %v4483
      %v4485 = vpop.f32.mrf.mxu0
      %v4486 = vadd.f32 0.0, %v4485
      %4487 = vmatprep.mubr.f32.mxu0 %v4194
      %4488 = vmatmul.mubr.f32.gmra.mxu0 %v4192
      %v4489 = vpop.f32.mrf.mxu0
      %v4490 = vadd.f32 0.0, %v4489
      %v4491 = vpop.f32.mrf.mxu0
      %v4492 = vadd.f32 0.0, %v4491
      %4493 = vmatprep.mubr.f32.mxu0 %v4198
      %4494 = vmatmul.mubr.f32.gmra.mxu0 %v4196
      %v4495 = vpop.f32.mrf.mxu0
      %v4496 = vadd.f32 0.0, %v4495
      %v4497 = vpop.f32.mrf.mxu0
      %v4498 = vadd.f32 0.0, %v4497
      %4499 = vmatprep.mubr.f32.mxu0 %v4202
      %4500 = vmatmul.mubr.f32.gmra.mxu0 %v4200
      %v4501 = vpop.f32.mrf.mxu0
      %v4502 = vadd.f32 0.0, %v4501
      %v4503 = vpop.f32.mrf.mxu0
      %v4504 = vadd.f32 0.0, %v4503
      %4505 = vmatprep.mubr.f32.mxu0 %v4206
      %4506 = vmatmul.mubr.f32.gmra.mxu0 %v4204
      %v4507 = vpop.f32.mrf.mxu0
      %v4508 = vadd.f32 0.0, %v4507
      %v4509 = vpop.f32.mrf.mxu0
      %v4510 = vadd.f32 0.0, %v4509
      %4511 = vmatprep.mubr.f32.mxu0 %v4210
      %4512 = vmatmul.mubr.f32.gmra.mxu0 %v4208
      %v4513 = vpop.f32.mrf.mxu0
      %v4514 = vadd.f32 0.0, %v4513
      %v4515 = vpop.f32.mrf.mxu0
      %v4516 = vadd.f32 0.0, %v4515
      %4517 = vmatprep.mubr.f32.mxu0 %v4214
      %4518 = vmatmul.mubr.f32.gmra.mxu0 %v4212
      %v4519 = vpop.f32.mrf.mxu0
      %v4520 = vadd.f32 0.0, %v4519
      %v4521 = vpop.f32.mrf.mxu0
      %v4522 = vadd.f32 0.0, %v4521
      %4523 = vmatprep.mubr.f32.mxu0 %v4218
      %4524 = vmatmul.mubr.f32.gmra.mxu0 %v4216
      %v4525 = vpop.f32.mrf.mxu0
      %v4526 = vadd.f32 0.0, %v4525
      %v4527 = vpop.f32.mrf.mxu0
      %v4528 = vadd.f32 0.0, %v4527
      %4529 = vmatprep.mubr.f32.mxu0 %v4222
      %4530 = vmatmul.mubr.f32.gmra.mxu0 %v4220
      %v4531 = vpop.f32.mrf.mxu0
      %v4532 = vadd.f32 0.0, %v4531
      %v4533 = vpop.f32.mrf.mxu0
      %v4534 = vadd.f32 0.0, %v4533
      %4535 = vmatprep.mubr.f32.mxu0 %v4226
      %4536 = vmatmul.mubr.f32.gmra.mxu0 %v4224
      %v4537 = vpop.f32.mrf.mxu0
      %v4538 = vadd.f32 0.0, %v4537
      %v4539 = vpop.f32.mrf.mxu0
      %v4540 = vadd.f32 0.0, %v4539
      %4541 = vmatprep.mubr.f32.mxu0 %v4230
      %4542 = vmatmul.mubr.f32.gmra.mxu0 %v4228
      %v4543 = vpop.f32.mrf.mxu0
      %v4544 = vadd.f32 0.0, %v4543
      %v4545 = vpop.f32.mrf.mxu0
      %v4546 = vadd.f32 0.0, %v4545
      %4547 = vmatprep.mubr.f32.mxu0 %v4234
      %4548 = vmatmul.mubr.f32.gmra.mxu0 %v4232
      %v4549 = vpop.f32.mrf.mxu0
      %v4550 = vadd.f32 0.0, %v4549
      %v4551 = vpop.f32.mrf.mxu0
      %v4552 = vadd.f32 0.0, %v4551
      %4553 = vmatprep.mubr.f32.mxu0 %v4238
      %4554 = vmatmul.mubr.f32.gmra.mxu0 %v4236
      %v4555 = vpop.f32.mrf.mxu0
      %v4556 = vadd.f32 0.0, %v4555
      %v4557 = vpop.f32.mrf.mxu0
      %v4558 = vadd.f32 0.0, %v4557
      %4559 = vdwg.mxu0
      %4560 = vmatprep.subr.mxu0 %v4009
      %4561 = vmatpush1.msra.mxu0 %v4008
      %4562 = vmatprep.subr.mxu0 %v4003
      %4563 = vmatpush1.msra.mxu0 %v4002
      %4564 = vmatprep.subr.mxu0 %v3997
      %4565 = vmatpush1.msra.mxu0 %v3996
      %4566 = vmatprep.subr.mxu0 %v3991
      %4567 = vmatpush1.msra.mxu0 %v3990
      %4568 = vmatprep.subr.mxu0 %v3985
      %4569 = vmatpush1.msra.mxu0 %v3984
      %4570 = vmatprep.subr.mxu0 %v3979
      %4571 = vmatpush1.msra.mxu0 %v3978
      %4572 = vmatprep.subr.mxu0 %v3973
      %4573 = vmatpush1.msra.mxu0 %v3972
      %4574 = vmatprep.subr.mxu0 %v3967
      %4575 = vmatpush1.msra.mxu0 %v3966
      %4576 = vmatprep.subr.mxu0 %v3961
      %4577 = vmatpush1.msra.mxu0 %v3960
      %4578 = vmatprep.subr.mxu0 %v3955
      %4579 = vmatpush1.msra.mxu0 %v3954
      %4580 = vmatprep.subr.mxu0 %v3949
      %4581 = vmatpush1.msra.mxu0 %v3948
      %4582 = vmatprep.subr.mxu0 %v3943
      %4583 = vmatpush1.msra.mxu0 %v3942
      %4584 = vmatprep.subr.mxu0 %v3937
      %4585 = vmatpush1.msra.mxu0 %v3936
      %4586 = vmatprep.subr.mxu0 %v3931
      %4587 = vmatpush1.msra.mxu0 %v3930
      %4588 = vmatprep.subr.mxu0 %v3925
      %4589 = vmatpush1.msra.mxu0 %v3924
      %4590 = vmatprep.subr.mxu0 %v3919
      %4591 = vmatpush1.msra.mxu0 %v3918
      %4592 = vmatprep.subr.mxu0 %v4105
      %4593 = vmatpush2.msra.mxu0 %v4104
      %4594 = vmatprep.subr.mxu0 %v4099
      %4595 = vmatpush2.msra.mxu0 %v4098
      %4596 = vmatprep.subr.mxu0 %v4093
      %4597 = vmatpush2.msra.mxu0 %v4092
      %4598 = vmatprep.subr.mxu0 %v4087
      %4599 = vmatpush2.msra.mxu0 %v4086
      %4600 = vmatprep.subr.mxu0 %v4081
      %4601 = vmatpush2.msra.mxu0 %v4080
      %4602 = vmatprep.subr.mxu0 %v4075
      %4603 = vmatpush2.msra.mxu0 %v4074
      %4604 = vmatprep.subr.mxu0 %v4069
      %4605 = vmatpush2.msra.mxu0 %v4068
      %4606 = vmatprep.subr.mxu0 %v4063
      %4607 = vmatpush2.msra.mxu0 %v4062
      %4608 = vmatprep.subr.mxu0 %v4057
      %4609 = vmatpush2.msra.mxu0 %v4056
      %4610 = vmatprep.subr.mxu0 %v4051
      %4611 = vmatpush2.msra.mxu0 %v4050
      %4612 = vmatprep.subr.mxu0 %v4045
      %4613 = vmatpush2.msra.mxu0 %v4044
      %4614 = vmatprep.subr.mxu0 %v4039
      %4615 = vmatpush2.msra.mxu0 %v4038
      %4616 = vmatprep.subr.mxu0 %v4033
      %4617 = vmatpush2.msra.mxu0 %v4032
      %4618 = vmatprep.subr.mxu0 %v4027
      %4619 = vmatpush2.msra.mxu0 %v4026
      %4620 = vmatprep.subr.mxu0 %v4021
      %4621 = vmatpush2.msra.mxu0 %v4020
      %4622 = vmatprep.subr.mxu0 %v4015
      %4623 = vmatpush2.msra.mxu0 %v4014
      %4624 = vmatprep.mubr.f32.mxu0 %v4114
      %4625 = vmatmul.mubr.f32.gmra.mxu0 %v4111
      %v4626 = vpop.f32.mrf.mxu0
      %v4627 = vadd.f32 0.0, %v4626
      %v4628 = vpop.f32.mrf.mxu0
      %v4629 = vadd.f32 0.0, %v4628
      %4630 = vmatprep.mubr.f32.mxu0 %v4118
      %4631 = vmatmul.mubr.f32.gmra.mxu0 %v4116
      %v4632 = vpop.f32.mrf.mxu0
      %v4633 = vadd.f32 0.0, %v4632
      %v4634 = vpop.f32.mrf.mxu0
      %v4635 = vadd.f32 0.0, %v4634
      %4636 = vmatprep.mubr.f32.mxu0 %v4122
      %4637 = vmatmul.mubr.f32.gmra.mxu0 %v4120
      %v4638 = vpop.f32.mrf.mxu0
      %v4639 = vadd.f32 0.0, %v4638
      %v4640 = vpop.f32.mrf.mxu0
      %v4641 = vadd.f32 0.0, %v4640
      %4642 = vmatprep.mubr.f32.mxu0 %v4126
      %4643 = vmatmul.mubr.f32.gmra.mxu0 %v4124
      %v4644 = vpop.f32.mrf.mxu0
      %v4645 = vadd.f32 0.0, %v4644
      %v4646 = vpop.f32.mrf.mxu0
      %v4647 = vadd.f32 0.0, %v4646
      %4648 = vmatprep.mubr.f32.mxu0 %v4130
      %4649 = vmatmul.mubr.f32.gmra.mxu0 %v4128
      %v4650 = vpop.f32.mrf.mxu0
      %v4651 = vadd.f32 0.0, %v4650
      %v4652 = vpop.f32.mrf.mxu0
      %v4653 = vadd.f32 0.0, %v4652
      %4654 = vmatprep.mubr.f32.mxu0 %v4134
      %4655 = vmatmul.mubr.f32.gmra.mxu0 %v4132
      %v4656 = vpop.f32.mrf.mxu0
      %v4657 = vadd.f32 0.0, %v4656
      %v4658 = vpop.f32.mrf.mxu0
      %v4659 = vadd.f32 0.0, %v4658
      %4660 = vmatprep.mubr.f32.mxu0 %v4138
      %4661 = vmatmul.mubr.f32.gmra.mxu0 %v4136
      %v4662 = vpop.f32.mrf.mxu0
      %v4663 = vadd.f32 0.0, %v4662
      %v4664 = vpop.f32.mrf.mxu0
      %v4665 = vadd.f32 0.0, %v4664
      %4666 = vmatprep.mubr.f32.mxu0 %v4142
      %4667 = vmatmul.mubr.f32.gmra.mxu0 %v4140
      %v4668 = vpop.f32.mrf.mxu0
      %v4669 = vadd.f32 0.0, %v4668
      %v4670 = vpop.f32.mrf.mxu0
      %v4671 = vadd.f32 0.0, %v4670
      %4672 = vmatprep.mubr.f32.mxu0 %v4146
      %4673 = vmatmul.mubr.f32.gmra.mxu0 %v4144
      %v4674 = vpop.f32.mrf.mxu0
      %v4675 = vadd.f32 0.0, %v4674
      %v4676 = vpop.f32.mrf.mxu0
      %v4677 = vadd.f32 0.0, %v4676
      %4678 = vmatprep.mubr.f32.mxu0 %v4150
      %4679 = vmatmul.mubr.f32.gmra.mxu0 %v4148
      %v4680 = vpop.f32.mrf.mxu0
      %v4681 = vadd.f32 0.0, %v4680
      %v4682 = vpop.f32.mrf.mxu0
      %v4683 = vadd.f32 0.0, %v4682
      %4684 = vmatprep.mubr.f32.mxu0 %v4154
      %4685 = vmatmul.mubr.f32.gmra.mxu0 %v4152
      %v4686 = vpop.f32.mrf.mxu0
      %v4687 = vadd.f32 0.0, %v4686
      %v4688 = vpop.f32.mrf.mxu0
      %v4689 = vadd.f32 0.0, %v4688
      %4690 = vmatprep.mubr.f32.mxu0 %v4158
      %4691 = vmatmul.mubr.f32.gmra.mxu0 %v4156
      %v4692 = vpop.f32.mrf.mxu0
      %v4693 = vadd.f32 0.0, %v4692
      %v4694 = vpop.f32.mrf.mxu0
      %v4695 = vadd.f32 0.0, %v4694
      %4696 = vmatprep.mubr.f32.mxu0 %v4162
      %4697 = vmatmul.mubr.f32.gmra.mxu0 %v4160
      %v4698 = vpop.f32.mrf.mxu0
      %v4699 = vadd.f32 0.0, %v4698
      %v4700 = vpop.f32.mrf.mxu0
      %v4701 = vadd.f32 0.0, %v4700
      %4702 = vmatprep.mubr.f32.mxu0 %v4166
      %4703 = vmatmul.mubr.f32.gmra.mxu0 %v4164
      %v4704 = vpop.f32.mrf.mxu0
      %v4705 = vadd.f32 0.0, %v4704
      %v4706 = vpop.f32.mrf.mxu0
      %v4707 = vadd.f32 0.0, %v4706
      %4708 = vmatprep.mubr.f32.mxu0 %v4170
      %4709 = vmatmul.mubr.f32.gmra.mxu0 %v4168
      %v4710 = vpop.f32.mrf.mxu0
      %v4711 = vadd.f32 0.0, %v4710
      %v4712 = vpop.f32.mrf.mxu0
      %v4713 = vadd.f32 0.0, %v4712
      %4714 = vmatprep.mubr.f32.mxu0 %v4174
      %4715 = vmatmul.mubr.f32.gmra.mxu0 %v4172
      %v4716 = vpop.f32.mrf.mxu0
      %v4717 = vadd.f32 0.0, %v4716
      %v4718 = vpop.f32.mrf.mxu0
      %v4719 = vadd.f32 0.0, %v4718
      %4720 = vmatprep.mubr.f32.mxu0 %v4178
      %4721 = vmatmul.mubr.f32.gmra.mxu0 %v4176
      %v4722 = vpop.f32.mrf.mxu0
      %v4723 = vadd.f32 0.0, %v4722
      %v4724 = vpop.f32.mrf.mxu0
      %v4725 = vadd.f32 0.0, %v4724
      %4726 = vmatprep.mubr.f32.mxu0 %v4182
      %4727 = vmatmul.mubr.f32.gmra.mxu0 %v4180
      %v4728 = vpop.f32.mrf.mxu0
      %v4729 = vadd.f32 0.0, %v4728
      %v4730 = vpop.f32.mrf.mxu0
      %v4731 = vadd.f32 0.0, %v4730
      %4732 = vmatprep.mubr.f32.mxu0 %v4186
      %4733 = vmatmul.mubr.f32.gmra.mxu0 %v4184
      %v4734 = vpop.f32.mrf.mxu0
      %v4735 = vadd.f32 0.0, %v4734
      %v4736 = vpop.f32.mrf.mxu0
      %v4737 = vadd.f32 0.0, %v4736
      %4738 = vmatprep.mubr.f32.mxu0 %v4190
      %4739 = vmatmul.mubr.f32.gmra.mxu0 %v4188
      %v4740 = vpop.f32.mrf.mxu0
      %v4741 = vadd.f32 0.0, %v4740
      %v4742 = vpop.f32.mrf.mxu0
      %v4743 = vadd.f32 0.0, %v4742
      %4744 = vmatprep.mubr.f32.mxu0 %v4194
      %4745 = vmatmul.mubr.f32.gmra.mxu0 %v4192
      %v4746 = vpop.f32.mrf.mxu0
      %v4747 = vadd.f32 0.0, %v4746
      %v4748 = vpop.f32.mrf.mxu0
      %v4749 = vadd.f32 0.0, %v4748
      %4750 = vmatprep.mubr.f32.mxu0 %v4198
      %4751 = vmatmul.mubr.f32.gmra.mxu0 %v4196
      %v4752 = vpop.f32.mrf.mxu0
      %v4753 = vadd.f32 0.0, %v4752
      %v4754 = vpop.f32.mrf.mxu0
      %v4755 = vadd.f32 0.0, %v4754
      %4756 = vmatprep.mubr.f32.mxu0 %v4202
      %4757 = vmatmul.mubr.f32.gmra.mxu0 %v4200
      %v4758 = vpop.f32.mrf.mxu0
      %v4759 = vadd.f32 0.0, %v4758
      %v4760 = vpop.f32.mrf.mxu0
      %v4761 = vadd.f32 0.0, %v4760
      %4762 = vmatprep.mubr.f32.mxu0 %v4206
      %4763 = vmatmul.mubr.f32.gmra.mxu0 %v4204
      %v4764 = vpop.f32.mrf.mxu0
      %v4765 = vadd.f32 0.0, %v4764
      %v4766 = vpop.f32.mrf.mxu0
      %v4767 = vadd.f32 0.0, %v4766
      %4768 = vmatprep.mubr.f32.mxu0 %v4210
      %4769 = vmatmul.mubr.f32.gmra.mxu0 %v4208
      %v4770 = vpop.f32.mrf.mxu0
      %v4771 = vadd.f32 0.0, %v4770
      %v4772 = vpop.f32.mrf.mxu0
      %v4773 = vadd.f32 0.0, %v4772
      %4774 = vmatprep.mubr.f32.mxu0 %v4214
      %4775 = vmatmul.mubr.f32.gmra.mxu0 %v4212
      %v4776 = vpop.f32.mrf.mxu0
      %v4777 = vadd.f32 0.0, %v4776
      %v4778 = vpop.f32.mrf.mxu0
      %v4779 = vadd.f32 0.0, %v4778
      %4780 = vmatprep.mubr.f32.mxu0 %v4218
      %4781 = vmatmul.mubr.f32.gmra.mxu0 %v4216
      %v4782 = vpop.f32.mrf.mxu0
      %v4783 = vadd.f32 0.0, %v4782
      %v4784 = vpop.f32.mrf.mxu0
      %v4785 = vadd.f32 0.0, %v4784
      %4786 = vmatprep.mubr.f32.mxu0 %v4222
      %4787 = vmatmul.mubr.f32.gmra.mxu0 %v4220
      %v4788 = vpop.f32.mrf.mxu0
      %v4789 = vadd.f32 0.0, %v4788
      %v4790 = vpop.f32.mrf.mxu0
      %v4791 = vadd.f32 0.0, %v4790
      %4792 = vmatprep.mubr.f32.mxu0 %v4226
      %4793 = vmatmul.mubr.f32.gmra.mxu0 %v4224
      %v4794 = vpop.f32.mrf.mxu0
      %v4795 = vadd.f32 0.0, %v4794
      %v4796 = vpop.f32.mrf.mxu0
      %v4797 = vadd.f32 0.0, %v4796
      %4798 = vmatprep.mubr.f32.mxu0 %v4230
      %4799 = vmatmul.mubr.f32.gmra.mxu0 %v4228
      %v4800 = vpop.f32.mrf.mxu0
      %v4801 = vadd.f32 0.0, %v4800
      %v4802 = vpop.f32.mrf.mxu0
      %v4803 = vadd.f32 0.0, %v4802
      %4804 = vmatprep.mubr.f32.mxu0 %v4234
      %4805 = vmatmul.mubr.f32.gmra.mxu0 %v4232
      %v4806 = vpop.f32.mrf.mxu0
      %v4807 = vadd.f32 0.0, %v4806
      %v4808 = vpop.f32.mrf.mxu0
      %v4809 = vadd.f32 0.0, %v4808
      %4810 = vmatprep.mubr.f32.mxu0 %v4238
      %4811 = vmatmul.mubr.f32.gmra.mxu0 %v4236
      %v4812 = vpop.f32.mrf.mxu0
      %v4813 = vadd.f32 0.0, %v4812
      %v4814 = vpop.f32.mrf.mxu0
      %v4815 = vadd.f32 0.0, %v4814
      %4816 = vdwg.mxu0
      %4817 = vmatprep.subr.mxu0 %v4011
      %4818 = vmatpush1.msra.mxu0 %v4010
      %4819 = vmatprep.subr.mxu0 %v4005
      %4820 = vmatpush1.msra.mxu0 %v4004
      %4821 = vmatprep.subr.mxu0 %v3999
      %4822 = vmatpush1.msra.mxu0 %v3998
      %4823 = vmatprep.subr.mxu0 %v3993
      %4824 = vmatpush1.msra.mxu0 %v3992
      %4825 = vmatprep.subr.mxu0 %v3987
      %4826 = vmatpush1.msra.mxu0 %v3986
      %4827 = vmatprep.subr.mxu0 %v3981
      %4828 = vmatpush1.msra.mxu0 %v3980
      %4829 = vmatprep.subr.mxu0 %v3975
      %4830 = vmatpush1.msra.mxu0 %v3974
      %4831 = vmatprep.subr.mxu0 %v3969
      %4832 = vmatpush1.msra.mxu0 %v3968
      %4833 = vmatprep.subr.mxu0 %v3963
      %4834 = vmatpush1.msra.mxu0 %v3962
      %4835 = vmatprep.subr.mxu0 %v3957
      %4836 = vmatpush1.msra.mxu0 %v3956
      %4837 = vmatprep.subr.mxu0 %v3951
      %4838 = vmatpush1.msra.mxu0 %v3950
      %4839 = vmatprep.subr.mxu0 %v3945
      %4840 = vmatpush1.msra.mxu0 %v3944
      %4841 = vmatprep.subr.mxu0 %v3939
      %4842 = vmatpush1.msra.mxu0 %v3938
      %4843 = vmatprep.subr.mxu0 %v3933
      %4844 = vmatpush1.msra.mxu0 %v3932
      %4845 = vmatprep.subr.mxu0 %v3927
      %4846 = vmatpush1.msra.mxu0 %v3926
      %4847 = vmatprep.subr.mxu0 %v3921
      %4848 = vmatpush1.msra.mxu0 %v3920
      %4849 = vmatprep.subr.mxu0 %v4107
      %4850 = vmatpush2.msra.mxu0 %v4106
      %4851 = vmatprep.subr.mxu0 %v4101
      %4852 = vmatpush2.msra.mxu0 %v4100
      %4853 = vmatprep.subr.mxu0 %v4095
      %4854 = vmatpush2.msra.mxu0 %v4094
      %4855 = vmatprep.subr.mxu0 %v4089
      %4856 = vmatpush2.msra.mxu0 %v4088
      %4857 = vmatprep.subr.mxu0 %v4083
      %4858 = vmatpush2.msra.mxu0 %v4082
      %4859 = vmatprep.subr.mxu0 %v4077
      %4860 = vmatpush2.msra.mxu0 %v4076
      %4861 = vmatprep.subr.mxu0 %v4071
      %4862 = vmatpush2.msra.mxu0 %v4070
      %4863 = vmatprep.subr.mxu0 %v4065
      %4864 = vmatpush2.msra.mxu0 %v4064
      %4865 = vmatprep.subr.mxu0 %v4059
      %4866 = vmatpush2.msra.mxu0 %v4058
      %4867 = vmatprep.subr.mxu0 %v4053
      %4868 = vmatpush2.msra.mxu0 %v4052
      %4869 = vmatprep.subr.mxu0 %v4047
      %4870 = vmatpush2.msra.mxu0 %v4046
      %4871 = vmatprep.subr.mxu0 %v4041
      %4872 = vmatpush2.msra.mxu0 %v4040
      %4873 = vmatprep.subr.mxu0 %v4035
      %4874 = vmatpush2.msra.mxu0 %v4034
      %4875 = vmatprep.subr.mxu0 %v4029
      %4876 = vmatpush2.msra.mxu0 %v4028
      %4877 = vmatprep.subr.mxu0 %v4023
      %4878 = vmatpush2.msra.mxu0 %v4022
      %4879 = vmatprep.subr.mxu0 %v4017
      %4880 = vmatpush2.msra.mxu0 %v4016
      %4881 = vmatprep.mubr.f32.mxu0 %v4114
      %4882 = vmatmul.mubr.f32.gmra.mxu0 %v4111
      %v4883 = vpop.f32.mrf.mxu0
      %v4884 = vadd.f32 0.0, %v4883
      %v4885 = vpop.f32.mrf.mxu0
      %v4886 = vadd.f32 0.0, %v4885
      %4887 = vmatprep.mubr.f32.mxu0 %v4118
      %4888 = vmatmul.mubr.f32.gmra.mxu0 %v4116
      %v4889 = vpop.f32.mrf.mxu0
      %v4890 = vadd.f32 0.0, %v4889
      %v4891 = vpop.f32.mrf.mxu0
      %v4892 = vadd.f32 0.0, %v4891
      %4893 = vmatprep.mubr.f32.mxu0 %v4122
      %4894 = vmatmul.mubr.f32.gmra.mxu0 %v4120
      %v4895 = vpop.f32.mrf.mxu0
      %v4896 = vadd.f32 0.0, %v4895
      %v4897 = vpop.f32.mrf.mxu0
      %v4898 = vadd.f32 0.0, %v4897
      %4899 = vmatprep.mubr.f32.mxu0 %v4126
      %4900 = vmatmul.mubr.f32.gmra.mxu0 %v4124
      %v4901 = vpop.f32.mrf.mxu0
      %v4902 = vadd.f32 0.0, %v4901
      %v4903 = vpop.f32.mrf.mxu0
      %v4904 = vadd.f32 0.0, %v4903
      %4905 = vmatprep.mubr.f32.mxu0 %v4130
      %4906 = vmatmul.mubr.f32.gmra.mxu0 %v4128
      %v4907 = vpop.f32.mrf.mxu0
      %v4908 = vadd.f32 0.0, %v4907
      %v4909 = vpop.f32.mrf.mxu0
      %v4910 = vadd.f32 0.0, %v4909
      %4911 = vmatprep.mubr.f32.mxu0 %v4134
      %4912 = vmatmul.mubr.f32.gmra.mxu0 %v4132
      %v4913 = vpop.f32.mrf.mxu0
      %v4914 = vadd.f32 0.0, %v4913
      %v4915 = vpop.f32.mrf.mxu0
      %v4916 = vadd.f32 0.0, %v4915
      %4917 = vmatprep.mubr.f32.mxu0 %v4138
      %4918 = vmatmul.mubr.f32.gmra.mxu0 %v4136
      %v4919 = vpop.f32.mrf.mxu0
      %v4920 = vadd.f32 0.0, %v4919
      %v4921 = vpop.f32.mrf.mxu0
      %v4922 = vadd.f32 0.0, %v4921
      %4923 = vmatprep.mubr.f32.mxu0 %v4142
      %4924 = vmatmul.mubr.f32.gmra.mxu0 %v4140
      %v4925 = vpop.f32.mrf.mxu0
      %v4926 = vadd.f32 0.0, %v4925
      %v4927 = vpop.f32.mrf.mxu0
      %v4928 = vadd.f32 0.0, %v4927
      %4929 = vmatprep.mubr.f32.mxu0 %v4146
      %4930 = vmatmul.mubr.f32.gmra.mxu0 %v4144
      %v4931 = vpop.f32.mrf.mxu0
      %v4932 = vadd.f32 0.0, %v4931
      %v4933 = vpop.f32.mrf.mxu0
      %v4934 = vadd.f32 0.0, %v4933
      %4935 = vmatprep.mubr.f32.mxu0 %v4150
      %4936 = vmatmul.mubr.f32.gmra.mxu0 %v4148
      %v4937 = vpop.f32.mrf.mxu0
      %v4938 = vadd.f32 0.0, %v4937
      %v4939 = vpop.f32.mrf.mxu0
      %v4940 = vadd.f32 0.0, %v4939
      %4941 = vmatprep.mubr.f32.mxu0 %v4154
      %4942 = vmatmul.mubr.f32.gmra.mxu0 %v4152
      %v4943 = vpop.f32.mrf.mxu0
      %v4944 = vadd.f32 0.0, %v4943
      %v4945 = vpop.f32.mrf.mxu0
      %v4946 = vadd.f32 0.0, %v4945
      %4947 = vmatprep.mubr.f32.mxu0 %v4158
      %4948 = vmatmul.mubr.f32.gmra.mxu0 %v4156
      %v4949 = vpop.f32.mrf.mxu0
      %v4950 = vadd.f32 0.0, %v4949
      %v4951 = vpop.f32.mrf.mxu0
      %v4952 = vadd.f32 0.0, %v4951
      %4953 = vmatprep.mubr.f32.mxu0 %v4162
      %4954 = vmatmul.mubr.f32.gmra.mxu0 %v4160
      %v4955 = vpop.f32.mrf.mxu0
      %v4956 = vadd.f32 0.0, %v4955
      %v4957 = vpop.f32.mrf.mxu0
      %v4958 = vadd.f32 0.0, %v4957
      %4959 = vmatprep.mubr.f32.mxu0 %v4166
      %4960 = vmatmul.mubr.f32.gmra.mxu0 %v4164
      %v4961 = vpop.f32.mrf.mxu0
      %v4962 = vadd.f32 0.0, %v4961
      %v4963 = vpop.f32.mrf.mxu0
      %v4964 = vadd.f32 0.0, %v4963
      %4965 = vmatprep.mubr.f32.mxu0 %v4170
      %4966 = vmatmul.mubr.f32.gmra.mxu0 %v4168
      %v4967 = vpop.f32.mrf.mxu0
      %v4968 = vadd.f32 0.0, %v4967
      %v4969 = vpop.f32.mrf.mxu0
      %v4970 = vadd.f32 0.0, %v4969
      %4971 = vmatprep.mubr.f32.mxu0 %v4174
      %4972 = vmatmul.mubr.f32.gmra.mxu0 %v4172
      %v4973 = vpop.f32.mrf.mxu0
      %v4974 = vadd.f32 0.0, %v4973
      %v4975 = vpop.f32.mrf.mxu0
      %v4976 = vadd.f32 0.0, %v4975
      %4977 = vmatprep.mubr.f32.mxu0 %v4178
      %4978 = vmatmul.mubr.f32.gmra.mxu0 %v4176
      %v4979 = vpop.f32.mrf.mxu0
      %v4980 = vadd.f32 0.0, %v4979
      %v4981 = vpop.f32.mrf.mxu0
      %v4982 = vadd.f32 0.0, %v4981
      %4983 = vmatprep.mubr.f32.mxu0 %v4182
      %4984 = vmatmul.mubr.f32.gmra.mxu0 %v4180
      %v4985 = vpop.f32.mrf.mxu0
      %v4986 = vadd.f32 0.0, %v4985
      %v4987 = vpop.f32.mrf.mxu0
      %v4988 = vadd.f32 0.0, %v4987
      %4989 = vmatprep.mubr.f32.mxu0 %v4186
      %4990 = vmatmul.mubr.f32.gmra.mxu0 %v4184
      %v4991 = vpop.f32.mrf.mxu0
      %v4992 = vadd.f32 0.0, %v4991
      %v4993 = vpop.f32.mrf.mxu0
      %v4994 = vadd.f32 0.0, %v4993
      %4995 = vmatprep.mubr.f32.mxu0 %v4190
      %4996 = vmatmul.mubr.f32.gmra.mxu0 %v4188
      %v4997 = vpop.f32.mrf.mxu0
      %v4998 = vadd.f32 0.0, %v4997
      %v4999 = vpop.f32.mrf.mxu0
      %v5000 = vadd.f32 0.0, %v4999
      %5001 = vmatprep.mubr.f32.mxu0 %v4194
      %5002 = vmatmul.mubr.f32.gmra.mxu0 %v4192
      %v5003 = vpop.f32.mrf.mxu0
      %v5004 = vadd.f32 0.0, %v5003
      %v5005 = vpop.f32.mrf.mxu0
      %v5006 = vadd.f32 0.0, %v5005
      %5007 = vmatprep.mubr.f32.mxu0 %v4198
      %5008 = vmatmul.mubr.f32.gmra.mxu0 %v4196
      %v5009 = vpop.f32.mrf.mxu0
      %v5010 = vadd.f32 0.0, %v5009
      %v5011 = vpop.f32.mrf.mxu0
      %v5012 = vadd.f32 0.0, %v5011
      %5013 = vmatprep.mubr.f32.mxu0 %v4202
      %5014 = vmatmul.mubr.f32.gmra.mxu0 %v4200
      %v5015 = vpop.f32.mrf.mxu0
      %v5016 = vadd.f32 0.0, %v5015
      %v5017 = vpop.f32.mrf.mxu0
      %v5018 = vadd.f32 0.0, %v5017
      %5019 = vmatprep.mubr.f32.mxu0 %v4206
      %5020 = vmatmul.mubr.f32.gmra.mxu0 %v4204
      %v5021 = vpop.f32.mrf.mxu0
      %v5022 = vadd.f32 0.0, %v5021
      %v5023 = vpop.f32.mrf.mxu0
      %v5024 = vadd.f32 0.0, %v5023
      %5025 = vmatprep.mubr.f32.mxu0 %v4210
      %5026 = vmatmul.mubr.f32.gmra.mxu0 %v4208
      %v5027 = vpop.f32.mrf.mxu0
      %v5028 = vadd.f32 0.0, %v5027
      %v5029 = vpop.f32.mrf.mxu0
      %v5030 = vadd.f32 0.0, %v5029
      %5031 = vmatprep.mubr.f32.mxu0 %v4214
      %5032 = vmatmul.mubr.f32.gmra.mxu0 %v4212
      %v5033 = vpop.f32.mrf.mxu0
      %v5034 = vadd.f32 0.0, %v5033
      %v5035 = vpop.f32.mrf.mxu0
      %v5036 = vadd.f32 0.0, %v5035
      %5037 = vmatprep.mubr.f32.mxu0 %v4218
      %5038 = vmatmul.mubr.f32.gmra.mxu0 %v4216
      %v5039 = vpop.f32.mrf.mxu0
      %v5040 = vadd.f32 0.0, %v5039
      %v5041 = vpop.f32.mrf.mxu0
      %v5042 = vadd.f32 0.0, %v5041
      %5043 = vmatprep.mubr.f32.mxu0 %v4222
      %5044 = vmatmul.mubr.f32.gmra.mxu0 %v4220
      %v5045 = vpop.f32.mrf.mxu0
      %v5046 = vadd.f32 0.0, %v5045
      %v5047 = vpop.f32.mrf.mxu0
      %v5048 = vadd.f32 0.0, %v5047
      %5049 = vmatprep.mubr.f32.mxu0 %v4226
      %5050 = vmatmul.mubr.f32.gmra.mxu0 %v4224
      %v5051 = vpop.f32.mrf.mxu0
      %v5052 = vadd.f32 0.0, %v5051
      %v5053 = vpop.f32.mrf.mxu0
      %v5054 = vadd.f32 0.0, %v5053
      %5055 = vmatprep.mubr.f32.mxu0 %v4230
      %5056 = vmatmul.mubr.f32.gmra.mxu0 %v4228
      %v5057 = vpop.f32.mrf.mxu0
      %v5058 = vadd.f32 0.0, %v5057
      %v5059 = vpop.f32.mrf.mxu0
      %v5060 = vadd.f32 0.0, %v5059
      %5061 = vmatprep.mubr.f32.mxu0 %v4234
      %5062 = vmatmul.mubr.f32.gmra.mxu0 %v4232
      %v5063 = vpop.f32.mrf.mxu0
      %v5064 = vadd.f32 0.0, %v5063
      %v5065 = vpop.f32.mrf.mxu0
      %v5066 = vadd.f32 0.0, %v5065
      %5067 = vmatprep.mubr.f32.mxu0 %v4238
      %5068 = vmatmul.mubr.f32.gmra.mxu0 %v4236
      %v5069 = vpop.f32.mrf.mxu0
      %v5070 = vadd.f32 0.0, %v5069
      %v5071 = vpop.f32.mrf.mxu0
      %v5072 = vadd.f32 0.0, %v5071
      %5073 = vdwg.mxu0
      %v5074 = vadd.f32 %v3724, %v4370
      %v5075 = vadd.f32 %v3725, %v4372
      %v5076 = vadd.f32 %v3726, %v4627
      %v5077 = vadd.f32 %v3727, %v4629
      %v5078 = vadd.f32 %v3728, %v4884
      %v5079 = vadd.f32 %v3729, %v4886
      %v5080 = vadd.f32 %v3730, %v4376
      %v5081 = vadd.f32 %v3731, %v4378
      %v5082 = vadd.f32 %v3732, %v4633
      %v5083 = vadd.f32 %v3733, %v4635
      %v5084 = vadd.f32 %v3734, %v4890
      %v5085 = vadd.f32 %v3735, %v4892
      %v5086 = vadd.f32 %v3736, %v4382
      %v5087 = vadd.f32 %v3737, %v4384
      %v5088 = vadd.f32 %v3738, %v4639
      %v5089 = vadd.f32 %v3739, %v4641
      %v5090 = vadd.f32 %v3740, %v4896
      %v5091 = vadd.f32 %v3741, %v4898
      %v5092 = vadd.f32 %v3742, %v4388
      %v5093 = vadd.f32 %v3743, %v4390
      %v5094 = vadd.f32 %v3744, %v4645
      %v5095 = vadd.f32 %v3745, %v4647
      %v5096 = vadd.f32 %v3746, %v4902
      %v5097 = vadd.f32 %v3747, %v4904
      %v5098 = vadd.f32 %v3748, %v4394
      %v5099 = vadd.f32 %v3749, %v4396
      %v5100 = vadd.f32 %v3750, %v4651
      %v5101 = vadd.f32 %v3751, %v4653
      %v5102 = vadd.f32 %v3752, %v4908
      %v5103 = vadd.f32 %v3753, %v4910
      %v5104 = vadd.f32 %v3754, %v4400
      %v5105 = vadd.f32 %v3755, %v4402
      %v5106 = vadd.f32 %v3756, %v4657
      %v5107 = vadd.f32 %v3757, %v4659
      %v5108 = vadd.f32 %v3758, %v4914
      %v5109 = vadd.f32 %v3759, %v4916
      %v5110 = vadd.f32 %v3760, %v4406
      %v5111 = vadd.f32 %v3761, %v4408
      %v5112 = vadd.f32 %v3762, %v4663
      %v5113 = vadd.f32 %v3763, %v4665
      %v5114 = vadd.f32 %v3764, %v4920
      %v5115 = vadd.f32 %v3765, %v4922
      %v5116 = vadd.f32 %v3766, %v4412
      %v5117 = vadd.f32 %v3767, %v4414
      %v5118 = vadd.f32 %v3768, %v4669
      %v5119 = vadd.f32 %v3769, %v4671
      %v5120 = vadd.f32 %v3770, %v4926
      %v5121 = vadd.f32 %v3771, %v4928
      %v5122 = vadd.f32 %v3772, %v4418
      %v5123 = vadd.f32 %v3773, %v4420
      %v5124 = vadd.f32 %v3774, %v4675
      %v5125 = vadd.f32 %v3775, %v4677
      %v5126 = vadd.f32 %v3776, %v4932
      %v5127 = vadd.f32 %v3777, %v4934
      %v5128 = vadd.f32 %v3778, %v4424
      %v5129 = vadd.f32 %v3779, %v4426
      %v5130 = vadd.f32 %v3780, %v4681
      %v5131 = vadd.f32 %v3781, %v4683
      %v5132 = vadd.f32 %v3782, %v4938
      %v5133 = vadd.f32 %v3783, %v4940
      %v5134 = vadd.f32 %v3784, %v4430
      %v5135 = vadd.f32 %v3785, %v4432
      %v5136 = vadd.f32 %v3786, %v4687
      %v5137 = vadd.f32 %v3787, %v4689
      %v5138 = vadd.f32 %v3788, %v4944
      %v5139 = vadd.f32 %v3789, %v4946
      %v5140 = vadd.f32 %v3790, %v4436
      %v5141 = vadd.f32 %v3791, %v4438
      %v5142 = vadd.f32 %v3792, %v4693
      %v5143 = vadd.f32 %v3793, %v4695
      %v5144 = vadd.f32 %v3794, %v4950
      %v5145 = vadd.f32 %v3795, %v4952
      %v5146 = vadd.f32 %v3796, %v4442
      %v5147 = vadd.f32 %v3797, %v4444
      %v5148 = vadd.f32 %v3798, %v4699
      %v5149 = vadd.f32 %v3799, %v4701
      %v5150 = vadd.f32 %v3800, %v4956
      %v5151 = vadd.f32 %v3801, %v4958
      %v5152 = vadd.f32 %v3802, %v4448
      %v5153 = vadd.f32 %v3803, %v4450
      %v5154 = vadd.f32 %v3804, %v4705
      %v5155 = vadd.f32 %v3805, %v4707
      %v5156 = vadd.f32 %v3806, %v4962
      %v5157 = vadd.f32 %v3807, %v4964
      %v5158 = vadd.f32 %v3808, %v4454
      %v5159 = vadd.f32 %v3809, %v4456
      %v5160 = vadd.f32 %v3810, %v4711
      %v5161 = vadd.f32 %v3811, %v4713
      %v5162 = vadd.f32 %v3812, %v4968
      %v5163 = vadd.f32 %v3813, %v4970
      %v5164 = vadd.f32 %v3814, %v4460
      %v5165 = vadd.f32 %v3815, %v4462
      %v5166 = vadd.f32 %v3816, %v4717
      %v5167 = vadd.f32 %v3817, %v4719
      %v5168 = vadd.f32 %v3818, %v4974
      %v5169 = vadd.f32 %v3819, %v4976
      %v5170 = vadd.f32 %v3820, %v4466
      %v5171 = vadd.f32 %v3821, %v4468
      %v5172 = vadd.f32 %v3822, %v4723
      %v5173 = vadd.f32 %v3823, %v4725
      %v5174 = vadd.f32 %v3824, %v4980
      %v5175 = vadd.f32 %v3825, %v4982
      %v5176 = vadd.f32 %v3826, %v4472
      %v5177 = vadd.f32 %v3827, %v4474
      %v5178 = vadd.f32 %v3828, %v4729
      %v5179 = vadd.f32 %v3829, %v4731
      %v5180 = vadd.f32 %v3830, %v4986
      %v5181 = vadd.f32 %v3831, %v4988
      %v5182 = vadd.f32 %v3832, %v4478
      %v5183 = vadd.f32 %v3833, %v4480
      %v5184 = vadd.f32 %v3834, %v4735
      %v5185 = vadd.f32 %v3835, %v4737
      %v5186 = vadd.f32 %v3836, %v4992
      %v5187 = vadd.f32 %v3837, %v4994
      %v5188 = vadd.f32 %v3838, %v4484
      %v5189 = vadd.f32 %v3839, %v4486
      %v5190 = vadd.f32 %v3840, %v4741
      %v5191 = vadd.f32 %v3841, %v4743
      %v5192 = vadd.f32 %v3842, %v4998
      %v5193 = vadd.f32 %v3843, %v5000
      %v5194 = vadd.f32 %v3844, %v4490
      %v5195 = vadd.f32 %v3845, %v4492
      %v5196 = vadd.f32 %v3846, %v4747
      %v5197 = vadd.f32 %v3847, %v4749
      %v5198 = vadd.f32 %v3848, %v5004
      %v5199 = vadd.f32 %v3849, %v5006
      %v5200 = vadd.f32 %v3850, %v4496
      %v5201 = vadd.f32 %v3851, %v4498
      %v5202 = vadd.f32 %v3852, %v4753
      %v5203 = vadd.f32 %v3853, %v4755
      %v5204 = vadd.f32 %v3854, %v5010
      %v5205 = vadd.f32 %v3855, %v5012
      %v5206 = vadd.f32 %v3856, %v4502
      %v5207 = vadd.f32 %v3857, %v4504
      %v5208 = vadd.f32 %v3858, %v4759
      %v5209 = vadd.f32 %v3859, %v4761
      %v5210 = vadd.f32 %v3860, %v5016
      %v5211 = vadd.f32 %v3861, %v5018
      %v5212 = vadd.f32 %v3862, %v4508
      %v5213 = vadd.f32 %v3863, %v4510
      %v5214 = vadd.f32 %v3864, %v4765
      %v5215 = vadd.f32 %v3865, %v4767
      %v5216 = vadd.f32 %v3866, %v5022
      %v5217 = vadd.f32 %v3867, %v5024
      %v5218 = vadd.f32 %v3868, %v4514
      %v5219 = vadd.f32 %v3869, %v4516
      %v5220 = vadd.f32 %v3870, %v4771
      %v5221 = vadd.f32 %v3871, %v4773
      %v5222 = vadd.f32 %v3872, %v5028
      %v5223 = vadd.f32 %v3873, %v5030
      %v5224 = vadd.f32 %v3874, %v4520
      %v5225 = vadd.f32 %v3875, %v4522
      %v5226 = vadd.f32 %v3876, %v4777
      %v5227 = vadd.f32 %v3877, %v4779
      %v5228 = vadd.f32 %v3878, %v5034
      %v5229 = vadd.f32 %v3879, %v5036
      %v5230 = vadd.f32 %v3880, %v4526
      %v5231 = vadd.f32 %v3881, %v4528
      %v5232 = vadd.f32 %v3882, %v4783
      %v5233 = vadd.f32 %v3883, %v4785
      %v5234 = vadd.f32 %v3884, %v5040
      %v5235 = vadd.f32 %v3885, %v5042
      %v5236 = vadd.f32 %v3886, %v4532
      %v5237 = vadd.f32 %v3887, %v4534
      %v5238 = vadd.f32 %v3888, %v4789
      %v5239 = vadd.f32 %v3889, %v4791
      %v5240 = vadd.f32 %v3890, %v5046
      %v5241 = vadd.f32 %v3891, %v5048
      %v5242 = vadd.f32 %v3892, %v4538
      %v5243 = vadd.f32 %v3893, %v4540
      %v5244 = vadd.f32 %v3894, %v4795
      %v5245 = vadd.f32 %v3895, %v4797
      %v5246 = vadd.f32 %v3896, %v5052
      %v5247 = vadd.f32 %v3897, %v5054
      %v5248 = vadd.f32 %v3898, %v4544
      %v5249 = vadd.f32 %v3899, %v4546
      %v5250 = vadd.f32 %v3900, %v4801
      %v5251 = vadd.f32 %v3901, %v4803
      %v5252 = vadd.f32 %v3902, %v5058
      %v5253 = vadd.f32 %v3903, %v5060
      %v5254 = vadd.f32 %v3904, %v4550
      %v5255 = vadd.f32 %v3905, %v4552
      %v5256 = vadd.f32 %v3906, %v4807
      %v5257 = vadd.f32 %v3907, %v4809
      %v5258 = vadd.f32 %v3908, %v5064
      %v5259 = vadd.f32 %v3909, %v5066
      %v5260 = vadd.f32 %v3910, %v4556
      %v5261 = vadd.f32 %v3911, %v4558
      %v5262 = vadd.f32 %v3912, %v4813
      %v5263 = vadd.f32 %v3913, %v4815
      %v5264 = vadd.f32 %v3914, %v5070
      %v5265 = vadd.f32 %v3915, %v5072
      %v5266 = vmul.f32 %v5074, %v5074
      %v5267 = vmul.f32 %v5075, %v5075
      %v5268 = vmul.f32 %v5076, %v5076
      %v5269 = vmul.f32 %v5077, %v5077
      %v5270 = vmul.f32 %v5078, %v5078
      %v5271 = vmul.f32 %v5079, %v5079
      %v5272 = vmul.f32 %v5080, %v5080
      %v5273 = vmul.f32 %v5081, %v5081
      %v5274 = vmul.f32 %v5082, %v5082
      %v5275 = vmul.f32 %v5083, %v5083
      %v5276 = vmul.f32 %v5084, %v5084
      %v5277 = vmul.f32 %v5085, %v5085
      %v5278 = vmul.f32 %v5086, %v5086
      %v5279 = vmul.f32 %v5087, %v5087
      %v5280 = vmul.f32 %v5088, %v5088
      %v5281 = vmul.f32 %v5089, %v5089
      %v5282 = vmul.f32 %v5090, %v5090
      %v5283 = vmul.f32 %v5091, %v5091
      %v5284 = vmul.f32 %v5092, %v5092
      %v5285 = vmul.f32 %v5093, %v5093
      %v5286 = vmul.f32 %v5094, %v5094
      %v5287 = vmul.f32 %v5095, %v5095
      %v5288 = vmul.f32 %v5096, %v5096
      %v5289 = vmul.f32 %v5097, %v5097
      %v5290 = vmul.f32 %v5098, %v5098
      %v5291 = vmul.f32 %v5099, %v5099
      %v5292 = vmul.f32 %v5100, %v5100
      %v5293 = vmul.f32 %v5101, %v5101
      %v5294 = vmul.f32 %v5102, %v5102
      %v5295 = vmul.f32 %v5103, %v5103
      %v5296 = vmul.f32 %v5104, %v5104
      %v5297 = vmul.f32 %v5105, %v5105
      %v5298 = vmul.f32 %v5106, %v5106
      %v5299 = vmul.f32 %v5107, %v5107
      %v5300 = vmul.f32 %v5108, %v5108
      %v5301 = vmul.f32 %v5109, %v5109
      %v5302 = vmul.f32 %v5110, %v5110
      %v5303 = vmul.f32 %v5111, %v5111
      %v5304 = vmul.f32 %v5112, %v5112
      %v5305 = vmul.f32 %v5113, %v5113
      %v5306 = vmul.f32 %v5114, %v5114
      %v5307 = vmul.f32 %v5115, %v5115
      %v5308 = vmul.f32 %v5116, %v5116
      %v5309 = vmul.f32 %v5117, %v5117
      %v5310 = vmul.f32 %v5118, %v5118
      %v5311 = vmul.f32 %v5119, %v5119
      %v5312 = vmul.f32 %v5120, %v5120
      %v5313 = vmul.f32 %v5121, %v5121
      %v5314 = vmul.f32 %v5122, %v5122
      %v5315 = vmul.f32 %v5123, %v5123
      %v5316 = vmul.f32 %v5124, %v5124
      %v5317 = vmul.f32 %v5125, %v5125
      %v5318 = vmul.f32 %v5126, %v5126
      %v5319 = vmul.f32 %v5127, %v5127
      %v5320 = vmul.f32 %v5128, %v5128
      %v5321 = vmul.f32 %v5129, %v5129
      %v5322 = vmul.f32 %v5130, %v5130
      %v5323 = vmul.f32 %v5131, %v5131
      %v5324 = vmul.f32 %v5132, %v5132
      %v5325 = vmul.f32 %v5133, %v5133
      %v5326 = vmul.f32 %v5134, %v5134
      %v5327 = vmul.f32 %v5135, %v5135
      %v5328 = vmul.f32 %v5136, %v5136
      %v5329 = vmul.f32 %v5137, %v5137
      %v5330 = vmul.f32 %v5138, %v5138
      %v5331 = vmul.f32 %v5139, %v5139
      %v5332 = vmul.f32 %v5140, %v5140
      %v5333 = vmul.f32 %v5141, %v5141
      %v5334 = vmul.f32 %v5142, %v5142
      %v5335 = vmul.f32 %v5143, %v5143
      %v5336 = vmul.f32 %v5144, %v5144
      %v5337 = vmul.f32 %v5145, %v5145
      %v5338 = vmul.f32 %v5146, %v5146
      %v5339 = vmul.f32 %v5147, %v5147
      %v5340 = vmul.f32 %v5148, %v5148
      %v5341 = vmul.f32 %v5149, %v5149
      %v5342 = vmul.f32 %v5150, %v5150
      %v5343 = vmul.f32 %v5151, %v5151
      %v5344 = vmul.f32 %v5152, %v5152
      %v5345 = vmul.f32 %v5153, %v5153
      %v5346 = vmul.f32 %v5154, %v5154
      %v5347 = vmul.f32 %v5155, %v5155
      %v5348 = vmul.f32 %v5156, %v5156
      %v5349 = vmul.f32 %v5157, %v5157
      %v5350 = vmul.f32 %v5158, %v5158
      %v5351 = vmul.f32 %v5159, %v5159
      %v5352 = vmul.f32 %v5160, %v5160
      %v5353 = vmul.f32 %v5161, %v5161
      %v5354 = vmul.f32 %v5162, %v5162
      %v5355 = vmul.f32 %v5163, %v5163
      %v5356 = vmul.f32 %v5164, %v5164
      %v5357 = vmul.f32 %v5165, %v5165
      %v5358 = vmul.f32 %v5166, %v5166
      %v5359 = vmul.f32 %v5167, %v5167
      %v5360 = vmul.f32 %v5168, %v5168
      %v5361 = vmul.f32 %v5169, %v5169
      %v5362 = vmul.f32 %v5170, %v5170
      %v5363 = vmul.f32 %v5171, %v5171
      %v5364 = vmul.f32 %v5172, %v5172
      %v5365 = vmul.f32 %v5173, %v5173
      %v5366 = vmul.f32 %v5174, %v5174
      %v5367 = vmul.f32 %v5175, %v5175
      %v5368 = vmul.f32 %v5176, %v5176
      %v5369 = vmul.f32 %v5177, %v5177
      %v5370 = vmul.f32 %v5178, %v5178
      %v5371 = vmul.f32 %v5179, %v5179
      %v5372 = vmul.f32 %v5180, %v5180
      %v5373 = vmul.f32 %v5181, %v5181
      %v5374 = vmul.f32 %v5182, %v5182
      %v5375 = vmul.f32 %v5183, %v5183
      %v5376 = vmul.f32 %v5184, %v5184
      %v5377 = vmul.f32 %v5185, %v5185
      %v5378 = vmul.f32 %v5186, %v5186
      %v5379 = vmul.f32 %v5187, %v5187
      %v5380 = vmul.f32 %v5188, %v5188
      %v5381 = vmul.f32 %v5189, %v5189
      %v5382 = vmul.f32 %v5190, %v5190
      %v5383 = vmul.f32 %v5191, %v5191
      %v5384 = vmul.f32 %v5192, %v5192
      %v5385 = vmul.f32 %v5193, %v5193
      %v5386 = vmul.f32 %v5194, %v5194
      %v5387 = vmul.f32 %v5195, %v5195
      %v5388 = vmul.f32 %v5196, %v5196
      %v5389 = vmul.f32 %v5197, %v5197
      %v5390 = vmul.f32 %v5198, %v5198
      %v5391 = vmul.f32 %v5199, %v5199
      %v5392 = vmul.f32 %v5200, %v5200
      %v5393 = vmul.f32 %v5201, %v5201
      %v5394 = vmul.f32 %v5202, %v5202
      %v5395 = vmul.f32 %v5203, %v5203
      %v5396 = vmul.f32 %v5204, %v5204
      %v5397 = vmul.f32 %v5205, %v5205
      %v5398 = vmul.f32 %v5206, %v5206
      %v5399 = vmul.f32 %v5207, %v5207
      %v5400 = vmul.f32 %v5208, %v5208
      %v5401 = vmul.f32 %v5209, %v5209
      %v5402 = vmul.f32 %v5210, %v5210
      %v5403 = vmul.f32 %v5211, %v5211
      %v5404 = vmul.f32 %v5212, %v5212
      %v5405 = vmul.f32 %v5213, %v5213
      %v5406 = vmul.f32 %v5214, %v5214
      %v5407 = vmul.f32 %v5215, %v5215
      %v5408 = vmul.f32 %v5216, %v5216
      %v5409 = vmul.f32 %v5217, %v5217
      %v5410 = vmul.f32 %v5218, %v5218
      %v5411 = vmul.f32 %v5219, %v5219
      %v5412 = vmul.f32 %v5220, %v5220
      %v5413 = vmul.f32 %v5221, %v5221
      %v5414 = vmul.f32 %v5222, %v5222
      %v5415 = vmul.f32 %v5223, %v5223
      %v5416 = vmul.f32 %v5224, %v5224
      %v5417 = vmul.f32 %v5225, %v5225
      %v5418 = vmul.f32 %v5226, %v5226
      %v5419 = vmul.f32 %v5227, %v5227
      %v5420 = vmul.f32 %v5228, %v5228
      %v5421 = vmul.f32 %v5229, %v5229
      %v5422 = vmul.f32 %v5230, %v5230
      %v5423 = vmul.f32 %v5231, %v5231
      %v5424 = vmul.f32 %v5232, %v5232
      %v5425 = vmul.f32 %v5233, %v5233
      %v5426 = vmul.f32 %v5234, %v5234
      %v5427 = vmul.f32 %v5235, %v5235
      %v5428 = vmul.f32 %v5236, %v5236
      %v5429 = vmul.f32 %v5237, %v5237
      %v5430 = vmul.f32 %v5238, %v5238
      %v5431 = vmul.f32 %v5239, %v5239
      %v5432 = vmul.f32 %v5240, %v5240
      %v5433 = vmul.f32 %v5241, %v5241
      %v5434 = vmul.f32 %v5242, %v5242
      %v5435 = vmul.f32 %v5243, %v5243
      %v5436 = vmul.f32 %v5244, %v5244
      %v5437 = vmul.f32 %v5245, %v5245
      %v5438 = vmul.f32 %v5246, %v5246
      %v5439 = vmul.f32 %v5247, %v5247
      %v5440 = vmul.f32 %v5248, %v5248
      %v5441 = vmul.f32 %v5249, %v5249
      %v5442 = vmul.f32 %v5250, %v5250
      %v5443 = vmul.f32 %v5251, %v5251
      %v5444 = vmul.f32 %v5252, %v5252
      %v5445 = vmul.f32 %v5253, %v5253
      %v5446 = vmul.f32 %v5254, %v5254
      %v5447 = vmul.f32 %v5255, %v5255
      %v5448 = vmul.f32 %v5256, %v5256
      %v5449 = vmul.f32 %v5257, %v5257
      %v5450 = vmul.f32 %v5258, %v5258
      %v5451 = vmul.f32 %v5259, %v5259
      %v5452 = vmul.f32 %v5260, %v5260
      %v5453 = vmul.f32 %v5261, %v5261
      %v5454 = vmul.f32 %v5262, %v5262
      %v5455 = vmul.f32 %v5263, %v5263
      %v5456 = vmul.f32 %v5264, %v5264
      %v5457 = vmul.f32 %v5265, %v5265
      %v5458 = vadd.f32 %v5266, %v5269
      %v5459 = vadd.f32 %v5267, %v5270
      %v5460 = vadd.f32 %v5268, %v5271
      %v5461 = vadd.f32 %v5272, %v5275
      %v5462 = vadd.f32 %v5273, %v5276
      %v5463 = vadd.f32 %v5274, %v5277
      %v5464 = vadd.f32 %v5278, %v5281
      %v5465 = vadd.f32 %v5279, %v5282
      %v5466 = vadd.f32 %v5280, %v5283
      %v5467 = vadd.f32 %v5284, %v5287
      %v5468 = vadd.f32 %v5285, %v5288
      %v5469 = vadd.f32 %v5286, %v5289
      %v5470 = vadd.f32 %v5290, %v5293
      %v5471 = vadd.f32 %v5291, %v5294
      %v5472 = vadd.f32 %v5292, %v5295
      %v5473 = vadd.f32 %v5296, %v5299
      %v5474 = vadd.f32 %v5297, %v5300
      %v5475 = vadd.f32 %v5298, %v5301
      %v5476 = vadd.f32 %v5302, %v5305
      %v5477 = vadd.f32 %v5303, %v5306
      %v5478 = vadd.f32 %v5304, %v5307
      %v5479 = vadd.f32 %v5308, %v5311
      %v5480 = vadd.f32 %v5309, %v5312
      %v5481 = vadd.f32 %v5310, %v5313
      %v5482 = vadd.f32 %v5314, %v5317
      %v5483 = vadd.f32 %v5315, %v5318
      %v5484 = vadd.f32 %v5316, %v5319
      %v5485 = vadd.f32 %v5320, %v5323
      %v5486 = vadd.f32 %v5321, %v5324
      %v5487 = vadd.f32 %v5322, %v5325
      %v5488 = vadd.f32 %v5326, %v5329
      %v5489 = vadd.f32 %v5327, %v5330
      %v5490 = vadd.f32 %v5328, %v5331
      %v5491 = vadd.f32 %v5332, %v5335
      %v5492 = vadd.f32 %v5333, %v5336
      %v5493 = vadd.f32 %v5334, %v5337
      %v5494 = vadd.f32 %v5338, %v5341
      %v5495 = vadd.f32 %v5339, %v5342
      %v5496 = vadd.f32 %v5340, %v5343
      %v5497 = vadd.f32 %v5344, %v5347
      %v5498 = vadd.f32 %v5345, %v5348
      %v5499 = vadd.f32 %v5346, %v5349
      %v5500 = vadd.f32 %v5350, %v5353
      %v5501 = vadd.f32 %v5351, %v5354
      %v5502 = vadd.f32 %v5352, %v5355
      %v5503 = vadd.f32 %v5356, %v5359
      %v5504 = vadd.f32 %v5357, %v5360
      %v5505 = vadd.f32 %v5358, %v5361
      %v5506 = vadd.f32 %v5362, %v5365
      %v5507 = vadd.f32 %v5363, %v5366
      %v5508 = vadd.f32 %v5364, %v5367
      %v5509 = vadd.f32 %v5368, %v5371
      %v5510 = vadd.f32 %v5369, %v5372
      %v5511 = vadd.f32 %v5370, %v5373
      %v5512 = vadd.f32 %v5374, %v5377
      %v5513 = vadd.f32 %v5375, %v5378
      %v5514 = vadd.f32 %v5376, %v5379
      %v5515 = vadd.f32 %v5380, %v5383
      %v5516 = vadd.f32 %v5381, %v5384
      %v5517 = vadd.f32 %v5382, %v5385
      %v5518 = vadd.f32 %v5386, %v5389
      %v5519 = vadd.f32 %v5387, %v5390
      %v5520 = vadd.f32 %v5388, %v5391
      %v5521 = vadd.f32 %v5392, %v5395
      %v5522 = vadd.f32 %v5393, %v5396
      %v5523 = vadd.f32 %v5394, %v5397
      %v5524 = vadd.f32 %v5398, %v5401
      %v5525 = vadd.f32 %v5399, %v5402
      %v5526 = vadd.f32 %v5400, %v5403
      %v5527 = vadd.f32 %v5404, %v5407
      %v5528 = vadd.f32 %v5405, %v5408
      %v5529 = vadd.f32 %v5406, %v5409
      %v5530 = vadd.f32 %v5410, %v5413
      %v5531 = vadd.f32 %v5411, %v5414
      %v5532 = vadd.f32 %v5412, %v5415
      %v5533 = vadd.f32 %v5416, %v5419
      %v5534 = vadd.f32 %v5417, %v5420
      %v5535 = vadd.f32 %v5418, %v5421
      %v5536 = vadd.f32 %v5422, %v5425
      %v5537 = vadd.f32 %v5423, %v5426
      %v5538 = vadd.f32 %v5424, %v5427
      %v5539 = vadd.f32 %v5428, %v5431
      %v5540 = vadd.f32 %v5429, %v5432
      %v5541 = vadd.f32 %v5430, %v5433
      %v5542 = vadd.f32 %v5434, %v5437
      %v5543 = vadd.f32 %v5435, %v5438
      %v5544 = vadd.f32 %v5436, %v5439
      %v5545 = vadd.f32 %v5440, %v5443
      %v5546 = vadd.f32 %v5441, %v5444
      %v5547 = vadd.f32 %v5442, %v5445
      %v5548 = vadd.f32 %v5446, %v5449
      %v5549 = vadd.f32 %v5447, %v5450
      %v5550 = vadd.f32 %v5448, %v5451
      %v5551 = vadd.f32 %v5452, %v5455
      %v5552 = vadd.f32 %v5453, %v5456
      %v5553 = vadd.f32 %v5454, %v5457
      %v5554 = vld [vmem:[%s3] sm:$0xff]
      %v5555 = vld [vmem:[%s3 + $0x8] sm:$0xff]
      %v5556 = vld [vmem:[%s3 + $0x10] sm:$0xff]
      %v5557 = vld [vmem:[%s3 + $0x18] sm:$0xff]
      %v5558 = vld [vmem:[%s3 + $0x20] sm:$0xff]
      %v5559 = vld [vmem:[%s3 + $0x28] sm:$0xff]
      %v5560 = vld [vmem:[%s3 + $0x30] sm:$0xff]
      %v5561 = vld [vmem:[%s3 + $0x38] sm:$0xff]
      %v5562 = vld [vmem:[%s3 + $0x40] sm:$0xff]
      %v5563 = vld [vmem:[%s3 + $0x48] sm:$0xff]
      %v5564 = vld [vmem:[%s3 + $0x50] sm:$0xff]
      %v5565 = vld [vmem:[%s3 + $0x58] sm:$0xff]
      %v5566 = vld [vmem:[%s3 + $0x60] sm:$0xff]
      %v5567 = vld [vmem:[%s3 + $0x68] sm:$0xff]
      %v5568 = vld [vmem:[%s3 + $0x70] sm:$0xff]
      %v5569 = vld [vmem:[%s3 + $0x78] sm:$0xff]
      %v5570 = vld [vmem:[%s3 + $0x80] sm:$0xff]
      %v5571 = vld [vmem:[%s3 + $0x88] sm:$0xff]
      %v5572 = vld [vmem:[%s3 + $0x90] sm:$0xff]
      %v5573 = vld [vmem:[%s3 + $0x98] sm:$0xff]
      %v5574 = vld [vmem:[%s3 + $0xa0] sm:$0xff]
      %v5575 = vld [vmem:[%s3 + $0xa8] sm:$0xff]
      %v5576 = vld [vmem:[%s3 + $0xb0] sm:$0xff]
      %v5577 = vld [vmem:[%s3 + $0xb8] sm:$0xff]
      %v5578 = vld [vmem:[%s3 + $0xc0] sm:$0xff]
      %v5579 = vld [vmem:[%s3 + $0xc8] sm:$0xff]
      %v5580 = vld [vmem:[%s3 + $0xd0] sm:$0xff]
      %v5581 = vld [vmem:[%s3 + $0xd8] sm:$0xff]
      %v5582 = vld [vmem:[%s3 + $0xe0] sm:$0xff]
      %v5583 = vld [vmem:[%s3 + $0xe8] sm:$0xff]
      %5584 = vmatprep.subr.mxu0 %v5504
      %5585 = vmatpush1.xpose.msra.mxu0 %v5503
      %5586 = vmatprep.subr.mxu0 %v5501
      %5587 = vmatpush1.xpose.msra.mxu0 %v5500
      %5588 = vmatprep.subr.mxu0 %v5498
      %5589 = vmatpush1.xpose.msra.mxu0 %v5497
      %5590 = vmatprep.subr.mxu0 %v5495
      %5591 = vmatpush1.xpose.msra.mxu0 %v5494
      %5592 = vmatprep.subr.mxu0 %v5492
      %5593 = vmatpush1.xpose.msra.mxu0 %v5491
      %5594 = vmatprep.subr.mxu0 %v5489
      %5595 = vmatpush1.xpose.msra.mxu0 %v5488
      %5596 = vmatprep.subr.mxu0 %v5486
      %5597 = vmatpush1.xpose.msra.mxu0 %v5485
      %5598 = vmatprep.subr.mxu0 %v5483
      %5599 = vmatpush1.xpose.msra.mxu0 %v5482
      %5600 = vmatprep.subr.mxu0 %v5480
      %5601 = vmatpush1.xpose.msra.mxu0 %v5479
      %5602 = vmatprep.subr.mxu0 %v5477
      %5603 = vmatpush1.xpose.msra.mxu0 %v5476
      %5604 = vmatprep.subr.mxu0 %v5474
      %5605 = vmatpush1.xpose.msra.mxu0 %v5473
      %5606 = vmatprep.subr.mxu0 %v5471
      %5607 = vmatpush1.xpose.msra.mxu0 %v5470
      %5608 = vmatprep.subr.mxu0 %v5468
      %5609 = vmatpush1.xpose.msra.mxu0 %v5467
      %5610 = vmatprep.subr.mxu0 %v5465
      %5611 = vmatpush1.xpose.msra.mxu0 %v5464
      %5612 = vmatprep.subr.mxu0 %v5462
      %5613 = vmatpush1.xpose.msra.mxu0 %v5461
      %5614 = vmatprep.subr.mxu0 %v5459
      %5615 = vmatpush1.xpose.msra.mxu0 %v5458
      %5616 = vmatprep.subr.mxu0 %v5552
      %5617 = vmatpush2.xpose.msra.mxu0 %v5551
      %5618 = vmatprep.subr.mxu0 %v5549
      %5619 = vmatpush2.xpose.msra.mxu0 %v5548
      %5620 = vmatprep.subr.mxu0 %v5546
      %5621 = vmatpush2.xpose.msra.mxu0 %v5545
      %5622 = vmatprep.subr.mxu0 %v5543
      %5623 = vmatpush2.xpose.msra.mxu0 %v5542
      %5624 = vmatprep.subr.mxu0 %v5540
      %5625 = vmatpush2.xpose.msra.mxu0 %v5539
      %5626 = vmatprep.subr.mxu0 %v5537
      %5627 = vmatpush2.xpose.msra.mxu0 %v5536
      %5628 = vmatprep.subr.mxu0 %v5534
      %5629 = vmatpush2.xpose.msra.mxu0 %v5533
      %5630 = vmatprep.subr.mxu0 %v5531
      %5631 = vmatpush2.xpose.msra.mxu0 %v5530
      %5632 = vmatprep.subr.mxu0 %v5528
      %5633 = vmatpush2.xpose.msra.mxu0 %v5527
      %5634 = vmatprep.subr.mxu0 %v5525
      %5635 = vmatpush2.xpose.msra.mxu0 %v5524
      %5636 = vmatprep.subr.mxu0 %v5522
      %5637 = vmatpush2.xpose.msra.mxu0 %v5521
      %5638 = vmatprep.subr.mxu0 %v5519
      %5639 = vmatpush2.xpose.msra.mxu0 %v5518
      %5640 = vmatprep.subr.mxu0 %v5516
      %5641 = vmatpush2.xpose.msra.mxu0 %v5515
      %5642 = vmatprep.subr.mxu0 %v5513
      %5643 = vmatpush2.xpose.msra.mxu0 %v5512
      %5644 = vmatprep.subr.mxu0 %v5510
      %5645 = vmatpush2.xpose.msra.mxu0 %v5509
      %5646 = vmatprep.subr.mxu0 %v5507
      %5647 = vmatpush2.xpose.msra.mxu0 %v5506
      %5648 = vmatprep.mubr.f32.mxu0 %v5555
      %5649 = vmatmul.mubr.f32.gmra.mxu0 %v5554
      %v5650 = vpop.f32.mrf.mxu0
      %v5651 = vadd.f32 0.0, %v5650
      %v5652 = vpop.f32.mrf.mxu0
      %v5653 = vadd.f32 0.0, %v5652
      %5654 = vmatprep.mubr.f32.mxu0 %v5558
      %5655 = vmatmul.mubr.f32.gmra.mxu0 %v5557
      %v5656 = vpop.f32.mrf.mxu0
      %v5657 = vadd.f32 0.0, %v5656
      %v5658 = vpop.f32.mrf.mxu0
      %v5659 = vadd.f32 0.0, %v5658
      %5660 = vmatprep.mubr.f32.mxu0 %v5561
      %5661 = vmatmul.mubr.f32.gmra.mxu0 %v5560
      %v5662 = vpop.f32.mrf.mxu0
      %v5663 = vadd.f32 0.0, %v5662
      %v5664 = vpop.f32.mrf.mxu0
      %v5665 = vadd.f32 0.0, %v5664
      %5666 = vmatprep.mubr.f32.mxu0 %v5564
      %5667 = vmatmul.mubr.f32.gmra.mxu0 %v5563
      %v5668 = vpop.f32.mrf.mxu0
      %v5669 = vadd.f32 0.0, %v5668
      %v5670 = vpop.f32.mrf.mxu0
      %v5671 = vadd.f32 0.0, %v5670
      %5672 = vmatprep.mubr.f32.mxu0 %v5567
      %5673 = vmatmul.mubr.f32.gmra.mxu0 %v5566
      %v5674 = vpop.f32.mrf.mxu0
      %v5675 = vadd.f32 0.0, %v5674
      %v5676 = vpop.f32.mrf.mxu0
      %v5677 = vadd.f32 0.0, %v5676
      %5678 = vmatprep.mubr.f32.mxu0 %v5570
      %5679 = vmatmul.mubr.f32.gmra.mxu0 %v5569
      %v5680 = vpop.f32.mrf.mxu0
      %v5681 = vadd.f32 0.0, %v5680
      %v5682 = vpop.f32.mrf.mxu0
      %v5683 = vadd.f32 0.0, %v5682
      %5684 = vmatprep.mubr.f32.mxu0 %v5573
      %5685 = vmatmul.mubr.f32.gmra.mxu0 %v5572
      %v5686 = vpop.f32.mrf.mxu0
      %v5687 = vadd.f32 0.0, %v5686
      %v5688 = vpop.f32.mrf.mxu0
      %v5689 = vadd.f32 0.0, %v5688
      %5690 = vmatprep.mubr.f32.mxu0 %v5576
      %5691 = vmatmul.mubr.f32.gmra.mxu0 %v5575
      %v5692 = vpop.f32.mrf.mxu0
      %v5693 = vadd.f32 0.0, %v5692
      %v5694 = vpop.f32.mrf.mxu0
      %v5695 = vadd.f32 0.0, %v5694
      %5696 = vmatprep.mubr.f32.mxu0 %v5579
      %5697 = vmatmul.mubr.f32.gmra.mxu0 %v5578
      %v5698 = vpop.f32.mrf.mxu0
      %v5699 = vadd.f32 0.0, %v5698
      %v5700 = vpop.f32.mrf.mxu0
      %v5701 = vadd.f32 0.0, %v5700
      %5702 = vmatprep.mubr.f32.mxu0 %v5582
      %5703 = vmatmul.mubr.f32.gmra.mxu0 %v5581
      %v5704 = vpop.f32.mrf.mxu0
      %v5705 = vadd.f32 0.0, %v5704
      %v5706 = vpop.f32.mrf.mxu0
      %v5707 = vadd.f32 0.0, %v5706
      %5708 = vdwg.mxu0
      %5709 = vmatprep.subr.mxu0 0.0
      %5710 = vmatpush1.xpose.msra.mxu0 %v5505
      %5711 = vmatprep.subr.mxu0 0.0
      %5712 = vmatpush1.xpose.msra.mxu0 %v5502
      %5713 = vmatprep.subr.mxu0 0.0
      %5714 = vmatpush1.xpose.msra.mxu0 %v5499
      %5715 = vmatprep.subr.mxu0 0.0
      %5716 = vmatpush1.xpose.msra.mxu0 %v5496
      %5717 = vmatprep.subr.mxu0 0.0
      %5718 = vmatpush1.xpose.msra.mxu0 %v5493
      %5719 = vmatprep.subr.mxu0 0.0
      %5720 = vmatpush1.xpose.msra.mxu0 %v5490
      %5721 = vmatprep.subr.mxu0 0.0
      %5722 = vmatpush1.xpose.msra.mxu0 %v5487
      %5723 = vmatprep.subr.mxu0 0.0
      %5724 = vmatpush1.xpose.msra.mxu0 %v5484
      %5725 = vmatprep.subr.mxu0 0.0
      %5726 = vmatpush1.xpose.msra.mxu0 %v5481
      %5727 = vmatprep.subr.mxu0 0.0
      %5728 = vmatpush1.xpose.msra.mxu0 %v5478
      %5729 = vmatprep.subr.mxu0 0.0
      %5730 = vmatpush1.xpose.msra.mxu0 %v5475
      %5731 = vmatprep.subr.mxu0 0.0
      %5732 = vmatpush1.xpose.msra.mxu0 %v5472
      %5733 = vmatprep.subr.mxu0 0.0
      %5734 = vmatpush1.xpose.msra.mxu0 %v5469
      %5735 = vmatprep.subr.mxu0 0.0
      %5736 = vmatpush1.xpose.msra.mxu0 %v5466
      %5737 = vmatprep.subr.mxu0 0.0
      %5738 = vmatpush1.xpose.msra.mxu0 %v5463
      %5739 = vmatprep.subr.mxu0 0.0
      %5740 = vmatpush1.xpose.msra.mxu0 %v5460
      %5741 = vmatprep.subr.mxu0 0.0
      %5742 = vmatpush2.xpose.msra.mxu0 %v5553
      %5743 = vmatprep.subr.mxu0 0.0
      %5744 = vmatpush2.xpose.msra.mxu0 %v5550
      %5745 = vmatprep.subr.mxu0 0.0
      %5746 = vmatpush2.xpose.msra.mxu0 %v5547
      %5747 = vmatprep.subr.mxu0 0.0
      %5748 = vmatpush2.xpose.msra.mxu0 %v5544
      %5749 = vmatprep.subr.mxu0 0.0
      %5750 = vmatpush2.xpose.msra.mxu0 %v5541
      %5751 = vmatprep.subr.mxu0 0.0
      %5752 = vmatpush2.xpose.msra.mxu0 %v5538
      %5753 = vmatprep.subr.mxu0 0.0
      %5754 = vmatpush2.xpose.msra.mxu0 %v5535
      %5755 = vmatprep.subr.mxu0 0.0
      %5756 = vmatpush2.xpose.msra.mxu0 %v5532
      %5757 = vmatprep.subr.mxu0 0.0
      %5758 = vmatpush2.xpose.msra.mxu0 %v5529
      %5759 = vmatprep.subr.mxu0 0.0
      %5760 = vmatpush2.xpose.msra.mxu0 %v5526
      %5761 = vmatprep.subr.mxu0 0.0
      %5762 = vmatpush2.xpose.msra.mxu0 %v5523
      %5763 = vmatprep.subr.mxu0 0.0
      %5764 = vmatpush2.xpose.msra.mxu0 %v5520
      %5765 = vmatprep.subr.mxu0 0.0
      %5766 = vmatpush2.xpose.msra.mxu0 %v5517
      %5767 = vmatprep.subr.mxu0 0.0
      %5768 = vmatpush2.xpose.msra.mxu0 %v5514
      %5769 = vmatprep.subr.mxu0 0.0
      %5770 = vmatpush2.xpose.msra.mxu0 %v5511
      %5771 = vmatprep.subr.mxu0 0.0
      %5772 = vmatpush2.xpose.msra.mxu0 %v5508
      %5773 = vmatprep.mubr.f32.mxu0 0.0
      %5774 = vmatmul.mubr.f32.gmra.mxu0 %v5556
      %v5775 = vpop.f32.mrf.mxu0
      %v5776 = vadd.f32 %v5651, %v5775
      %v5777 = vpop.f32.mrf.mxu0
      %v5778 = vadd.f32 %v5653, %v5777
      %5779 = vmatprep.mubr.f32.mxu0 0.0
      %5780 = vmatmul.mubr.f32.gmra.mxu0 %v5559
      %v5781 = vpop.f32.mrf.mxu0
      %v5782 = vadd.f32 %v5657, %v5781
      %v5783 = vpop.f32.mrf.mxu0
      %v5784 = vadd.f32 %v5659, %v5783
      %5785 = vmatprep.mubr.f32.mxu0 0.0
      %5786 = vmatmul.mubr.f32.gmra.mxu0 %v5562
      %v5787 = vpop.f32.mrf.mxu0
      %v5788 = vadd.f32 %v5663, %v5787
      %v5789 = vpop.f32.mrf.mxu0
      %v5790 = vadd.f32 %v5665, %v5789
      %5791 = vmatprep.mubr.f32.mxu0 0.0
      %5792 = vmatmul.mubr.f32.gmra.mxu0 %v5565
      %v5793 = vpop.f32.mrf.mxu0
      %v5794 = vadd.f32 %v5669, %v5793
      %v5795 = vpop.f32.mrf.mxu0
      %v5796 = vadd.f32 %v5671, %v5795
      %5797 = vmatprep.mubr.f32.mxu0 0.0
      %5798 = vmatmul.mubr.f32.gmra.mxu0 %v5568
      %v5799 = vpop.f32.mrf.mxu0
      %v5800 = vadd.f32 %v5675, %v5799
      %v5801 = vpop.f32.mrf.mxu0
      %v5802 = vadd.f32 %v5677, %v5801
      %5803 = vmatprep.mubr.f32.mxu0 0.0
      %5804 = vmatmul.mubr.f32.gmra.mxu0 %v5571
      %v5805 = vpop.f32.mrf.mxu0
      %v5806 = vadd.f32 %v5681, %v5805
      %v5807 = vpop.f32.mrf.mxu0
      %v5808 = vadd.f32 %v5683, %v5807
      %5809 = vmatprep.mubr.f32.mxu0 0.0
      %5810 = vmatmul.mubr.f32.gmra.mxu0 %v5574
      %v5811 = vpop.f32.mrf.mxu0
      %v5812 = vadd.f32 %v5687, %v5811
      %v5813 = vpop.f32.mrf.mxu0
      %v5814 = vadd.f32 %v5689, %v5813
      %5815 = vmatprep.mubr.f32.mxu0 0.0
      %5816 = vmatmul.mubr.f32.gmra.mxu0 %v5577
      %v5817 = vpop.f32.mrf.mxu0
      %v5818 = vadd.f32 %v5693, %v5817
      %v5819 = vpop.f32.mrf.mxu0
      %v5820 = vadd.f32 %v5695, %v5819
      %5821 = vmatprep.mubr.f32.mxu0 0.0
      %5822 = vmatmul.mubr.f32.gmra.mxu0 %v5580
      %v5823 = vpop.f32.mrf.mxu0
      %v5824 = vadd.f32 %v5699, %v5823
      %v5825 = vpop.f32.mrf.mxu0
      %v5826 = vadd.f32 %v5701, %v5825
      %5827 = vmatprep.mubr.f32.mxu0 0.0
      %5828 = vmatmul.mubr.f32.gmra.mxu0 %v5583
      %v5829 = vpop.f32.mrf.mxu0
      %v5830 = vadd.f32 %v5705, %v5829
      %v5831 = vpop.f32.mrf.mxu0
      %v5832 = vadd.f32 %v5707, %v5831
      %5833 = vdwg.mxu0
      %v5834 = vmax.f32 %v5776, 1e-05
      %v5835 = vmax.f32 %v5778, 1e-05
      %v5836 = vmax.f32 %v5782, 1e-05
      %v5837 = vmax.f32 %v5784, 1e-05
      %v5838 = vmax.f32 %v5788, 1e-05
      %v5839 = vmax.f32 %v5790, 1e-05
      %v5840 = vmax.f32 %v5794, 1e-05
      %v5841 = vmax.f32 %v5796, 1e-05
      %v5842 = vmax.f32 %v5800, 1e-05
      %v5843 = vmax.f32 %v5802, 1e-05
      %v5844 = vmax.f32 %v5806, 1e-05
      %v5845 = vmax.f32 %v5808, 1e-05
      %v5846 = vmax.f32 %v5812, 1e-05
      %v5847 = vmax.f32 %v5814, 1e-05
      %v5848 = vmax.f32 %v5818, 1e-05
      %v5849 = vmax.f32 %v5820, 1e-05
      %v5850 = vmax.f32 %v5824, 1e-05
      %v5851 = vmax.f32 %v5826, 1e-05
      %v5852 = vmax.f32 %v5830, 1e-05
      %v5853 = vmax.f32 %v5832, 1e-05
      %v5854 = vlog2.pop %v5834
      %v5855 = vmul.f32 %v5854, 0.6931472
      %v5856 = vlog2.pop %v5835
      %v5857 = vmul.f32 %v5856, 0.6931472
      %v5858 = vlog2.pop %v5836
      %v5859 = vmul.f32 %v5858, 0.6931472
      %v5860 = vlog2.pop %v5837
      %v5861 = vmul.f32 %v5860, 0.6931472
      %v5862 = vlog2.pop %v5838
      %v5863 = vmul.f32 %v5862, 0.6931472
      %v5864 = vlog2.pop %v5839
      %v5865 = vmul.f32 %v5864, 0.6931472
      %v5866 = vlog2.pop %v5840
      %v5867 = vmul.f32 %v5866, 0.6931472
      %v5868 = vlog2.pop %v5841
      %v5869 = vmul.f32 %v5868, 0.6931472
      %v5870 = vlog2.pop %v5842
      %v5871 = vmul.f32 %v5870, 0.6931472
      %v5872 = vlog2.pop %v5843
      %v5873 = vmul.f32 %v5872, 0.6931472
      %v5874 = vlog2.pop %v5844
      %v5875 = vmul.f32 %v5874, 0.6931472
      %v5876 = vlog2.pop %v5845
      %v5877 = vmul.f32 %v5876, 0.6931472
      %v5878 = vlog2.pop %v5846
      %v5879 = vmul.f32 %v5878, 0.6931472
      %v5880 = vlog2.pop %v5847
      %v5881 = vmul.f32 %v5880, 0.6931472
      %v5882 = vlog2.pop %v5848
      %v5883 = vmul.f32 %v5882, 0.6931472
      %v5884 = vlog2.pop %v5849
      %v5885 = vmul.f32 %v5884, 0.6931472
      %v5886 = vlog2.pop %v5850
      %v5887 = vmul.f32 %v5886, 0.6931472
      %v5888 = vlog2.pop %v5851
      %v5889 = vmul.f32 %v5888, 0.6931472
      %v5890 = vlog2.pop %v5852
      %v5891 = vmul.f32 %v5890, 0.6931472
      %v5892 = vlog2.pop %v5853
      %v5893 = vmul.f32 %v5892, 0.6931472
      %5894 = vst [vmem:[%s311] sm:$0xff] %v5855
      %5895 = vst [vmem:[%s311 + $0x8] sm:$0xff] %v5857
      %5896 = vst [vmem:[%s311 + $0x10] sm:$0xff] %v5859
      %5897 = vst [vmem:[%s311 + $0x18] sm:$0xff] %v5861
      %5898 = vst [vmem:[%s311 + $0x20] sm:$0xff] %v5863
      %5899 = vst [vmem:[%s311 + $0x28] sm:$0xff] %v5865
      %5900 = vst [vmem:[%s311 + $0x30] sm:$0xff] %v5867
      %5901 = vst [vmem:[%s311 + $0x38] sm:$0xff] %v5869
      %5902 = vst [vmem:[%s311 + $0x40] sm:$0xff] %v5871
      %5903 = vst [vmem:[%s311 + $0x48] sm:$0xff] %v5873
      %5904 = vst [vmem:[%s311 + $0x50] sm:$0xff] %v5875
      %5905 = vst [vmem:[%s311 + $0x58] sm:$0xff] %v5877
      %5906 = vst [vmem:[%s311 + $0x60] sm:$0xff] %v5879
      %5907 = vst [vmem:[%s311 + $0x68] sm:$0xff] %v5881
      %5908 = vst [vmem:[%s311 + $0x70] sm:$0xff] %v5883
      %5909 = vst [vmem:[%s311 + $0x78] sm:$0xff] %v5885
      %5910 = vst [vmem:[%s311 + $0x80] sm:$0xff] %v5887
      %5911 = vst [vmem:[%s311 + $0x88] sm:$0xff] %v5889
      %5912 = vst [vmem:[%s311 + $0x90] sm:$0xff] %v5891
      %5913 = vst [vmem:[%s311 + $0x98] sm:$0xff] %v5893
      %s5914 = smul.u32 2, %s20
      %p5915 = scmp.lt.s32.totalorder %s19, 5
      %s5916 = scalar_select %p5915, %s19, 5
      %p5917 = scmp.lt.s32.totalorder %s5914, 1
      %s5918 = scalar_select %p5917, %s5914, 1
      %s5919 = smul.addr %s5916, 20
      %s5920 = sadd.s32 %s5918, %s5919
      %s5921 = smul.addr %s5920, 8
      %s5922 = scalar_lea.vmem %s4, %s5921
      // Predicated region
      $region37: #{for_each_mel_injector.1} parent=35 // pred_check
        %p5923 = pneg %p149
      $region38: #{for_each_mel_injector.1} parent=35 // pred_check_branch
        %5925 = sbr.rel (%p5923) target = $region40
      $region39: #{for_each_mel_injector.1} parent=35 // pred_region
        %s5926 = smul.u32 2, %s20
      $region40: #{for_each_mel_injector.1} parent=35 // pred_fallthru
        _
    $region36: #{for_each_mel_injector.1} parent=5 // pred_fallthru
      _
    %p5927 = scmp.le.s32.totalorder 2, %s10
    // Predicated region
    $region41: #{for_each_mel_injector.1} parent=5 // pred_check
      %p5928 = pneg %p5927
    $region42: #{for_each_mel_injector.1} parent=5 // pred_check_branch
      %5930 = sbr.rel (%p5928) target = $region44
    $region43: #{for_each_mel_injector.1} parent=5 // pred_region
      %s5931 = ssub.s32 %s10, 2
      // Predicated region
      $region45: #{for_each_mel_injector.1} parent=43 // pred_check
        %p5932 = pneg %p155
      $region46: #{for_each_mel_injector.1} parent=43 // pred_check_branch
        %5934 = sbr.rel (%p5932) target = $region48
      $region47: #{for_each_mel_injector.1} parent=43 // pred_region
        %s5935 = smul.u32 2, %s22
        %p5936 = scmp.lt.s32.totalorder %s21, 5
        %s5937 = scalar_select %p5936, %s21, 5
        %p5938 = scmp.lt.s32.totalorder %s5935, 1
        %s5939 = scalar_select %p5938, %s5935, 1
        %s5940 = smul.addr %s5937, 20
        %s5941 = sadd.s32 %s5939, %s5940
        %s5942 = smul.addr %s5941, 8
        %s5943 = scalar_lea.vmem %s4, %s5942
      $region48: #{for_each_mel_injector.1} parent=43 // pred_fallthru
        _
    $region44: #{for_each_mel_injector.1} parent=5 // pred_fallthru
      _
  $region6: #{for_each_mel_injector.1} parent=0 // loop_footer
    %s14 = sadd.s32 1, %s10
  $region7: #{for_each_mel_injector.1} parent=0 // loop_footer_branch
    %9 = sbr.rel target = $region3
  $region8: #{for_each_mel_injector.1} parent=0 // loop_exit
    _

</llo_original>
